<compile_context>
chip_gen: v6e
topology: v6e:2x2x1
jax: 0.10.0
libtpu: 0.0.40
codegen_flags: <defaults>
</compile_context>

<pallas_src>
import functools

import jax
import jax.numpy as jnp
from jax import lax
from jax.experimental import pallas as pl
from jax.experimental.pallas import tpu as pltpu

NUM_GROUPS = 32
EPS = 1e-6
LANE = 128

# Column layout of the per-channel constant table (C, 9), f32.
_RN1_W, _RN1_B, _C1_B, _RN2_W, _RN2_B, _C2_B, _AN_W, _AN_B, _PO_B = range(9)


def _encoder_block_kernel(x_ref, mask_ref,
                          sel_ref, selT_ref, vtab_ref,
                          c1w_ref, c2w_ref, qvw_ref, qvb_ref,
                          kwT_ref, kbT_ref, pw_ref,
                          out_ref, xpad_ref, *, num_groups, eps):
    C, T = x_ref.shape            # unpadded block straight from HBM
    Tp = xpad_ref.shape[1]        # lane-dense working width (multiple of 128)
    g = C // num_groups
    inv_n = 1.0 / float(g * T)
    padded = T < Tp
    f32, bf16 = jnp.float32, jnp.bfloat16

    # ---- in-kernel lane padding (zero scratch every step: megacore-safe) ----
    if padded:
        xpad_ref[...] = jnp.zeros_like(xpad_ref)
        xpad_ref[:, 0:T] = x_ref[...].astype(f32)
        x = xpad_ref[...]
    else:
        x = x_ref[...].astype(f32)

    sel = sel_ref[...]            # (G, C) one-hot group selector
    selT = selT_ref[...]          # (C, G)
    vtab = vtab_ref[...]          # (C, 9) per-channel affine / bias table

    if padded:
        col_mask = (lax.broadcasted_iota(jnp.int32, (1, Tp), 1) < T).astype(f32)
    else:
        col_mask = None

    def mask_cols(h):
        return h * col_mask if padded else h

    def group_norm(h, gamma, beta, already_masked):
        # statistics over real columns only, exact f32
        hs = h if (already_masked or not padded) else h * col_mask
        s1 = jnp.sum(hs, axis=1, keepdims=True)                 # (C, 1)
        s2 = jnp.sum(hs * hs, axis=1, keepdims=True)            # (C, 1)
        cat = jnp.concatenate([s1, s2], axis=1)                 # (C, 2)
        grp = jnp.dot(sel, cat, preferred_element_type=f32)     # (G, 2)  per-group sums
        back = jnp.dot(selT, grp, preferred_element_type=f32)   # (C, 2)  broadcast back
        mean = back[:, 0:1] * inv_n
        var = jnp.maximum(back[:, 1:2] * inv_n - mean * mean, 0.0)
        scale = lax.rsqrt(var + eps) * gamma                    # fold affine into one FMA
        shift = beta - mean * scale
        return h * scale + shift

    def silu(h):
        return h * jax.nn.sigmoid(h)

    def conv1d_k3(h, w_ref, b):
        # h is exactly zero at padded columns (mask_cols before every conv);
        # taps stacked along the contraction axis -> single K=3C matmul.
        h_m1 = pltpu.roll(h, shift=1, axis=1)        # [:, t] = h[:, t-1] (wraps)
        h_p1 = pltpu.roll(h, shift=Tp - 1, axis=1)   # [:, t] = h[:, t+1] (wraps)
        if not padded:
            # no zero-padding columns available -> explicitly zero the wrapped boundaries
            lane = lax.broadcasted_iota(jnp.int32, (C, Tp), 1)
            h_m1 = jnp.where(lane == 0, 0.0, h_m1)
            h_p1 = jnp.where(lane == Tp - 1, 0.0, h_p1)
        taps = jnp.concatenate([h_m1, h, h_p1], axis=0).astype(bf16)   # (3C, Tp)
        return jnp.dot(w_ref[...], taps, preferred_element_type=f32) + b

    # ---- ResnetBlockwithKernel (temb=None, dropout identity) ----
    h = group_norm(x, vtab[:, _RN1_W:_RN1_W + 1], vtab[:, _RN1_B:_RN1_B + 1],
                   already_masked=True)                       # x padded columns are exact zeros
    h = mask_cols(silu(h))
    h = conv1d_k3(h, c1w_ref, vtab[:, _C1_B:_C1_B + 1])
    h = group_norm(h, vtab[:, _RN2_W:_RN2_W + 1], vtab[:, _RN2_B:_RN2_B + 1],
                   already_masked=False)
    h = mask_cols(silu(h))
    h = conv1d_k3(h, c2w_ref, vtab[:, _C2_B:_C2_B + 1])
    xr = x + h

    # ---- BiasedSelfAttnBlock (reweight=False) ----
    hn = group_norm(xr, vtab[:, _AN_W:_AN_W + 1], vtab[:, _AN_B:_AN_B + 1],
                    already_masked=False)
    hn_b = hn.astype(bf16)
    hn_t_b = jnp.transpose(hn_b)                              # (Tp, C) bf16, single transpose

    # fused q/v projection: (2C, C) @ (C, Tp); slice in-register, keep bf16 operands live
    qv = jnp.dot(qvw_ref[...], hn_b, preferred_element_type=f32) + qvb_ref[...]   # (2C, Tp)
    q = qv[0:C, :].astype(bf16)                               # (C, Tq)
    v = qv[C:2 * C, :].astype(bf16)                           # (C, Tk)
    kT = (jnp.dot(hn_t_b, kwT_ref[...], preferred_element_type=f32)
          + kbT_ref[...]).astype(bf16)                        # (Tk, C)

    # Transposed scores: wT[j, i] = sum_c k[c, j] * q[c, i]  (== w_[i, j] of the reference)
    wT = jnp.dot(kT, q, preferred_element_type=f32) * (float(C) ** -0.5)   # (Tk, Tq)
    if padded:
        key_valid = lax.broadcasted_iota(jnp.int32, (Tp, 1), 0) < T
        wT = jnp.where(key_valid, wT, -1e30)                  # padded keys contribute nothing
    # softmax over keys (axis 0), f32
    wT = wT - jnp.max(wT, axis=0, keepdims=True)
    wT = jnp.exp(wT)
    wT = wT * pl.reciprocal(jnp.sum(wT, axis=0, keepdims=True), approx=True)

    # user bias mask over keys, applied AFTER softmax (reference semantics, reweight=False)
    key_mask = mask_ref[...].astype(f32)                      # (T, 1)
    if padded:
        key_mask = jnp.concatenate([key_mask, jnp.zeros((Tp - T, 1), f32)], axis=0)
    wT = wT * key_mask                                        # broadcast over queries

    h_att = jnp.dot(v, wT.astype(bf16), preferred_element_type=f32)               # (C, Tq)
    h_att = jnp.dot(pw_ref[...], h_att.astype(bf16), preferred_element_type=f32) \
            + vtab[:, _PO_B:_PO_B + 1]

    res = xr + h_att
    if padded:
        res = res[:, 0:T]                                     # only real columns go to HBM
    out_ref[...] = res.astype(out_ref.dtype)


def _prepare_params(params, C):
    """Layout plumbing: PyTorch-shaped params -> consolidated, kernel-friendly operands."""
    f32, bf16 = jnp.float32, jnp.bfloat16

    # per-channel affine / bias vectors packed into one (C, 9) f32 table
    vtab = jnp.stack([jnp.asarray(params[k]) for k in
                      ("rn1_w", "rn1_b", "c1_b", "rn2_w", "rn2_b", "c2_b",
                       "an_w", "an_b", "po_b")], axis=1).astype(f32)          # (C, 9)

    def conv_fuse(w):   # (Cout, Cin, 3) -> (Cout, 3*Cin); taps ordered [t-1, t, t+1]
        w = jnp.asarray(w)
        return jnp.concatenate([w[:, :, 0], w[:, :, 1], w[:, :, 2]], axis=1).astype(bf16)

    qv_w = jnp.concatenate([jnp.asarray(params["q_w"]),
                            jnp.asarray(params["v_w"])], axis=0).astype(bf16)  # (2C, C)
    qv_b = jnp.concatenate([jnp.asarray(params["q_b"]),
                            jnp.asarray(params["v_b"])], axis=0).reshape(2 * C, 1).astype(f32)

    return dict(
        vtab=vtab,
        c1_w=conv_fuse(params["c1_w"]),
        c2_w=conv_fuse(params["c2_w"]),
        qv_w=qv_w, qv_b=qv_b,
        kwT=jnp.asarray(params["k_w"]).T.astype(bf16),          # k used in transposed form
        kbT=jnp.asarray(params["k_b"]).reshape(1, C).astype(f32),
        pw=jnp.asarray(params["po_w"]).astype(bf16),
    )


def transformer_style_encoder_block(x, params, mask=None):
    """x: (B, C, T); mask: optional (B, T); returns (B, C, T) in x.dtype."""
    B, C, T = x.shape
    assert C % NUM_GROUPS == 0, "GroupNorm(32) requires C % 32 == 0"
    Tp = pl.cdiv(T, LANE) * LANE            # lane-dense working width (in-kernel scratch only)

    if mask is None:
        mask = jnp.ones((B, T), jnp.float32)
    mask_col = mask.astype(jnp.float32).reshape(B, T, 1)   # keys-as-rows orientation

    # one-hot group selector (precomputed once, constant per grid step)
    gsz = C // NUM_GROUPS
    grp_of_ch = jnp.arange(C, dtype=jnp.int32) // gsz
    sel = (jnp.arange(NUM_GROUPS, dtype=jnp.int32)[:, None] == grp_of_ch[None, :]).astype(jnp.float32)
    selT = sel.T

    pp = _prepare_params(params, C)
    const_inputs = [sel, selT, pp["vtab"], pp["c1_w"], pp["c2_w"],
                    pp["qv_w"], pp["qv_b"], pp["kwT"], pp["kbT"], pp["pw"]]

    def _const_spec(shape):
        nd = len(shape)
        return pl.BlockSpec(shape, lambda b, _nd=nd: (0,) * _nd)

    in_specs = [
        pl.BlockSpec((None, C, T), lambda b: (b, 0, 0)),    # x, unpadded per-batch block
        pl.BlockSpec((None, T, 1), lambda b: (b, 0, 0)),    # mask, per-batch key column
    ] + [_const_spec(a.shape) for a in const_inputs]
    out_spec = pl.BlockSpec((None, C, T), lambda b: (b, 0, 0))

    kernel = functools.partial(_encoder_block_kernel, num_groups=NUM_GROUPS, eps=EPS)

    fn = pl.pallas_call(
        kernel,
        out_shape=jax.ShapeDtypeStruct((B, C, T), x.dtype),
        grid=(B,),
        in_specs=in_specs,
        out_specs=out_spec,
        scratch_shapes=[pltpu.VMEM((C, Tp), jnp.float32)],      # lane-padded working copy of x
        compiler_params=pltpu.CompilerParams(
            dimension_semantics=("parallel",),   # batch elements independent (v7x: 2 TCs)
        ),
    )
    return fn(x, mask_col, *const_inputs)


def init_params(key, C):
    """Deterministic synthetic parameters matching the PyTorch module's shapes."""
    keys = jax.random.split(key, 18)
    n = lambda k, shape, s=0.1: s * jax.random.normal(k, shape, jnp.float32)
    params = {
        # ResnetBlockwithKernel
        "rn1_w": 1.0 + n(keys[0], (C,)), "rn1_b": n(keys[1], (C,)),
        "c1_w": n(keys[2], (C, C, 3)), "c1_b": n(keys[3], (C,), 0.05),
        "rn2_w": 1.0 + n(keys[4], (C,)), "rn2_b": n(keys[5], (C,)),
        "c2_w": n(keys[6], (C, C, 3)), "c2_b": n(keys[7], (C,), 0.05),
        # BiasedSelfAttnBlock
        "an_w": 1.0 + n(keys[8], (C,)), "an_b": n(keys[9], (C,)),
        "q_w": n(keys[10], (C, C)), "q_b": n(keys[11], (C,), 0.05),
        "k_w": n(keys[12], (C, C)), "k_b": n(keys[13], (C,), 0.05),
        "v_w": n(keys[14], (C, C)), "v_b": n(keys[15], (C,), 0.05),
        "po_w": n(keys[16], (C, C)), "po_b": n(keys[17], (C,), 0.05),
    }
    # TODO(synk): temb_proj (Linear 512->C) exists in ResnetBlockwithKernel.__init__ but is unused
    #             here since temb=None; Dropout(p=0.0) is identity. Both intentionally omitted.
    return params


if __name__ == "__main__":
    B, C, T = 2, 64, 16  # dim=64 (GroupNorm(32) needs dim % 32 == 0), seq length 16
    key = jax.random.PRNGKey(0)
    kx, kp = jax.random.split(key)
    x = jax.random.normal(kx, (B, C, T), jnp.float32)
    params = init_params(kp, C)

    # default path (mask=None -> all-ones bias mask)
    out = transformer_style_encoder_block(x, params, mask=None)
    out = jax.block_until_ready(out)
    assert out.shape == (B, C, T) and out.dtype == x.dtype
    assert bool(jnp.all(jnp.isfinite(out)))

    # exercise the bias-mask path with a ragged mask
    lens = jnp.array([T, T // 2], jnp.int32)
    mask = (jnp.arange(T)[None, :] < lens[:, None]).astype(jnp.float32)
    out_m = transformer_style_encoder_block(x, params, mask=mask)
    out_m = jax.block_until_ready(out_m)
    assert out_m.shape == (B, C, T)
    assert bool(jnp.all(jnp.isfinite(out_m)))

    print("KERNEL_OK")
</pallas_src>

<mosaic_0001>
module attributes {stable_mosaic.version = 11 : i64} {
  func.func @_encoder_block_kernel(%arg0: i32, %arg1: memref<1x64x16xf32, #tpu.memory_space<vmem>>, %arg2: memref<1x16x1xf32, #tpu.memory_space<vmem>>, %arg3: memref<32x64xf32, #tpu.memory_space<vmem>>, %arg4: memref<64x32xf32, #tpu.memory_space<vmem>>, %arg5: memref<64x9xf32, #tpu.memory_space<vmem>>, %arg6: memref<64x192xbf16, #tpu.memory_space<vmem>>, %arg7: memref<64x192xbf16, #tpu.memory_space<vmem>>, %arg8: memref<128x64xbf16, #tpu.memory_space<vmem>>, %arg9: memref<128x1xf32, #tpu.memory_space<vmem>>, %arg10: memref<64x64xbf16, #tpu.memory_space<vmem>>, %arg11: memref<1x64xf32, #tpu.memory_space<vmem>>, %arg12: memref<64x64xbf16, #tpu.memory_space<vmem>>, %arg13: memref<1x64x16xf32, #tpu.memory_space<vmem>>, %arg14: memref<64x128xf32, #tpu.memory_space<vmem>>) attributes {dimension_semantics = [#tpu.dimension_semantics<parallel>], iteration_bounds = array<i64: 2>, scalar_prefetch = 0 : i64, scratch_operands = 1 : i64, tpu.core_type = #tpu.core_type<tc>, window_params = [{transform_indices = @transform_0, window_bounds = array<i64: 1, 64, 16>}, {transform_indices = @transform_1, window_bounds = array<i64: 1, 16, 1>}, {pipeline_mode = #tpu.pipeline_mode<synchronous>, transform_indices = @transform_2, window_bounds = array<i64: 32, 64>}, {pipeline_mode = #tpu.pipeline_mode<synchronous>, transform_indices = @transform_3, window_bounds = array<i64: 64, 32>}, {pipeline_mode = #tpu.pipeline_mode<synchronous>, transform_indices = @transform_4, window_bounds = array<i64: 64, 9>}, {pipeline_mode = #tpu.pipeline_mode<synchronous>, transform_indices = @transform_5, window_bounds = array<i64: 64, 192>}, {pipeline_mode = #tpu.pipeline_mode<synchronous>, transform_indices = @transform_6, window_bounds = array<i64: 64, 192>}, {pipeline_mode = #tpu.pipeline_mode<synchronous>, transform_indices = @transform_7, window_bounds = array<i64: 128, 64>}, {pipeline_mode = #tpu.pipeline_mode<synchronous>, transform_indices = @transform_8, window_bounds = array<i64: 128, 1>}, {pipeline_mode = #tpu.pipeline_mode<synchronous>, transform_indices = @transform_9, window_bounds = array<i64: 64, 64>}, {pipeline_mode = #tpu.pipeline_mode<synchronous>, transform_indices = @transform_10, window_bounds = array<i64: 1, 64>}, {pipeline_mode = #tpu.pipeline_mode<synchronous>, transform_indices = @transform_11, window_bounds = array<i64: 64, 64>}, {transform_indices = @transform_12, window_bounds = array<i64: 1, 64, 16>}]} {
    %cst = arith.constant 0.000000e+00 : f32
    %0 = vector.broadcast %cst : f32 to vector<64x128xf32>
    %c0 = arith.constant 0 : index
    %c0_0 = arith.constant 0 : index
    %1 = vector.load %arg14[%c0, %c0_0] : memref<64x128xf32, #tpu.memory_space<vmem>>, vector<64x128xf32>
    tpu.vector_store %arg14[%c0, %c0_0], %0 {strides = array<i32>} : memref<64x128xf32, #tpu.memory_space<vmem>>, vector<64x128xf32>,
    %c0_1 = arith.constant 0 : index
    %c0_2 = arith.constant 0 : index
    %c0_3 = arith.constant 0 : index
    %2 = vector.load %arg1[%c0_1, %c0_2, %c0_3] : memref<1x64x16xf32, #tpu.memory_space<vmem>>, vector<1x64x16xf32>
    %3 = vector.shape_cast %2 : vector<1x64x16xf32> to vector<64x16xf32>
    %c0_4 = arith.constant 0 : index
    %c0_5 = arith.constant 0 : index
    %4 = vector.load %arg14[%c0_4, %c0_5] : memref<64x128xf32, #tpu.memory_space<vmem>>, vector<64x16xf32>
    tpu.vector_store %arg14[%c0_4, %c0_5], %3 {strides = array<i32>} : memref<64x128xf32, #tpu.memory_space<vmem>>, vector<64x16xf32>,
    %c0_6 = arith.constant 0 : index
    %c0_7 = arith.constant 0 : index
    %5 = vector.load %arg14[%c0_6, %c0_7] : memref<64x128xf32, #tpu.memory_space<vmem>>, vector<64x128xf32>
    %c0_8 = arith.constant 0 : index
    %c0_9 = arith.constant 0 : index
    %6 = vector.load %arg3[%c0_8, %c0_9] : memref<32x64xf32, #tpu.memory_space<vmem>>, vector<32x64xf32>
    %c0_10 = arith.constant 0 : index
    %c0_11 = arith.constant 0 : index
    %7 = vector.load %arg4[%c0_10, %c0_11] : memref<64x32xf32, #tpu.memory_space<vmem>>, vector<64x32xf32>
    %c0_12 = arith.constant 0 : index
    %c0_13 = arith.constant 0 : index
    %8 = vector.load %arg5[%c0_12, %c0_13] : memref<64x9xf32, #tpu.memory_space<vmem>>, vector<64x9xf32>
    %9 = tpu.iota {dimensions = array<i32: 1>} : vector<1x128xi32>
    %c16_i32 = arith.constant 16 : i32
    %10 = vector.broadcast %c16_i32 : i32 to vector<1x128xi32>
    %11 = arith.cmpi slt, %9, %10 : vector<1x128xi32>
    %12 = arith.extui %11 : vector<1x128xi1> to vector<1x128xi32>
    %13 = arith.sitofp %12 : vector<1x128xi32> to vector<1x128xf32>
    %14 = vector.extract_strided_slice %8 {offsets = [0, 0], sizes = [64, 1], strides = [1, 1]} : vector<64x9xf32> to vector<64x1xf32>
    %15 = vector.extract_strided_slice %8 {offsets = [0, 1], sizes = [64, 1], strides = [1, 1]} : vector<64x9xf32> to vector<64x1xf32>
    %cst_14 = arith.constant dense<0.000000e+00> : vector<64xf32>
    %16 = vector.multi_reduction <add>, %5, %cst_14 [1] : vector<64x128xf32> to vector<64xf32>
    %17 = vector.shape_cast %16 : vector<64xf32> to vector<64x1xf32>
    %18 = arith.mulf %5, %5 : vector<64x128xf32>
    %cst_15 = arith.constant dense<0.000000e+00> : vector<64xf32>
    %19 = vector.multi_reduction <add>, %18, %cst_15 [1] : vector<64x128xf32> to vector<64xf32>
    %20 = vector.shape_cast %19 : vector<64xf32> to vector<64x1xf32>
    %21 = tpu.concatenate %17, %20 in 1 : vector<64x1xf32>, vector<64x1xf32> -> vector<64x2xf32>
    %cst_16 = arith.constant dense<0.000000e+00> : vector<32x2xf32>
    %22 = tpu.matmul %6, %21, %cst_16 {dimension_numbers = #tpu.dot_dimension_numbers<[1], [0], [0], [1], [0, 0, 1, 1], [], []>} : vector<32x64xf32>, vector<64x2xf32>, vector<32x2xf32> -> vector<32x2xf32>
    %cst_17 = arith.constant dense<0.000000e+00> : vector<64x2xf32>
    %23 = tpu.matmul %7, %22, %cst_17 {dimension_numbers = #tpu.dot_dimension_numbers<[1], [0], [0], [1], [0, 0, 1, 1], [], []>} : vector<64x32xf32>, vector<32x2xf32>, vector<64x2xf32> -> vector<64x2xf32>
    %24 = vector.extract_strided_slice %23 {offsets = [0, 0], sizes = [64, 1], strides = [1, 1]} : vector<64x2xf32> to vector<64x1xf32>
    %cst_18 = arith.constant 3.125000e-02 : f32
    %25 = vector.broadcast %cst_18 : f32 to vector<64x1xf32>
    %26 = arith.mulf %24, %25 : vector<64x1xf32>
    %27 = vector.extract_strided_slice %23 {offsets = [0, 1], sizes = [64, 1], strides = [1, 1]} : vector<64x2xf32> to vector<64x1xf32>
    %cst_19 = arith.constant 3.125000e-02 : f32
    %28 = vector.broadcast %cst_19 : f32 to vector<64x1xf32>
    %29 = arith.mulf %27, %28 : vector<64x1xf32>
    %30 = arith.mulf %26, %26 : vector<64x1xf32>
    %31 = arith.subf %29, %30 : vector<64x1xf32>
    %cst_20 = arith.constant 0.000000e+00 : f32
    %32 = vector.broadcast %cst_20 : f32 to vector<64x1xf32>
    %33 = arith.maximumf %31, %32 : vector<64x1xf32>
    %cst_21 = arith.constant 9.99999997E-7 : f32
    %34 = vector.broadcast %cst_21 : f32 to vector<64x1xf32>
    %35 = arith.addf %33, %34 : vector<64x1xf32>
    %36 = math.rsqrt %35 : vector<64x1xf32>
    %37 = arith.mulf %36, %14 : vector<64x1xf32>
    %38 = arith.mulf %26, %37 : vector<64x1xf32>
    %39 = arith.subf %15, %38 : vector<64x1xf32>
    %40 = vector.broadcast %37 : vector<64x1xf32> to vector<64x128xf32>
    %41 = arith.mulf %5, %40 : vector<64x128xf32>
    %42 = vector.broadcast %39 : vector<64x1xf32> to vector<64x128xf32>
    %43 = arith.addf %41, %42 : vector<64x128xf32>
    %44 = arith.negf %43 : vector<64x128xf32>
    %45 = math.exp %44 : vector<64x128xf32>
    %cst_22 = arith.constant 1.000000e+00 : f32
    %46 = vector.broadcast %cst_22 : f32 to vector<64x128xf32>
    %47 = arith.addf %46, %45 : vector<64x128xf32>
    %48 = arith.divf %46, %47 : vector<64x128xf32>
    %49 = arith.mulf %43, %48 : vector<64x128xf32>
    %50 = vector.broadcast %13 : vector<1x128xf32> to vector<64x128xf32>
    %51 = arith.mulf %49, %50 : vector<64x128xf32>
    %52 = vector.extract_strided_slice %8 {offsets = [0, 2], sizes = [64, 1], strides = [1, 1]} : vector<64x9xf32> to vector<64x1xf32>
    %c1_i32 = arith.constant 1 : i32
    %53 = tpu.dynamic_rotate %51 by %c1_i32 dim 1 : vector<64x128xf32>, i32 -> vector<64x128xf32>
    %c127_i32 = arith.constant 127 : i32
    %54 = tpu.dynamic_rotate %51 by %c127_i32 dim 1 : vector<64x128xf32>, i32 -> vector<64x128xf32>
    %55 = tpu.concatenate %53, %51, %54 in 0 : vector<64x128xf32>, vector<64x128xf32>, vector<64x128xf32> -> vector<192x128xf32>
    %56 = arith.truncf %55 : vector<192x128xf32> to vector<192x128xbf16>
    %c0_23 = arith.constant 0 : index
    %c0_24 = arith.constant 0 : index
    %57 = vector.load %arg6[%c0_23, %c0_24] : memref<64x192xbf16, #tpu.memory_space<vmem>>, vector<64x192xbf16>
    %cst_25 = arith.constant dense<0.000000e+00> : vector<64x128xf32>
    %58 = tpu.matmul %57, %56, %cst_25 {dimension_numbers = #tpu.dot_dimension_numbers<[1], [0], [0], [1], [0, 0, 1, 1], [], []>} : vector<64x192xbf16>, vector<192x128xbf16>, vector<64x128xf32> -> vector<64x128xf32>
    %59 = vector.broadcast %52 : vector<64x1xf32> to vector<64x128xf32>
    %60 = arith.addf %58, %59 : vector<64x128xf32>
    %61 = vector.extract_strided_slice %8 {offsets = [0, 3], sizes = [64, 1], strides = [1, 1]} : vector<64x9xf32> to vector<64x1xf32>
    %62 = vector.extract_strided_slice %8 {offsets = [0, 4], sizes = [64, 1], strides = [1, 1]} : vector<64x9xf32> to vector<64x1xf32>
    %63 = vector.broadcast %13 : vector<1x128xf32> to vector<64x128xf32>
    %64 = arith.mulf %60, %63 : vector<64x128xf32>
    %cst_26 = arith.constant dense<0.000000e+00> : vector<64xf32>
    %65 = vector.multi_reduction <add>, %64, %cst_26 [1] : vector<64x128xf32> to vector<64xf32>
    %66 = vector.shape_cast %65 : vector<64xf32> to vector<64x1xf32>
    %67 = arith.mulf %64, %64 : vector<64x128xf32>
    %cst_27 = arith.constant dense<0.000000e+00> : vector<64xf32>
    %68 = vector.multi_reduction <add>, %67, %cst_27 [1] : vector<64x128xf32> to vector<64xf32>
    %69 = vector.shape_cast %68 : vector<64xf32> to vector<64x1xf32>
    %70 = tpu.concatenate %66, %69 in 1 : vector<64x1xf32>, vector<64x1xf32> -> vector<64x2xf32>
    %cst_28 = arith.constant dense<0.000000e+00> : vector<32x2xf32>
    %71 = tpu.matmul %6, %70, %cst_28 {dimension_numbers = #tpu.dot_dimension_numbers<[1], [0], [0], [1], [0, 0, 1, 1], [], []>} : vector<32x64xf32>, vector<64x2xf32>, vector<32x2xf32> -> vector<32x2xf32>
    %cst_29 = arith.constant dense<0.000000e+00> : vector<64x2xf32>
    %72 = tpu.matmul %7, %71, %cst_29 {dimension_numbers = #tpu.dot_dimension_numbers<[1], [0], [0], [1], [0, 0, 1, 1], [], []>} : vector<64x32xf32>, vector<32x2xf32>, vector<64x2xf32> -> vector<64x2xf32>
    %73 = vector.extract_strided_slice %72 {offsets = [0, 0], sizes = [64, 1], strides = [1, 1]} : vector<64x2xf32> to vector<64x1xf32>
    %cst_30 = arith.constant 3.125000e-02 : f32
    %74 = vector.broadcast %cst_30 : f32 to vector<64x1xf32>
    %75 = arith.mulf %73, %74 : vector<64x1xf32>
    %76 = vector.extract_strided_slice %72 {offsets = [0, 1], sizes = [64, 1], strides = [1, 1]} : vector<64x2xf32> to vector<64x1xf32>
    %cst_31 = arith.constant 3.125000e-02 : f32
    %77 = vector.broadcast %cst_31 : f32 to vector<64x1xf32>
    %78 = arith.mulf %76, %77 : vector<64x1xf32>
    %79 = arith.mulf %75, %75 : vector<64x1xf32>
    %80 = arith.subf %78, %79 : vector<64x1xf32>
    %cst_32 = arith.constant 0.000000e+00 : f32
    %81 = vector.broadcast %cst_32 : f32 to vector<64x1xf32>
    %82 = arith.maximumf %80, %81 : vector<64x1xf32>
    %cst_33 = arith.constant 9.99999997E-7 : f32
    %83 = vector.broadcast %cst_33 : f32 to vector<64x1xf32>
    %84 = arith.addf %82, %83 : vector<64x1xf32>
    %85 = math.rsqrt %84 : vector<64x1xf32>
    %86 = arith.mulf %85, %61 : vector<64x1xf32>
    %87 = arith.mulf %75, %86 : vector<64x1xf32>
    %88 = arith.subf %62, %87 : vector<64x1xf32>
    %89 = vector.broadcast %86 : vector<64x1xf32> to vector<64x128xf32>
    %90 = arith.mulf %60, %89 : vector<64x128xf32>
    %91 = vector.broadcast %88 : vector<64x1xf32> to vector<64x128xf32>
    %92 = arith.addf %90, %91 : vector<64x128xf32>
    %93 = arith.negf %92 : vector<64x128xf32>
    %94 = math.exp %93 : vector<64x128xf32>
    %cst_34 = arith.constant 1.000000e+00 : f32
    %95 = vector.broadcast %cst_34 : f32 to vector<64x128xf32>
    %96 = arith.addf %95, %94 : vector<64x128xf32>
    %97 = arith.divf %95, %96 : vector<64x128xf32>
    %98 = arith.mulf %92, %97 : vector<64x128xf32>
    %99 = vector.broadcast %13 : vector<1x128xf32> to vector<64x128xf32>
    %100 = arith.mulf %98, %99 : vector<64x128xf32>
    %101 = vector.extract_strided_slice %8 {offsets = [0, 5], sizes = [64, 1], strides = [1, 1]} : vector<64x9xf32> to vector<64x1xf32>
    %c1_i32_35 = arith.constant 1 : i32
    %102 = tpu.dynamic_rotate %100 by %c1_i32_35 dim 1 : vector<64x128xf32>, i32 -> vector<64x128xf32>
    %c127_i32_36 = arith.constant 127 : i32
    %103 = tpu.dynamic_rotate %100 by %c127_i32_36 dim 1 : vector<64x128xf32>, i32 -> vector<64x128xf32>
    %104 = tpu.concatenate %102, %100, %103 in 0 : vector<64x128xf32>, vector<64x128xf32>, vector<64x128xf32> -> vector<192x128xf32>
    %105 = arith.truncf %104 : vector<192x128xf32> to vector<192x128xbf16>
    %c0_37 = arith.constant 0 : index
    %c0_38 = arith.constant 0 : index
    %106 = vector.load %arg7[%c0_37, %c0_38] : memref<64x192xbf16, #tpu.memory_space<vmem>>, vector<64x192xbf16>
    %cst_39 = arith.constant dense<0.000000e+00> : vector<64x128xf32>
    %107 = tpu.matmul %106, %105, %cst_39 {dimension_numbers = #tpu.dot_dimension_numbers<[1], [0], [0], [1], [0, 0, 1, 1], [], []>} : vector<64x192xbf16>, vector<192x128xbf16>, vector<64x128xf32> -> vector<64x128xf32>
    %108 = vector.broadcast %101 : vector<64x1xf32> to vector<64x128xf32>
    %109 = arith.addf %107, %108 : vector<64x128xf32>
    %110 = arith.addf %5, %109 : vector<64x128xf32>
    %111 = vector.extract_strided_slice %8 {offsets = [0, 6], sizes = [64, 1], strides = [1, 1]} : vector<64x9xf32> to vector<64x1xf32>
    %112 = vector.extract_strided_slice %8 {offsets = [0, 7], sizes = [64, 1], strides = [1, 1]} : vector<64x9xf32> to vector<64x1xf32>
    %113 = vector.broadcast %13 : vector<1x128xf32> to vector<64x128xf32>
    %114 = arith.mulf %110, %113 : vector<64x128xf32>
    %cst_40 = arith.constant dense<0.000000e+00> : vector<64xf32>
    %115 = vector.multi_reduction <add>, %114, %cst_40 [1] : vector<64x128xf32> to vector<64xf32>
    %116 = vector.shape_cast %115 : vector<64xf32> to vector<64x1xf32>
    %117 = arith.mulf %114, %114 : vector<64x128xf32>
    %cst_41 = arith.constant dense<0.000000e+00> : vector<64xf32>
    %118 = vector.multi_reduction <add>, %117, %cst_41 [1] : vector<64x128xf32> to vector<64xf32>
    %119 = vector.shape_cast %118 : vector<64xf32> to vector<64x1xf32>
    %120 = tpu.concatenate %116, %119 in 1 : vector<64x1xf32>, vector<64x1xf32> -> vector<64x2xf32>
    %cst_42 = arith.constant dense<0.000000e+00> : vector<32x2xf32>
    %121 = tpu.matmul %6, %120, %cst_42 {dimension_numbers = #tpu.dot_dimension_numbers<[1], [0], [0], [1], [0, 0, 1, 1], [], []>} : vector<32x64xf32>, vector<64x2xf32>, vector<32x2xf32> -> vector<32x2xf32>
    %cst_43 = arith.constant dense<0.000000e+00> : vector<64x2xf32>
    %122 = tpu.matmul %7, %121, %cst_43 {dimension_numbers = #tpu.dot_dimension_numbers<[1], [0], [0], [1], [0, 0, 1, 1], [], []>} : vector<64x32xf32>, vector<32x2xf32>, vector<64x2xf32> -> vector<64x2xf32>
    %123 = vector.extract_strided_slice %122 {offsets = [0, 0], sizes = [64, 1], strides = [1, 1]} : vector<64x2xf32> to vector<64x1xf32>
    %cst_44 = arith.constant 3.125000e-02 : f32
    %124 = vector.broadcast %cst_44 : f32 to vector<64x1xf32>
    %125 = arith.mulf %123, %124 : vector<64x1xf32>
    %126 = vector.extract_strided_slice %122 {offsets = [0, 1], sizes = [64, 1], strides = [1, 1]} : vector<64x2xf32> to vector<64x1xf32>
    %cst_45 = arith.constant 3.125000e-02 : f32
    %127 = vector.broadcast %cst_45 : f32 to vector<64x1xf32>
    %128 = arith.mulf %126, %127 : vector<64x1xf32>
    %129 = arith.mulf %125, %125 : vector<64x1xf32>
    %130 = arith.subf %128, %129 : vector<64x1xf32>
    %cst_46 = arith.constant 0.000000e+00 : f32
    %131 = vector.broadcast %cst_46 : f32 to vector<64x1xf32>
    %132 = arith.maximumf %130, %131 : vector<64x1xf32>
    %cst_47 = arith.constant 9.99999997E-7 : f32
    %133 = vector.broadcast %cst_47 : f32 to vector<64x1xf32>
    %134 = arith.addf %132, %133 : vector<64x1xf32>
    %135 = math.rsqrt %134 : vector<64x1xf32>
    %136 = arith.mulf %135, %111 : vector<64x1xf32>
    %137 = arith.mulf %125, %136 : vector<64x1xf32>
    %138 = arith.subf %112, %137 : vector<64x1xf32>
    %139 = vector.broadcast %136 : vector<64x1xf32> to vector<64x128xf32>
    %140 = arith.mulf %110, %139 : vector<64x128xf32>
    %141 = vector.broadcast %138 : vector<64x1xf32> to vector<64x128xf32>
    %142 = arith.addf %140, %141 : vector<64x128xf32>
    %143 = arith.truncf %142 : vector<64x128xf32> to vector<64x128xbf16>
    %144 = tpu.transpose %143, [1, 0] : vector<64x128xbf16> -> vector<128x64xbf16>
    %c0_48 = arith.constant 0 : index
    %c0_49 = arith.constant 0 : index
    %145 = vector.load %arg8[%c0_48, %c0_49] : memref<128x64xbf16, #tpu.memory_space<vmem>>, vector<128x64xbf16>
    %cst_50 = arith.constant dense<0.000000e+00> : vector<128x128xf32>
    %146 = tpu.matmul %145, %143, %cst_50 {dimension_numbers = #tpu.dot_dimension_numbers<[1], [0], [0], [1], [0, 0, 1, 1], [], []>} : vector<128x64xbf16>, vector<64x128xbf16>, vector<128x128xf32> -> vector<128x128xf32>
    %c0_51 = arith.constant 0 : index
    %c0_52 = arith.constant 0 : index
    %147 = vector.load %arg9[%c0_51, %c0_52] : memref<128x1xf32, #tpu.memory_space<vmem>>, vector<128x1xf32>
    %148 = vector.broadcast %147 : vector<128x1xf32> to vector<128x128xf32>
    %149 = arith.addf %146, %148 : vector<128x128xf32>
    %150 = vector.extract_strided_slice %149 {offsets = [0, 0], sizes = [64, 128], strides = [1, 1]} : vector<128x128xf32> to vector<64x128xf32>
    %151 = arith.truncf %150 : vector<64x128xf32> to vector<64x128xbf16>
    %152 = vector.extract_strided_slice %149 {offsets = [64, 0], sizes = [64, 128], strides = [1, 1]} : vector<128x128xf32> to vector<64x128xf32>
    %153 = arith.truncf %152 : vector<64x128xf32> to vector<64x128xbf16>
    %c0_53 = arith.constant 0 : index
    %c0_54 = arith.constant 0 : index
    %154 = vector.load %arg10[%c0_53, %c0_54] : memref<64x64xbf16, #tpu.memory_space<vmem>>, vector<64x64xbf16>
    %cst_55 = arith.constant dense<0.000000e+00> : vector<128x64xf32>
    %155 = tpu.matmul %144, %154, %cst_55 {dimension_numbers = #tpu.dot_dimension_numbers<[1], [0], [0], [1], [0, 0, 1, 1], [], []>} : vector<128x64xbf16>, vector<64x64xbf16>, vector<128x64xf32> -> vector<128x64xf32>
    %c0_56 = arith.constant 0 : index
    %c0_57 = arith.constant 0 : index
    %156 = vector.load %arg11[%c0_56, %c0_57] : memref<1x64xf32, #tpu.memory_space<vmem>>, vector<1x64xf32>
    %157 = vector.broadcast %156 : vector<1x64xf32> to vector<128x64xf32>
    %158 = arith.addf %155, %157 : vector<128x64xf32>
    %159 = arith.truncf %158 : vector<128x64xf32> to vector<128x64xbf16>
    %cst_58 = arith.constant dense<0.000000e+00> : vector<128x128xf32>
    %160 = tpu.matmul %159, %151, %cst_58 {dimension_numbers = #tpu.dot_dimension_numbers<[1], [0], [0], [1], [0, 0, 1, 1], [], []>} : vector<128x64xbf16>, vector<64x128xbf16>, vector<128x128xf32> -> vector<128x128xf32>
    %cst_59 = arith.constant 1.250000e-01 : f32
    %161 = vector.broadcast %cst_59 : f32 to vector<128x128xf32>
    %162 = arith.mulf %160, %161 : vector<128x128xf32>
    %163 = tpu.iota {dimensions = array<i32: 0>} : vector<128x1xi32>
    %c16_i32_60 = arith.constant 16 : i32
    %164 = vector.broadcast %c16_i32_60 : i32 to vector<128x1xi32>
    %165 = arith.cmpi slt, %163, %164 : vector<128x1xi32>
    %cst_61 = arith.constant -1.000000e+30 : f32
    %166 = vector.shape_cast %165 : vector<128x1xi1> to vector<128x1xi1>
    %167 = vector.broadcast %166 : vector<128x1xi1> to vector<128x128xi1>
    %168 = vector.broadcast %cst_61 : f32 to vector<128x128xf32>
    %169 = arith.select %167, %162, %168 : vector<128x128xi1>, vector<128x128xf32>
    %cst_62 = arith.constant dense<0xFF800000> : vector<128xf32>
    %170 = vector.multi_reduction <maximumf>, %169, %cst_62 [0] : vector<128x128xf32> to vector<128xf32>
    %171 = vector.shape_cast %170 : vector<128xf32> to vector<1x128xf32>
    %172 = vector.broadcast %171 : vector<1x128xf32> to vector<128x128xf32>
    %173 = arith.subf %169, %172 : vector<128x128xf32>
    %174 = math.exp %173 : vector<128x128xf32>
    %cst_63 = arith.constant dense<0.000000e+00> : vector<128xf32>
    %175 = vector.multi_reduction <add>, %174, %cst_63 [0] : vector<128x128xf32> to vector<128xf32>
    %176 = vector.shape_cast %175 : vector<128xf32> to vector<1x128xf32>
    %177 = tpu.reciprocal %176 {approx = true} : vector<1x128xf32> -> vector<1x128xf32>
    %178 = vector.broadcast %177 : vector<1x128xf32> to vector<128x128xf32>
    %179 = arith.mulf %174, %178 : vector<128x128xf32>
    %c0_64 = arith.constant 0 : index
    %c0_65 = arith.constant 0 : index
    %c0_66 = arith.constant 0 : index
    %180 = vector.load %arg2[%c0_64, %c0_65, %c0_66] : memref<1x16x1xf32, #tpu.memory_space<vmem>>, vector<1x16x1xf32>
    %181 = vector.shape_cast %180 : vector<1x16x1xf32> to vector<16x1xf32>
    %cst_67 = arith.constant 0.000000e+00 : f32
    %182 = vector.broadcast %cst_67 : f32 to vector<112x1xf32>
    %183 = tpu.concatenate %181, %182 in 0 : vector<16x1xf32>, vector<112x1xf32> -> vector<128x1xf32>
    %184 = vector.broadcast %183 : vector<128x1xf32> to vector<128x128xf32>
    %185 = arith.mulf %179, %184 : vector<128x128xf32>
    %186 = arith.truncf %185 : vector<128x128xf32> to vector<128x128xbf16>
    %cst_68 = arith.constant dense<0.000000e+00> : vector<64x128xf32>
    %187 = tpu.matmul %153, %186, %cst_68 {dimension_numbers = #tpu.dot_dimension_numbers<[1], [0], [0], [1], [0, 0, 1, 1], [], []>} : vector<64x128xbf16>, vector<128x128xbf16>, vector<64x128xf32> -> vector<64x128xf32>
    %c0_69 = arith.constant 0 : index
    %c0_70 = arith.constant 0 : index
    %188 = vector.load %arg12[%c0_69, %c0_70] : memref<64x64xbf16, #tpu.memory_space<vmem>>, vector<64x64xbf16>
    %189 = arith.truncf %187 : vector<64x128xf32> to vector<64x128xbf16>
    %cst_71 = arith.constant dense<0.000000e+00> : vector<64x128xf32>
    %190 = tpu.matmul %188, %189, %cst_71 {dimension_numbers = #tpu.dot_dimension_numbers<[1], [0], [0], [1], [0, 0, 1, 1], [], []>} : vector<64x64xbf16>, vector<64x128xbf16>, vector<64x128xf32> -> vector<64x128xf32>
    %191 = vector.extract_strided_slice %8 {offsets = [0, 8], sizes = [64, 1], strides = [1, 1]} : vector<64x9xf32> to vector<64x1xf32>
    %192 = vector.broadcast %191 : vector<64x1xf32> to vector<64x128xf32>
    %193 = arith.addf %190, %192 : vector<64x128xf32>
    %194 = arith.addf %110, %193 : vector<64x128xf32>
    %195 = vector.extract_strided_slice %194 {offsets = [0, 0], sizes = [64, 16], strides = [1, 1]} : vector<64x128xf32> to vector<64x16xf32>
    %c0_72 = arith.constant 0 : index
    %c0_73 = arith.constant 0 : index
    %c0_74 = arith.constant 0 : index
    %196 = vector.load %arg13[%c0_72, %c0_73, %c0_74] : memref<1x64x16xf32, #tpu.memory_space<vmem>>, vector<1x64x16xf32>
    %197 = vector.shape_cast %196 : vector<1x64x16xf32> to vector<64x16xf32>
    %198 = vector.shape_cast %195 : vector<64x16xf32> to vector<1x64x16xf32>
    tpu.vector_store %arg13[%c0_72, %c0_73, %c0_74], %198 {strides = array<i32>} : memref<1x64x16xf32, #tpu.memory_space<vmem>>, vector<1x64x16xf32>,
    return
  }
  func.func @transform_0(%arg0: i32) -> (i32, i32, i32) {
    %c0_i32 = arith.constant 0 : i32
    %c0_i32_0 = arith.constant 0 : i32
    %c0_i32_1 = arith.constant 0 : i32
    return %arg0, %c0_i32, %c0_i32_0 : i32, i32, i32
  }
  func.func @transform_1(%arg0: i32) -> (i32, i32, i32) {
    %c0_i32 = arith.constant 0 : i32
    %c0_i32_0 = arith.constant 0 : i32
    %c0_i32_1 = arith.constant 0 : i32
    return %arg0, %c0_i32, %c0_i32_0 : i32, i32, i32
  }
  func.func @transform_2(%arg0: i32) -> (i32, i32) {
    %c0_i32 = arith.constant 0 : i32
    %c0_i32_0 = arith.constant 0 : i32
    %c0_i32_1 = arith.constant 0 : i32
    return %c0_i32, %c0_i32_0 : i32, i32
  }
  func.func @transform_3(%arg0: i32) -> (i32, i32) {
    %c0_i32 = arith.constant 0 : i32
    %c0_i32_0 = arith.constant 0 : i32
    %c0_i32_1 = arith.constant 0 : i32
    return %c0_i32, %c0_i32_0 : i32, i32
  }
  func.func @transform_4(%arg0: i32) -> (i32, i32) {
    %c0_i32 = arith.constant 0 : i32
    %c0_i32_0 = arith.constant 0 : i32
    %c0_i32_1 = arith.constant 0 : i32
    return %c0_i32, %c0_i32_0 : i32, i32
  }
  func.func @transform_5(%arg0: i32) -> (i32, i32) {
    %c0_i32 = arith.constant 0 : i32
    %c0_i32_0 = arith.constant 0 : i32
    %c0_i32_1 = arith.constant 0 : i32
    return %c0_i32, %c0_i32_0 : i32, i32
  }
  func.func @transform_6(%arg0: i32) -> (i32, i32) {
    %c0_i32 = arith.constant 0 : i32
    %c0_i32_0 = arith.constant 0 : i32
    %c0_i32_1 = arith.constant 0 : i32
    return %c0_i32, %c0_i32_0 : i32, i32
  }
  func.func @transform_7(%arg0: i32) -> (i32, i32) {
    %c0_i32 = arith.constant 0 : i32
    %c0_i32_0 = arith.constant 0 : i32
    %c0_i32_1 = arith.constant 0 : i32
    return %c0_i32, %c0_i32_0 : i32, i32
  }
  func.func @transform_8(%arg0: i32) -> (i32, i32) {
    %c0_i32 = arith.constant 0 : i32
    %c0_i32_0 = arith.constant 0 : i32
    %c0_i32_1 = arith.constant 0 : i32
    return %c0_i32, %c0_i32_0 : i32, i32
  }
  func.func @transform_9(%arg0: i32) -> (i32, i32) {
    %c0_i32 = arith.constant 0 : i32
    %c0_i32_0 = arith.constant 0 : i32
    %c0_i32_1 = arith.constant 0 : i32
    return %c0_i32, %c0_i32_0 : i32, i32
  }
  func.func @transform_10(%arg0: i32) -> (i32, i32) {
    %c0_i32 = arith.constant 0 : i32
    %c0_i32_0 = arith.constant 0 : i32
    %c0_i32_1 = arith.constant 0 : i32
    return %c0_i32, %c0_i32_0 : i32, i32
  }
  func.func @transform_11(%arg0: i32) -> (i32, i32) {
    %c0_i32 = arith.constant 0 : i32
    %c0_i32_0 = arith.constant 0 : i32
    %c0_i32_1 = arith.constant 0 : i32
    return %c0_i32, %c0_i32_0 : i32, i32
  }
  func.func @transform_12(%arg0: i32) -> (i32, i32, i32) {
    %c0_i32 = arith.constant 0 : i32
    %c0_i32_0 = arith.constant 0 : i32
    %c0_i32_1 = arith.constant 0 : i32
    return %arg0, %c0_i32, %c0_i32_0 : i32, i32, i32
  }
}

</mosaic_0001>

<llo_original>
// kernel: tpu_custom_call.1
$region0: #{tpu_custom_call.1}
  #allocation0 [shape = 'u32[]', space=smem, size = 0x4, offset = 0x4, fixed_abs, tag = 'smem constant byte address 0x4 - core index']
  #allocation1 [shape = 'u32[144,128]{1,0:T(1,128)}', space=vmem, size = 0x12000, scoped, tag = 'internal scratch']
  #allocation2 [shape = 'f32[64,128]{1,0:T(8,128)}', space=vmem, size = 0x8000, scoped, tag = 'scratch operand']
  %s0 = inlined_call_operand.vmem [shape: f32[2,64,16], index: 0, kind: input, shape index: {}]
  %s1 = inlined_call_operand.vmem [shape: f32[2,16,1], index: 1, kind: input, shape index: {}]
  %s2 = inlined_call_operand.vmem [shape: f32[32,64], index: 2, kind: input, shape index: {}]
  %s3 = inlined_call_operand.vmem [shape: f32[64,32], index: 3, kind: input, shape index: {}]
  %s4 = inlined_call_operand.vmem [shape: f32[64,9], index: 4, kind: input, shape index: {}]
  %s5 = inlined_call_operand.vmem [shape: bf16[64,192], index: 5, kind: input, shape index: {}]
  %s6 = inlined_call_operand.vmem [shape: bf16[64,192], index: 6, kind: input, shape index: {}]
  %s7 = inlined_call_operand.vmem [shape: bf16[128,64], index: 7, kind: input, shape index: {}]
  %s8 = inlined_call_operand.vmem [shape: f32[128,1], index: 8, kind: input, shape index: {}]
  %s9 = inlined_call_operand.vmem [shape: bf16[64,64], index: 9, kind: input, shape index: {}]
  %s10 = inlined_call_operand.vmem [shape: f32[1,64], index: 10, kind: input, shape index: {}]
  %s11 = inlined_call_operand.vmem [shape: bf16[64,64], index: 11, kind: input, shape index: {}]
  %s12 = inlined_call_operand.vmem [shape: f32[2,64,16], index: 12, kind: output, shape index: {}]
  %s13 = sld [smem:[#allocation0]]
  $region81: #{tpu_custom_call.1} parent=0
    _
  %s15 = ssub.s32 1, %s13
  %s16 = scalar_select 0, %s15, %s13
  loop: start=0, step=1, limit=4
  $region2: #{tpu_custom_call.1} parent=0 // loop_pre_header
    _
  $region3: #{tpu_custom_call.1} parent=0 // loop_header
    %s18 = sphi 0, %s22
    %p19 = scmp.ge.s32.totalorder %s18, 4
    %s28 = sphi 0, %s30
    %s31 = sphi 0, %s28
    %s32 = sphi 0, %s31
    %s48 = sphi 0, %s32
    %s54 = sphi 0, %s56
    %s57 = sphi 0, %s54
    %s58 = sphi 0, %s57
    %s74 = sphi 0, %s58
    %s78 = sphi 0, %s78
    %s80 = sphi 0, %s78
    %s81 = sphi 0, %s80
    %s95 = sphi 0, %s81
    %s99 = sphi 0, %s99
    %s101 = sphi 0, %s99
    %s102 = sphi 0, %s101
    %s116 = sphi 0, %s102
    %s120 = sphi 0, %s120
    %s122 = sphi 0, %s120
    %s123 = sphi 0, %s122
    %s137 = sphi 0, %s123
    %s141 = sphi 0, %s141
    %s143 = sphi 0, %s141
    %s144 = sphi 0, %s143
    %s158 = sphi 0, %s144
    %s162 = sphi 0, %s162
    %s164 = sphi 0, %s162
    %s165 = sphi 0, %s164
    %s179 = sphi 0, %s165
    %s183 = sphi 0, %s183
    %s185 = sphi 0, %s183
    %s186 = sphi 0, %s185
    %s200 = sphi 0, %s186
    %s204 = sphi 0, %s204
    %s206 = sphi 0, %s204
    %s207 = sphi 0, %s206
    %s221 = sphi 0, %s207
    %s225 = sphi 0, %s225
    %s227 = sphi 0, %s225
    %s228 = sphi 0, %s227
    %s242 = sphi 0, %s228
    %s246 = sphi 0, %s246
    %s248 = sphi 0, %s246
    %s249 = sphi 0, %s248
    %s263 = sphi 0, %s249
    %s267 = sphi 0, %s267
    %s269 = sphi 0, %s267
    %s270 = sphi 0, %s269
    %s284 = sphi 0, %s270
    %s290 = sphi 0, %s292
    %s293 = sphi 0, %s290
    %s294 = sphi 0, %s293
    %s310 = sphi 0, %s294
  $region4: #{tpu_custom_call.1} parent=0 // loop_header_branch
    %21 = sbr.rel (%p19) target = $region8
  $region5: #{tpu_custom_call.1} parent=0 // loop_body
    %s23 = ssub.s32 %s18, 1
    %s24 = ssub.s32 %s18, 2
    %s25 = sadd.s32 %s18, 1
    %s26 = ssub.s32 %s18, %s25
    %p27 = scmp.eq.s32.totalorder %s26, 0
    %s29 = sadd.s32 %s28, 1
    %s30 = scalar_select %p27, %s28, %s29
    %p33 = pneg %p27
    %p34 = scmp.eq.s32.totalorder %s18, 1
    %p35 = por %p33, %p34
    %p36 = scmp.ne.s32.totalorder %s28, %s31
    %p37 = scmp.eq.s32.totalorder %s18, 0
    %p38 = por %p36, %p37
    %p39 = scmp.ne.s32.totalorder %s28, %s31
    %p40 = scmp.eq.s32.totalorder %s23, 1
    %p41 = por %p39, %p40
    %p42 = scmp.ne.s32.totalorder %s31, %s32
    %p43 = scmp.eq.s32.totalorder %s23, 0
    %p44 = por %p42, %p43
    %p45 = scmp.ne.s32.totalorder %s31, %s32
    %p46 = scmp.eq.s32.totalorder %s24, 1
    %p47 = por %p45, %p46
    %p49 = scmp.ne.s32.totalorder %s32, %s48
    %p50 = scmp.eq.s32.totalorder %s24, 0
    %p51 = por %p49, %p50
    %s52 = ssub.s32 %s18, %s25
    %p53 = scmp.eq.s32.totalorder %s52, 0
    %s55 = sadd.s32 %s54, 1
    %s56 = scalar_select %p53, %s54, %s55
    %p59 = pneg %p53
    %p60 = scmp.eq.s32.totalorder %s18, 1
    %p61 = por %p59, %p60
    %p62 = scmp.ne.s32.totalorder %s54, %s57
    %p63 = scmp.eq.s32.totalorder %s18, 0
    %p64 = por %p62, %p63
    %p65 = scmp.ne.s32.totalorder %s54, %s57
    %p66 = scmp.eq.s32.totalorder %s23, 1
    %p67 = por %p65, %p66
    %p68 = scmp.ne.s32.totalorder %s57, %s58
    %p69 = scmp.eq.s32.totalorder %s23, 0
    %p70 = por %p68, %p69
    %p71 = scmp.ne.s32.totalorder %s57, %s58
    %p72 = scmp.eq.s32.totalorder %s24, 1
    %p73 = por %p71, %p72
    %p75 = scmp.ne.s32.totalorder %s58, %s74
    %p76 = scmp.eq.s32.totalorder %s24, 0
    %p77 = por %p75, %p76
    %s79 = sadd.s32 %s78, 1
    %p82 = scmp.eq.s32.totalorder %s18, 1
    %p83 = scmp.ne.s32.totalorder %s78, %s80
    %p84 = scmp.eq.s32.totalorder %s18, 0
    %p85 = por %p83, %p84
    %p86 = scmp.ne.s32.totalorder %s78, %s80
    %p87 = scmp.eq.s32.totalorder %s23, 1
    %p88 = por %p86, %p87
    %p89 = scmp.ne.s32.totalorder %s80, %s81
    %p90 = scmp.eq.s32.totalorder %s23, 0
    %p91 = por %p89, %p90
    %p92 = scmp.ne.s32.totalorder %s80, %s81
    %p93 = scmp.eq.s32.totalorder %s24, 1
    %p94 = por %p92, %p93
    %p96 = scmp.ne.s32.totalorder %s81, %s95
    %p97 = scmp.eq.s32.totalorder %s24, 0
    %p98 = por %p96, %p97
    %s100 = sadd.s32 %s99, 1
    %p103 = scmp.eq.s32.totalorder %s18, 1
    %p104 = scmp.ne.s32.totalorder %s99, %s101
    %p105 = scmp.eq.s32.totalorder %s18, 0
    %p106 = por %p104, %p105
    %p107 = scmp.ne.s32.totalorder %s99, %s101
    %p108 = scmp.eq.s32.totalorder %s23, 1
    %p109 = por %p107, %p108
    %p110 = scmp.ne.s32.totalorder %s101, %s102
    %p111 = scmp.eq.s32.totalorder %s23, 0
    %p112 = por %p110, %p111
    %p113 = scmp.ne.s32.totalorder %s101, %s102
    %p114 = scmp.eq.s32.totalorder %s24, 1
    %p115 = por %p113, %p114
    %p117 = scmp.ne.s32.totalorder %s102, %s116
    %p118 = scmp.eq.s32.totalorder %s24, 0
    %p119 = por %p117, %p118
    %s121 = sadd.s32 %s120, 1
    %p124 = scmp.eq.s32.totalorder %s18, 1
    %p125 = scmp.ne.s32.totalorder %s120, %s122
    %p126 = scmp.eq.s32.totalorder %s18, 0
    %p127 = por %p125, %p126
    %p128 = scmp.ne.s32.totalorder %s120, %s122
    %p129 = scmp.eq.s32.totalorder %s23, 1
    %p130 = por %p128, %p129
    %p131 = scmp.ne.s32.totalorder %s122, %s123
    %p132 = scmp.eq.s32.totalorder %s23, 0
    %p133 = por %p131, %p132
    %p134 = scmp.ne.s32.totalorder %s122, %s123
    %p135 = scmp.eq.s32.totalorder %s24, 1
    %p136 = por %p134, %p135
    %p138 = scmp.ne.s32.totalorder %s123, %s137
    %p139 = scmp.eq.s32.totalorder %s24, 0
    %p140 = por %p138, %p139
    %s142 = sadd.s32 %s141, 1
    %p145 = scmp.eq.s32.totalorder %s18, 1
    %p146 = scmp.ne.s32.totalorder %s141, %s143
    %p147 = scmp.eq.s32.totalorder %s18, 0
    %p148 = por %p146, %p147
    %p149 = scmp.ne.s32.totalorder %s141, %s143
    %p150 = scmp.eq.s32.totalorder %s23, 1
    %p151 = por %p149, %p150
    %p152 = scmp.ne.s32.totalorder %s143, %s144
    %p153 = scmp.eq.s32.totalorder %s23, 0
    %p154 = por %p152, %p153
    %p155 = scmp.ne.s32.totalorder %s143, %s144
    %p156 = scmp.eq.s32.totalorder %s24, 1
    %p157 = por %p155, %p156
    %p159 = scmp.ne.s32.totalorder %s144, %s158
    %p160 = scmp.eq.s32.totalorder %s24, 0
    %p161 = por %p159, %p160
    %s163 = sadd.s32 %s162, 1
    %p166 = scmp.eq.s32.totalorder %s18, 1
    %p167 = scmp.ne.s32.totalorder %s162, %s164
    %p168 = scmp.eq.s32.totalorder %s18, 0
    %p169 = por %p167, %p168
    %p170 = scmp.ne.s32.totalorder %s162, %s164
    %p171 = scmp.eq.s32.totalorder %s23, 1
    %p172 = por %p170, %p171
    %p173 = scmp.ne.s32.totalorder %s164, %s165
    %p174 = scmp.eq.s32.totalorder %s23, 0
    %p175 = por %p173, %p174
    %p176 = scmp.ne.s32.totalorder %s164, %s165
    %p177 = scmp.eq.s32.totalorder %s24, 1
    %p178 = por %p176, %p177
    %p180 = scmp.ne.s32.totalorder %s165, %s179
    %p181 = scmp.eq.s32.totalorder %s24, 0
    %p182 = por %p180, %p181
    %s184 = sadd.s32 %s183, 1
    %p187 = scmp.eq.s32.totalorder %s18, 1
    %p188 = scmp.ne.s32.totalorder %s183, %s185
    %p189 = scmp.eq.s32.totalorder %s18, 0
    %p190 = por %p188, %p189
    %p191 = scmp.ne.s32.totalorder %s183, %s185
    %p192 = scmp.eq.s32.totalorder %s23, 1
    %p193 = por %p191, %p192
    %p194 = scmp.ne.s32.totalorder %s185, %s186
    %p195 = scmp.eq.s32.totalorder %s23, 0
    %p196 = por %p194, %p195
    %p197 = scmp.ne.s32.totalorder %s185, %s186
    %p198 = scmp.eq.s32.totalorder %s24, 1
    %p199 = por %p197, %p198
    %p201 = scmp.ne.s32.totalorder %s186, %s200
    %p202 = scmp.eq.s32.totalorder %s24, 0
    %p203 = por %p201, %p202
    %s205 = sadd.s32 %s204, 1
    %p208 = scmp.eq.s32.totalorder %s18, 1
    %p209 = scmp.ne.s32.totalorder %s204, %s206
    %p210 = scmp.eq.s32.totalorder %s18, 0
    %p211 = por %p209, %p210
    %p212 = scmp.ne.s32.totalorder %s204, %s206
    %p213 = scmp.eq.s32.totalorder %s23, 1
    %p214 = por %p212, %p213
    %p215 = scmp.ne.s32.totalorder %s206, %s207
    %p216 = scmp.eq.s32.totalorder %s23, 0
    %p217 = por %p215, %p216
    %p218 = scmp.ne.s32.totalorder %s206, %s207
    %p219 = scmp.eq.s32.totalorder %s24, 1
    %p220 = por %p218, %p219
    %p222 = scmp.ne.s32.totalorder %s207, %s221
    %p223 = scmp.eq.s32.totalorder %s24, 0
    %p224 = por %p222, %p223
    %s226 = sadd.s32 %s225, 1
    %p229 = scmp.eq.s32.totalorder %s18, 1
    %p230 = scmp.ne.s32.totalorder %s225, %s227
    %p231 = scmp.eq.s32.totalorder %s18, 0
    %p232 = por %p230, %p231
    %p233 = scmp.ne.s32.totalorder %s225, %s227
    %p234 = scmp.eq.s32.totalorder %s23, 1
    %p235 = por %p233, %p234
    %p236 = scmp.ne.s32.totalorder %s227, %s228
    %p237 = scmp.eq.s32.totalorder %s23, 0
    %p238 = por %p236, %p237
    %p239 = scmp.ne.s32.totalorder %s227, %s228
    %p240 = scmp.eq.s32.totalorder %s24, 1
    %p241 = por %p239, %p240
    %p243 = scmp.ne.s32.totalorder %s228, %s242
    %p244 = scmp.eq.s32.totalorder %s24, 0
    %p245 = por %p243, %p244
    %s247 = sadd.s32 %s246, 1
    %p250 = scmp.eq.s32.totalorder %s18, 1
    %p251 = scmp.ne.s32.totalorder %s246, %s248
    %p252 = scmp.eq.s32.totalorder %s18, 0
    %p253 = por %p251, %p252
    %p254 = scmp.ne.s32.totalorder %s246, %s248
    %p255 = scmp.eq.s32.totalorder %s23, 1
    %p256 = por %p254, %p255
    %p257 = scmp.ne.s32.totalorder %s248, %s249
    %p258 = scmp.eq.s32.totalorder %s23, 0
    %p259 = por %p257, %p258
    %p260 = scmp.ne.s32.totalorder %s248, %s249
    %p261 = scmp.eq.s32.totalorder %s24, 1
    %p262 = por %p260, %p261
    %p264 = scmp.ne.s32.totalorder %s249, %s263
    %p265 = scmp.eq.s32.totalorder %s24, 0
    %p266 = por %p264, %p265
    %s268 = sadd.s32 %s267, 1
    %p271 = scmp.eq.s32.totalorder %s18, 1
    %p272 = scmp.ne.s32.totalorder %s267, %s269
    %p273 = scmp.eq.s32.totalorder %s18, 0
    %p274 = por %p272, %p273
    %p275 = scmp.ne.s32.totalorder %s267, %s269
    %p276 = scmp.eq.s32.totalorder %s23, 1
    %p277 = por %p275, %p276
    %p278 = scmp.ne.s32.totalorder %s269, %s270
    %p279 = scmp.eq.s32.totalorder %s23, 0
    %p280 = por %p278, %p279
    %p281 = scmp.ne.s32.totalorder %s269, %s270
    %p282 = scmp.eq.s32.totalorder %s24, 1
    %p283 = por %p281, %p282
    %p285 = scmp.ne.s32.totalorder %s270, %s284
    %p286 = scmp.eq.s32.totalorder %s24, 0
    %p287 = por %p285, %p286
    %s288 = ssub.s32 %s18, %s25
    %p289 = scmp.eq.s32.totalorder %s288, 0
    %s291 = sadd.s32 %s290, 1
    %s292 = scalar_select %p289, %s290, %s291
    %p295 = pneg %p289
    %p296 = scmp.eq.s32.totalorder %s18, 1
    %p297 = por %p295, %p296
    %p298 = scmp.ne.s32.totalorder %s290, %s293
    %p299 = scmp.eq.s32.totalorder %s18, 0
    %p300 = por %p298, %p299
    %p301 = scmp.ne.s32.totalorder %s290, %s293
    %p302 = scmp.eq.s32.totalorder %s23, 1
    %p303 = por %p301, %p302
    %p304 = scmp.ne.s32.totalorder %s293, %s294
    %p305 = scmp.eq.s32.totalorder %s23, 0
    %p306 = por %p304, %p305
    %p307 = scmp.ne.s32.totalorder %s293, %s294
    %p308 = scmp.eq.s32.totalorder %s24, 1
    %p309 = por %p307, %p308
    %p311 = scmp.ne.s32.totalorder %s294, %s310
    %p312 = scmp.eq.s32.totalorder %s24, 0
    %p313 = por %p311, %p312
    %p314 = scmp.le.s32.totalorder 1, %s18
    %p315 = scmp.lt.s32.totalorder %s18, 3
    %p316 = pnand %p314, %p315
    %p317 = pneg %p316
    // Predicated region
    $region9: #{tpu_custom_call.1} parent=5 // pred_check
      _
    $region10: #{tpu_custom_call.1} parent=5 // pred_check_branch
      %319 = sbr.rel (%p316) target = $region12
    $region11: #{tpu_custom_call.1} parent=5 // pred_region
      %s320 = ssub.s32 %s18, 1
      // Predicated region
      $region13: #{tpu_custom_call.1} parent=11 // pred_check
        %p321 = pneg %p91
      $region14: #{tpu_custom_call.1} parent=11 // pred_check_branch
        %323 = sbr.rel (%p321) target = $region16
      $region15: #{tpu_custom_call.1} parent=11 // pred_region
        _
      $region16: #{tpu_custom_call.1} parent=11 // pred_fallthru
        _
      // Predicated region
      $region17: #{tpu_custom_call.1} parent=11 // pred_check
        %p324 = pneg %p112
      $region18: #{tpu_custom_call.1} parent=11 // pred_check_branch
        %326 = sbr.rel (%p324) target = $region20
      $region19: #{tpu_custom_call.1} parent=11 // pred_region
        _
      $region20: #{tpu_custom_call.1} parent=11 // pred_fallthru
        _
      // Predicated region
      $region21: #{tpu_custom_call.1} parent=11 // pred_check
        %p327 = pneg %p133
      $region22: #{tpu_custom_call.1} parent=11 // pred_check_branch
        %329 = sbr.rel (%p327) target = $region24
      $region23: #{tpu_custom_call.1} parent=11 // pred_region
        _
      $region24: #{tpu_custom_call.1} parent=11 // pred_fallthru
        _
      // Predicated region
      $region25: #{tpu_custom_call.1} parent=11 // pred_check
        %p330 = pneg %p154
      $region26: #{tpu_custom_call.1} parent=11 // pred_check_branch
        %332 = sbr.rel (%p330) target = $region28
      $region27: #{tpu_custom_call.1} parent=11 // pred_region
        _
      $region28: #{tpu_custom_call.1} parent=11 // pred_fallthru
        _
      // Predicated region
      $region29: #{tpu_custom_call.1} parent=11 // pred_check
        %p333 = pneg %p175
      $region30: #{tpu_custom_call.1} parent=11 // pred_check_branch
        %335 = sbr.rel (%p333) target = $region32
      $region31: #{tpu_custom_call.1} parent=11 // pred_region
        _
      $region32: #{tpu_custom_call.1} parent=11 // pred_fallthru
        _
      // Predicated region
      $region33: #{tpu_custom_call.1} parent=11 // pred_check
        %p336 = pneg %p196
      $region34: #{tpu_custom_call.1} parent=11 // pred_check_branch
        %338 = sbr.rel (%p336) target = $region36
      $region35: #{tpu_custom_call.1} parent=11 // pred_region
        _
      $region36: #{tpu_custom_call.1} parent=11 // pred_fallthru
        _
      // Predicated region
      $region37: #{tpu_custom_call.1} parent=11 // pred_check
        %p339 = pneg %p217
      $region38: #{tpu_custom_call.1} parent=11 // pred_check_branch
        %341 = sbr.rel (%p339) target = $region40
      $region39: #{tpu_custom_call.1} parent=11 // pred_region
        _
      $region40: #{tpu_custom_call.1} parent=11 // pred_fallthru
        _
      // Predicated region
      $region41: #{tpu_custom_call.1} parent=11 // pred_check
        %p342 = pneg %p238
      $region42: #{tpu_custom_call.1} parent=11 // pred_check_branch
        %344 = sbr.rel (%p342) target = $region44
      $region43: #{tpu_custom_call.1} parent=11 // pred_region
        _
      $region44: #{tpu_custom_call.1} parent=11 // pred_fallthru
        _
      // Predicated region
      $region45: #{tpu_custom_call.1} parent=11 // pred_check
        %p345 = pneg %p259
      $region46: #{tpu_custom_call.1} parent=11 // pred_check_branch
        %347 = sbr.rel (%p345) target = $region48
      $region47: #{tpu_custom_call.1} parent=11 // pred_region
        _
      $region48: #{tpu_custom_call.1} parent=11 // pred_fallthru
        _
      // Predicated region
      $region49: #{tpu_custom_call.1} parent=11 // pred_check
        %p348 = pneg %p280
      $region50: #{tpu_custom_call.1} parent=11 // pred_check_branch
        %350 = sbr.rel (%p348) target = $region52
      $region51: #{tpu_custom_call.1} parent=11 // pred_region
        _
      $region52: #{tpu_custom_call.1} parent=11 // pred_fallthru
        _
    $region12: #{tpu_custom_call.1} parent=5 // pred_fallthru
      _
    %p351 = scmp.lt.s32.totalorder %s18, 2
    // Predicated region
    $region53: #{tpu_custom_call.1} parent=5 // pred_check
      %p352 = pneg %p351
    $region54: #{tpu_custom_call.1} parent=5 // pred_check_branch
      %354 = sbr.rel (%p352) target = $region56
    $region55: #{tpu_custom_call.1} parent=5 // pred_region
      // Predicated region
      $region57: #{tpu_custom_call.1} parent=55 // pred_check
        %p355 = pneg %p38
      $region58: #{tpu_custom_call.1} parent=55 // pred_check_branch
        %357 = sbr.rel (%p355) target = $region60
      $region59: #{tpu_custom_call.1} parent=55 // pred_region
        %p358 = scmp.lt.s32.totalorder %s18, 1
        %s359 = scalar_select %p358, %s18, 1
        %s360 = smul.addr %s359, 8
        %s361 = smul.addr %s360, 8
        %s362 = scalar_lea.vmem %s0, %s361
      $region60: #{tpu_custom_call.1} parent=55 // pred_fallthru
        _
      // Predicated region
      $region61: #{tpu_custom_call.1} parent=55 // pred_check
        %p363 = pneg %p64
      $region62: #{tpu_custom_call.1} parent=55 // pred_check_branch
        %365 = sbr.rel (%p363) target = $region64
      $region63: #{tpu_custom_call.1} parent=55 // pred_region
        %p366 = scmp.lt.s32.totalorder %s18, 1
        %s367 = scalar_select %p366, %s18, 1
        %s368 = smul.addr %s367, 2
        %s369 = smul.addr %s368, 8
        %s370 = scalar_lea.vmem %s1, %s369
      $region64: #{tpu_custom_call.1} parent=55 // pred_fallthru
        _
    $region56: #{tpu_custom_call.1} parent=5 // pred_fallthru
      _
    %p371 = scmp.le.s32.totalorder 1, %s18
    %p372 = scmp.lt.s32.totalorder %s18, 3
    %p373 = pnand %p371, %p372
    %p374 = pneg %p373
    // Predicated region
    $region65: #{tpu_custom_call.1} parent=5 // pred_check
      _
    $region66: #{tpu_custom_call.1} parent=5 // pred_check_branch
      %376 = sbr.rel (%p373) target = $region68
    $region67: #{tpu_custom_call.1} parent=5 // pred_region
      %s377 = ssub.s32 %s18, 1
      %p378 = scmp.lt.s32.totalorder %s23, 1
      %s379 = scalar_select %p378, %s23, 1
      %s380 = smul.addr %s379, 8
      %s381 = smul.addr %s380, 8
      %s382 = scalar_lea.vmem %s0, %s381
      %p383 = pneg %p44
      %p384 = pneg %p41
      %p385 = scmp.lt.s32.totalorder %s23, 1
      %s386 = scalar_select %p385, %s23, 1
      %s387 = smul.addr %s386, 2
      %s388 = smul.addr %s387, 8
      %s389 = scalar_lea.vmem %s1, %s388
      %p390 = pneg %p70
      %p391 = pneg %p67
      %p392 = pneg %p91
      %p393 = pneg %p88
      %p394 = pneg %p112
      %p395 = pneg %p109
      %p396 = pneg %p133
      %p397 = pneg %p130
      %p398 = pneg %p154
      %p399 = pneg %p151
      %p400 = pneg %p175
      %p401 = pneg %p172
      %p402 = pneg %p196
      %p403 = pneg %p193
      %p404 = pneg %p217
      %p405 = pneg %p214
      %p406 = pneg %p238
      %p407 = pneg %p235
      %p408 = pneg %p259
      %p409 = pneg %p256
      %p410 = pneg %p280
      %p411 = pneg %p277
      %p412 = pneg %p306
      %p413 = pneg %p303
      %p414 = scmp.lt.s32.totalorder %s23, 1
      %s415 = scalar_select %p414, %s23, 1
      %s416 = smul.addr %s415, 8
      %s417 = smul.addr %s416, 8
      %s418 = scalar_lea.vmem %s12, %s417
      %p419 = scmp.lt.s32.totalorder %s23, 1
      %s420 = scalar_select %p419, %s23, 1
      %s421 = smul.addr %s420, 8
      %s422 = smul.addr %s421, 8
      %s423 = scalar_lea.vmem %s0, %s422
      %p424 = scmp.lt.s32.totalorder %s23, 1
      %s425 = scalar_select %p424, %s23, 1
      %s426 = smul.addr %s425, 2
      %s427 = smul.addr %s426, 8
      %s428 = scalar_lea.vmem %s1, %s427
      %p429 = scmp.lt.s32.totalorder %s23, 1
      %s430 = scalar_select %p429, %s23, 1
      %s431 = smul.addr %s430, 8
      %s432 = smul.addr %s431, 8
      %s433 = scalar_lea.vmem %s12, %s432
      %435 = vst [vmem:[#allocation2] sm:$0xff] 0.0
      %436 = vst [vmem:[#allocation2 + $0x8] sm:$0xff] 0.0
      %437 = vst [vmem:[#allocation2 + $0x10] sm:$0xff] 0.0
      %438 = vst [vmem:[#allocation2 + $0x18] sm:$0xff] 0.0
      %439 = vst [vmem:[#allocation2 + $0x20] sm:$0xff] 0.0
      %440 = vst [vmem:[#allocation2 + $0x28] sm:$0xff] 0.0
      %441 = vst [vmem:[#allocation2 + $0x30] sm:$0xff] 0.0
      %442 = vst [vmem:[#allocation2 + $0x38] sm:$0xff] 0.0
      %v443 = vld [vmem:[%s423] sm:$0xff]
      %v444 = vld [vmem:[%s423 + $0x8] sm:$0xff]
      %v445 = vld [vmem:[%s423 + $0x10] sm:$0xff]
      %v446 = vld [vmem:[%s423 + $0x18] sm:$0xff]
      %v447 = vld [vmem:[%s423 + $0x20] sm:$0xff]
      %v448 = vld [vmem:[%s423 + $0x28] sm:$0xff]
      %v449 = vld [vmem:[%s423 + $0x30] sm:$0xff]
      %v450 = vld [vmem:[%s423 + $0x38] sm:$0xff]
      %vm451 = vcmask 130048
      %452 = vst.msk [vmem:[#allocation2] sm:$0xff] %vm451, %v443
      %453 = vst.msk [vmem:[#allocation2 + $0x8] sm:$0xff] %vm451, %v444
      %454 = vst.msk [vmem:[#allocation2 + $0x10] sm:$0xff] %vm451, %v445
      %455 = vst.msk [vmem:[#allocation2 + $0x18] sm:$0xff] %vm451, %v446
      %456 = vst.msk [vmem:[#allocation2 + $0x20] sm:$0xff] %vm451, %v447
      %457 = vst.msk [vmem:[#allocation2 + $0x28] sm:$0xff] %vm451, %v448
      %458 = vst.msk [vmem:[#allocation2 + $0x30] sm:$0xff] %vm451, %v449
      %459 = vst.msk [vmem:[#allocation2 + $0x38] sm:$0xff] %vm451, %v450
      %v460 = vld [vmem:[#allocation2] sm:$0xff]
      %v461 = vld [vmem:[#allocation2 + $0x8] sm:$0xff]
      %v462 = vld [vmem:[#allocation2 + $0x10] sm:$0xff]
      %v463 = vld [vmem:[#allocation2 + $0x18] sm:$0xff]
      %v464 = vld [vmem:[#allocation2 + $0x20] sm:$0xff]
      %v465 = vld [vmem:[#allocation2 + $0x28] sm:$0xff]
      %v466 = vld [vmem:[#allocation2 + $0x30] sm:$0xff]
      %v467 = vld [vmem:[#allocation2 + $0x38] sm:$0xff]
      %v468 = vld [vmem:[%s2] sm:$0xff]
      %v469 = vld [vmem:[%s2 + $0x8] sm:$0xff]
      %v470 = vld [vmem:[%s2 + $0x10] sm:$0xff]
      %v471 = vld [vmem:[%s2 + $0x18] sm:$0xff]
      %v472 = vld [vmem:[%s3] sm:$0xff]
      %v473 = vld [vmem:[%s3 + $0x8] sm:$0xff]
      %v474 = vld [vmem:[%s3 + $0x10] sm:$0xff]
      %v475 = vld [vmem:[%s3 + $0x18] sm:$0xff]
      %v476 = vld [vmem:[%s3 + $0x20] sm:$0xff]
      %v477 = vld [vmem:[%s3 + $0x28] sm:$0xff]
      %v478 = vld [vmem:[%s3 + $0x30] sm:$0xff]
      %v479 = vld [vmem:[%s3 + $0x38] sm:$0xff]
      %v480 = vld [vmem:[%s4] sm:$0xff]
      %v481 = vld [vmem:[%s4 + $0x8] sm:$0xff]
      %v482 = vld [vmem:[%s4 + $0x10] sm:$0xff]
      %v483 = vld [vmem:[%s4 + $0x18] sm:$0xff]
      %v484 = vld [vmem:[%s4 + $0x20] sm:$0xff]
      %v485 = vld [vmem:[%s4 + $0x28] sm:$0xff]
      %v486 = vld [vmem:[%s4 + $0x30] sm:$0xff]
      %v487 = vld [vmem:[%s4 + $0x38] sm:$0xff]
      %v488 = vlaneseq
      %v489 = vand.u32 %v488, 127
      %vm490 = vcmp.lt.s32.totalorder %v489, 16
      %v491 = vsel %vm490, 1, 0
      %v492 = vcvt.s32.f32 %v491
      %493 = vadd.xlane.f32.xlu0 %v460
      %v494 = vpop.xlane.xlu0 %493
      %495 = vadd.xlane.f32.xlu0 %v461
      %v496 = vpop.xlane.xlu0 %495
      %497 = vadd.xlane.f32.xlu0 %v462
      %v498 = vpop.xlane.xlu0 %497
      %499 = vadd.xlane.f32.xlu0 %v463
      %v500 = vpop.xlane.xlu0 %499
      %501 = vadd.xlane.f32.xlu0 %v464
      %v502 = vpop.xlane.xlu0 %501
      %503 = vadd.xlane.f32.xlu0 %v465
      %v504 = vpop.xlane.xlu0 %503
      %505 = vadd.xlane.f32.xlu0 %v466
      %v506 = vpop.xlane.xlu0 %505
      %507 = vadd.xlane.f32.xlu0 %v467
      %v508 = vpop.xlane.xlu0 %507
      %v509 = vmul.f32 %v460, %v460
      %v510 = vmul.f32 %v461, %v461
      %v511 = vmul.f32 %v462, %v462
      %v512 = vmul.f32 %v463, %v463
      %v513 = vmul.f32 %v464, %v464
      %v514 = vmul.f32 %v465, %v465
      %v515 = vmul.f32 %v466, %v466
      %v516 = vmul.f32 %v467, %v467
      %517 = vadd.xlane.f32.xlu0 %v509
      %v518 = vpop.xlane.xlu0 %517
      %519 = vadd.xlane.f32.xlu0 %v510
      %v520 = vpop.xlane.xlu0 %519
      %521 = vadd.xlane.f32.xlu0 %v511
      %v522 = vpop.xlane.xlu0 %521
      %523 = vadd.xlane.f32.xlu0 %v512
      %v524 = vpop.xlane.xlu0 %523
      %525 = vadd.xlane.f32.xlu0 %v513
      %v526 = vpop.xlane.xlu0 %525
      %527 = vadd.xlane.f32.xlu0 %v514
      %v528 = vpop.xlane.xlu0 %527
      %529 = vadd.xlane.f32.xlu0 %v515
      %v530 = vpop.xlane.xlu0 %529
      %531 = vadd.xlane.f32.xlu0 %v516
      %v532 = vpop.xlane.xlu0 %531
      %vm533 = vcmask 7168
      %v534 = vsel %vm533, %v494, %v518
      %v535 = vsel %vm533, %v496, %v520
      %v536 = vsel %vm533, %v498, %v522
      %v537 = vsel %vm533, %v500, %v524
      %v538 = vsel %vm533, %v502, %v526
      %v539 = vsel %vm533, %v504, %v528
      %v540 = vsel %vm533, %v506, %v530
      %v541 = vsel %vm533, %v508, %v532
      %vm542 = vcmask 523264
      %v544 = vsel %vm542, %v468, 0
      %v547 = vsel %vm542, %v469, 0
      %v550 = vsel %vm542, %v470, 0
      %v553 = vsel %vm542, %v471, 0
      %555 = vmatprep.subr.mxu0 0.0
      %556 = vmatpush1.msra.mxu0 0.0
      %557 = vmatprep.subr.mxu0 0.0
      %558 = vmatpush1.msra.mxu0 0.0
      %559 = vmatprep.subr.mxu0 0.0
      %560 = vmatpush1.msra.mxu0 0.0
      %561 = vmatprep.subr.mxu0 0.0
      %562 = vmatpush1.msra.mxu0 0.0
      %563 = vmatprep.subr.mxu0 0.0
      %564 = vmatpush1.msra.mxu0 0.0
      %565 = vmatprep.subr.mxu0 0.0
      %566 = vmatpush1.msra.mxu0 0.0
      %567 = vmatprep.subr.mxu0 0.0
      %568 = vmatpush1.msra.mxu0 0.0
      %569 = vmatprep.subr.mxu0 0.0
      %570 = vmatpush1.msra.mxu0 0.0
      %571 = vmatprep.subr.mxu0 0.0
      %572 = vmatpush1.msra.mxu0 %v541
      %573 = vmatprep.subr.mxu0 0.0
      %574 = vmatpush1.msra.mxu0 %v540
      %575 = vmatprep.subr.mxu0 0.0
      %576 = vmatpush1.msra.mxu0 %v539
      %577 = vmatprep.subr.mxu0 0.0
      %578 = vmatpush1.msra.mxu0 %v538
      %579 = vmatprep.subr.mxu0 0.0
      %580 = vmatpush1.msra.mxu0 %v537
      %581 = vmatprep.subr.mxu0 0.0
      %582 = vmatpush1.msra.mxu0 %v536
      %583 = vmatprep.subr.mxu0 0.0
      %584 = vmatpush1.msra.mxu0 %v535
      %585 = vmatprep.subr.mxu0 0.0
      %586 = vmatpush1.msra.mxu0 %v534
      %587 = vmatprep.subr.mxu0 0.0
      %588 = vmatpush2.msra.mxu0 0.0
      %589 = vmatprep.subr.mxu0 0.0
      %590 = vmatpush2.msra.mxu0 0.0
      %591 = vmatprep.subr.mxu0 0.0
      %592 = vmatpush2.msra.mxu0 0.0
      %593 = vmatprep.subr.mxu0 0.0
      %594 = vmatpush2.msra.mxu0 0.0
      %595 = vmatprep.subr.mxu0 0.0
      %596 = vmatpush2.msra.mxu0 0.0
      %597 = vmatprep.subr.mxu0 0.0
      %598 = vmatpush2.msra.mxu0 0.0
      %599 = vmatprep.subr.mxu0 0.0
      %600 = vmatpush2.msra.mxu0 0.0
      %601 = vmatprep.subr.mxu0 0.0
      %602 = vmatpush2.msra.mxu0 0.0
      %603 = vmatprep.subr.mxu0 0.0
      %604 = vmatpush2.msra.mxu0 0.0
      %605 = vmatprep.subr.mxu0 0.0
      %606 = vmatpush2.msra.mxu0 0.0
      %607 = vmatprep.subr.mxu0 0.0
      %608 = vmatpush2.msra.mxu0 0.0
      %609 = vmatprep.subr.mxu0 0.0
      %610 = vmatpush2.msra.mxu0 0.0
      %611 = vmatprep.subr.mxu0 0.0
      %612 = vmatpush2.msra.mxu0 0.0
      %613 = vmatprep.subr.mxu0 0.0
      %614 = vmatpush2.msra.mxu0 0.0
      %615 = vmatprep.subr.mxu0 0.0
      %616 = vmatpush2.msra.mxu0 0.0
      %617 = vmatprep.subr.mxu0 0.0
      %618 = vmatpush2.msra.mxu0 0.0
      %619 = vmatprep.mubr.f32.mxu0 0.0
      %620 = vmatmul.mubr.f32.gmra.mxu0 %v544
      %v621 = vpop.f32.mrf.mxu0
      %v622 = vadd.f32 0.0, %v621
      %v623 = vpop.f32.mrf.mxu0
      %624 = vmatprep.mubr.f32.mxu0 0.0
      %625 = vmatmul.mubr.f32.gmra.mxu0 %v547
      %v626 = vpop.f32.mrf.mxu0
      %v627 = vadd.f32 0.0, %v626
      %v628 = vpop.f32.mrf.mxu0
      %629 = vmatprep.mubr.f32.mxu0 0.0
      %630 = vmatmul.mubr.f32.gmra.mxu0 %v550
      %v631 = vpop.f32.mrf.mxu0
      %v632 = vadd.f32 0.0, %v631
      %v633 = vpop.f32.mrf.mxu0
      %634 = vmatprep.mubr.f32.mxu0 0.0
      %635 = vmatmul.mubr.f32.gmra.mxu0 %v553
      %v636 = vpop.f32.mrf.mxu0
      %v637 = vadd.f32 0.0, %v636
      %v638 = vpop.f32.mrf.mxu0
      %639 = vdwg.mxu0
      %vm640 = vcmask 261120
      %v642 = vsel %vm640, %v472, 0
      %v645 = vsel %vm640, %v473, 0
      %v648 = vsel %vm640, %v474, 0
      %v651 = vsel %vm640, %v475, 0
      %v654 = vsel %vm640, %v476, 0
      %v657 = vsel %vm640, %v477, 0
      %v660 = vsel %vm640, %v478, 0
      %v663 = vsel %vm640, %v479, 0
      %665 = vmatprep.subr.mxu0 0.0
      %666 = vmatpush1.msra.mxu0 0.0
      %667 = vmatprep.subr.mxu0 0.0
      %668 = vmatpush1.msra.mxu0 0.0
      %669 = vmatprep.subr.mxu0 0.0
      %670 = vmatpush1.msra.mxu0 0.0
      %671 = vmatprep.subr.mxu0 0.0
      %672 = vmatpush1.msra.mxu0 0.0
      %673 = vmatprep.subr.mxu0 0.0
      %674 = vmatpush1.msra.mxu0 0.0
      %675 = vmatprep.subr.mxu0 0.0
      %676 = vmatpush1.msra.mxu0 0.0
      %677 = vmatprep.subr.mxu0 0.0
      %678 = vmatpush1.msra.mxu0 0.0
      %679 = vmatprep.subr.mxu0 0.0
      %680 = vmatpush1.msra.mxu0 0.0
      %681 = vmatprep.subr.mxu0 0.0
      %682 = vmatpush1.msra.mxu0 0.0
      %683 = vmatprep.subr.mxu0 0.0
      %684 = vmatpush1.msra.mxu0 0.0
      %685 = vmatprep.subr.mxu0 0.0
      %686 = vmatpush1.msra.mxu0 0.0
      %687 = vmatprep.subr.mxu0 0.0
      %688 = vmatpush1.msra.mxu0 0.0
      %689 = vmatprep.subr.mxu0 0.0
      %690 = vmatpush1.msra.mxu0 %v637
      %691 = vmatprep.subr.mxu0 0.0
      %692 = vmatpush1.msra.mxu0 %v632
      %693 = vmatprep.subr.mxu0 0.0
      %694 = vmatpush1.msra.mxu0 %v627
      %695 = vmatprep.subr.mxu0 0.0
      %696 = vmatpush1.msra.mxu0 %v622
      %697 = vmatprep.subr.mxu0 0.0
      %698 = vmatpush2.msra.mxu0 0.0
      %699 = vmatprep.subr.mxu0 0.0
      %700 = vmatpush2.msra.mxu0 0.0
      %701 = vmatprep.subr.mxu0 0.0
      %702 = vmatpush2.msra.mxu0 0.0
      %703 = vmatprep.subr.mxu0 0.0
      %704 = vmatpush2.msra.mxu0 0.0
      %705 = vmatprep.subr.mxu0 0.0
      %706 = vmatpush2.msra.mxu0 0.0
      %707 = vmatprep.subr.mxu0 0.0
      %708 = vmatpush2.msra.mxu0 0.0
      %709 = vmatprep.subr.mxu0 0.0
      %710 = vmatpush2.msra.mxu0 0.0
      %711 = vmatprep.subr.mxu0 0.0
      %712 = vmatpush2.msra.mxu0 0.0
      %713 = vmatprep.subr.mxu0 0.0
      %714 = vmatpush2.msra.mxu0 0.0
      %715 = vmatprep.subr.mxu0 0.0
      %716 = vmatpush2.msra.mxu0 0.0
      %717 = vmatprep.subr.mxu0 0.0
      %718 = vmatpush2.msra.mxu0 0.0
      %719 = vmatprep.subr.mxu0 0.0
      %720 = vmatpush2.msra.mxu0 0.0
      %721 = vmatprep.subr.mxu0 0.0
      %722 = vmatpush2.msra.mxu0 0.0
      %723 = vmatprep.subr.mxu0 0.0
      %724 = vmatpush2.msra.mxu0 0.0
      %725 = vmatprep.subr.mxu0 0.0
      %726 = vmatpush2.msra.mxu0 0.0
      %727 = vmatprep.subr.mxu0 0.0
      %728 = vmatpush2.msra.mxu0 0.0
      %729 = vmatprep.mubr.f32.mxu0 0.0
      %730 = vmatmul.mubr.f32.gmra.mxu0 %v642
      %v731 = vpop.f32.mrf.mxu0
      %v732 = vadd.f32 0.0, %v731
      %v733 = vpop.f32.mrf.mxu0
      %734 = vmatprep.mubr.f32.mxu0 0.0
      %735 = vmatmul.mubr.f32.gmra.mxu0 %v645
      %v736 = vpop.f32.mrf.mxu0
      %v737 = vadd.f32 0.0, %v736
      %v738 = vpop.f32.mrf.mxu0
      %739 = vmatprep.mubr.f32.mxu0 0.0
      %740 = vmatmul.mubr.f32.gmra.mxu0 %v648
      %v741 = vpop.f32.mrf.mxu0
      %v742 = vadd.f32 0.0, %v741
      %v743 = vpop.f32.mrf.mxu0
      %744 = vmatprep.mubr.f32.mxu0 0.0
      %745 = vmatmul.mubr.f32.gmra.mxu0 %v651
      %v746 = vpop.f32.mrf.mxu0
      %v747 = vadd.f32 0.0, %v746
      %v748 = vpop.f32.mrf.mxu0
      %749 = vmatprep.mubr.f32.mxu0 0.0
      %750 = vmatmul.mubr.f32.gmra.mxu0 %v654
      %v751 = vpop.f32.mrf.mxu0
      %v752 = vadd.f32 0.0, %v751
      %v753 = vpop.f32.mrf.mxu0
      %754 = vmatprep.mubr.f32.mxu0 0.0
      %755 = vmatmul.mubr.f32.gmra.mxu0 %v657
      %v756 = vpop.f32.mrf.mxu0
      %v757 = vadd.f32 0.0, %v756
      %v758 = vpop.f32.mrf.mxu0
      %759 = vmatprep.mubr.f32.mxu0 0.0
      %760 = vmatmul.mubr.f32.gmra.mxu0 %v660
      %v761 = vpop.f32.mrf.mxu0
      %v762 = vadd.f32 0.0, %v761
      %v763 = vpop.f32.mrf.mxu0
      %764 = vmatprep.mubr.f32.mxu0 0.0
      %765 = vmatmul.mubr.f32.gmra.mxu0 %v663
      %v766 = vpop.f32.mrf.mxu0
      %v767 = vadd.f32 0.0, %v766
      %v768 = vpop.f32.mrf.mxu0
      %769 = vdwg.mxu0
      %v770 = vmul.f32 %v732, 0.03125
      %v771 = vmul.f32 %v737, 0.03125
      %v772 = vmul.f32 %v742, 0.03125
      %v773 = vmul.f32 %v747, 0.03125
      %v774 = vmul.f32 %v752, 0.03125
      %v775 = vmul.f32 %v757, 0.03125
      %v776 = vmul.f32 %v762, 0.03125
      %v777 = vmul.f32 %v767, 0.03125
      %v778 = vmul.f32 %v770, %v770
      %v779 = vmul.f32 %v771, %v771
      %v780 = vmul.f32 %v772, %v772
      %v781 = vmul.f32 %v773, %v773
      %v782 = vmul.f32 %v774, %v774
      %v783 = vmul.f32 %v775, %v775
      %v784 = vmul.f32 %v776, %v776
      %v785 = vmul.f32 %v777, %v777
      %794 = vrot.lane.b32.xlu0 %v778, 1
      %v795 = vpop.permute.xlu0 %794
      %796 = vrot.lane.b32.xlu0 %v779, 1
      %v797 = vpop.permute.xlu0 %796
      %798 = vrot.lane.b32.xlu0 %v780, 1
      %v799 = vpop.permute.xlu0 %798
      %800 = vrot.lane.b32.xlu0 %v781, 1
      %v801 = vpop.permute.xlu0 %800
      %802 = vrot.lane.b32.xlu0 %v782, 1
      %v803 = vpop.permute.xlu0 %802
      %804 = vrot.lane.b32.xlu0 %v783, 1
      %v805 = vpop.permute.xlu0 %804
      %806 = vrot.lane.b32.xlu0 %v784, 1
      %v807 = vpop.permute.xlu0 %806
      %808 = vrot.lane.b32.xlu0 %v785, 1
      %v809 = vpop.permute.xlu0 %808
      %v818 = vsub.f32 %v770, %v795
      %v819 = vsub.f32 %v771, %v797
      %v820 = vsub.f32 %v772, %v799
      %v821 = vsub.f32 %v773, %v801
      %v822 = vsub.f32 %v774, %v803
      %v823 = vsub.f32 %v775, %v805
      %v824 = vsub.f32 %v776, %v807
      %v825 = vsub.f32 %v777, %v809
      %v826 = vmax.f32 %v818, 0.0
      %v827 = vmax.f32 %v819, 0.0
      %v828 = vmax.f32 %v820, 0.0
      %v829 = vmax.f32 %v821, 0.0
      %v830 = vmax.f32 %v822, 0.0
      %v831 = vmax.f32 %v823, 0.0
      %v832 = vmax.f32 %v824, 0.0
      %v833 = vmax.f32 %v825, 0.0
      %v834 = vadd.f32 %v826, 1e-06
      %v835 = vadd.f32 %v827, 1e-06
      %v836 = vadd.f32 %v828, 1e-06
      %v837 = vadd.f32 %v829, 1e-06
      %v838 = vadd.f32 %v830, 1e-06
      %v839 = vadd.f32 %v831, 1e-06
      %v840 = vadd.f32 %v832, 1e-06
      %v841 = vadd.f32 %v833, 1e-06
      %v842 = vrsqrt.pop %v834
      %v843 = vrsqrt.pop %v835
      %v844 = vrsqrt.pop %v836
      %v845 = vrsqrt.pop %v837
      %v846 = vrsqrt.pop %v838
      %v847 = vrsqrt.pop %v839
      %v848 = vrsqrt.pop %v840
      %v849 = vrsqrt.pop %v841
      %858 = vrot.lane.b32.xlu0 %v480, 1
      %v859 = vpop.permute.xlu0 %858
      %860 = vrot.lane.b32.xlu0 %v481, 1
      %v861 = vpop.permute.xlu0 %860
      %862 = vrot.lane.b32.xlu0 %v482, 1
      %v863 = vpop.permute.xlu0 %862
      %864 = vrot.lane.b32.xlu0 %v483, 1
      %v865 = vpop.permute.xlu0 %864
      %866 = vrot.lane.b32.xlu0 %v484, 1
      %v867 = vpop.permute.xlu0 %866
      %868 = vrot.lane.b32.xlu0 %v485, 1
      %v869 = vpop.permute.xlu0 %868
      %870 = vrot.lane.b32.xlu0 %v486, 1
      %v871 = vpop.permute.xlu0 %870
      %872 = vrot.lane.b32.xlu0 %v487, 1
      %v873 = vpop.permute.xlu0 %872
      %v882 = vmul.f32 %v842, %v859
      %v883 = vmul.f32 %v843, %v861
      %v884 = vmul.f32 %v844, %v863
      %v885 = vmul.f32 %v845, %v865
      %v886 = vmul.f32 %v846, %v867
      %v887 = vmul.f32 %v847, %v869
      %v888 = vmul.f32 %v848, %v871
      %v889 = vmul.f32 %v849, %v873
      %898 = vrot.lane.b32.xlu0 %v882, 127
      %v899 = vpop.permute.xlu0 %898
      %900 = vrot.lane.b32.xlu0 %v883, 127
      %v901 = vpop.permute.xlu0 %900
      %902 = vrot.lane.b32.xlu0 %v884, 127
      %v903 = vpop.permute.xlu0 %902
      %904 = vrot.lane.b32.xlu0 %v885, 127
      %v905 = vpop.permute.xlu0 %904
      %906 = vrot.lane.b32.xlu0 %v886, 127
      %v907 = vpop.permute.xlu0 %906
      %908 = vrot.lane.b32.xlu0 %v887, 127
      %v909 = vpop.permute.xlu0 %908
      %910 = vrot.lane.b32.xlu0 %v888, 127
      %v911 = vpop.permute.xlu0 %910
      %912 = vrot.lane.b32.xlu0 %v889, 127
      %v913 = vpop.permute.xlu0 %912
      %v922 = vmul.f32 %v770, %v899
      %v923 = vmul.f32 %v771, %v901
      %v924 = vmul.f32 %v772, %v903
      %v925 = vmul.f32 %v773, %v905
      %v926 = vmul.f32 %v774, %v907
      %v927 = vmul.f32 %v775, %v909
      %v928 = vmul.f32 %v776, %v911
      %v929 = vmul.f32 %v777, %v913
      %938 = vrot.lane.b32.xlu0 %v922, 1
      %v939 = vpop.permute.xlu0 %938
      %940 = vrot.lane.b32.xlu0 %v923, 1
      %v941 = vpop.permute.xlu0 %940
      %942 = vrot.lane.b32.xlu0 %v924, 1
      %v943 = vpop.permute.xlu0 %942
      %944 = vrot.lane.b32.xlu0 %v925, 1
      %v945 = vpop.permute.xlu0 %944
      %946 = vrot.lane.b32.xlu0 %v926, 1
      %v947 = vpop.permute.xlu0 %946
      %948 = vrot.lane.b32.xlu0 %v927, 1
      %v949 = vpop.permute.xlu0 %948
      %950 = vrot.lane.b32.xlu0 %v928, 1
      %v951 = vpop.permute.xlu0 %950
      %952 = vrot.lane.b32.xlu0 %v929, 1
      %v953 = vpop.permute.xlu0 %952
      %v962 = vsub.f32 %v480, %v939
      %v963 = vsub.f32 %v481, %v941
      %v964 = vsub.f32 %v482, %v943
      %v965 = vsub.f32 %v483, %v945
      %v966 = vsub.f32 %v484, %v947
      %v967 = vsub.f32 %v485, %v949
      %v968 = vsub.f32 %v486, %v951
      %v969 = vsub.f32 %v487, %v953
      %970 = vset.pattern.permute.xlu0 1
      %971 = vperm.xlu0 %970, %v882
      %v972 = vpop.permute.xlu0 %971
      %974 = vset.pattern.permute.xlu0 1
      %975 = vperm.xlu0 %974, %v883
      %v976 = vpop.permute.xlu0 %975
      %978 = vset.pattern.permute.xlu0 1
      %979 = vperm.xlu0 %978, %v884
      %v980 = vpop.permute.xlu0 %979
      %982 = vset.pattern.permute.xlu0 1
      %983 = vperm.xlu0 %982, %v885
      %v984 = vpop.permute.xlu0 %983
      %986 = vset.pattern.permute.xlu0 1
      %987 = vperm.xlu0 %986, %v886
      %v988 = vpop.permute.xlu0 %987
      %990 = vset.pattern.permute.xlu0 1
      %991 = vperm.xlu0 %990, %v887
      %v992 = vpop.permute.xlu0 %991
      %994 = vset.pattern.permute.xlu0 1
      %995 = vperm.xlu0 %994, %v888
      %v996 = vpop.permute.xlu0 %995
      %998 = vset.pattern.permute.xlu0 1
      %999 = vperm.xlu0 %998, %v889
      %v1000 = vpop.permute.xlu0 %999
      %v1002 = vmul.f32 %v460, %v972
      %v1003 = vmul.f32 %v461, %v976
      %v1004 = vmul.f32 %v462, %v980
      %v1005 = vmul.f32 %v463, %v984
      %v1006 = vmul.f32 %v464, %v988
      %v1007 = vmul.f32 %v465, %v992
      %v1008 = vmul.f32 %v466, %v996
      %v1009 = vmul.f32 %v467, %v1000
      %1011 = vset.pattern.permute.xlu0 1
      %1012 = vperm.xlu0 %1011, %v962
      %v1013 = vpop.permute.xlu0 %1012
      %1016 = vset.pattern.permute.xlu0 1
      %1017 = vperm.xlu0 %1016, %v963
      %v1018 = vpop.permute.xlu0 %1017
      %1021 = vset.pattern.permute.xlu0 1
      %1022 = vperm.xlu0 %1021, %v964
      %v1023 = vpop.permute.xlu0 %1022
      %1026 = vset.pattern.permute.xlu0 1
      %1027 = vperm.xlu0 %1026, %v965
      %v1028 = vpop.permute.xlu0 %1027
      %1031 = vset.pattern.permute.xlu0 1
      %1032 = vperm.xlu0 %1031, %v966
      %v1033 = vpop.permute.xlu0 %1032
      %1036 = vset.pattern.permute.xlu0 1
      %1037 = vperm.xlu0 %1036, %v967
      %v1038 = vpop.permute.xlu0 %1037
      %1041 = vset.pattern.permute.xlu0 1
      %1042 = vperm.xlu0 %1041, %v968
      %v1043 = vpop.permute.xlu0 %1042
      %1046 = vset.pattern.permute.xlu0 1
      %1047 = vperm.xlu0 %1046, %v969
      %v1048 = vpop.permute.xlu0 %1047
      %v1050 = vadd.f32 %v1002, %v1013
      %v1051 = vadd.f32 %v1003, %v1018
      %v1052 = vadd.f32 %v1004, %v1023
      %v1053 = vadd.f32 %v1005, %v1028
      %v1054 = vadd.f32 %v1006, %v1033
      %v1055 = vadd.f32 %v1007, %v1038
      %v1056 = vadd.f32 %v1008, %v1043
      %v1057 = vadd.f32 %v1009, %v1048
      %v1058 = vxor.u32 %v1050, 2147483648
      %v1059 = vxor.u32 %v1051, 2147483648
      %v1060 = vxor.u32 %v1052, 2147483648
      %v1061 = vxor.u32 %v1053, 2147483648
      %v1062 = vxor.u32 %v1054, 2147483648
      %v1063 = vxor.u32 %v1055, 2147483648
      %v1064 = vxor.u32 %v1056, 2147483648
      %v1065 = vxor.u32 %v1057, 2147483648
      %v1066 = vmul.f32 %v1058, 1.442695
      %v1067 = vpow.pop %v1066
      %v1068 = vmul.f32 %v1059, 1.442695
      %v1069 = vpow.pop %v1068
      %v1070 = vmul.f32 %v1060, 1.442695
      %v1071 = vpow.pop %v1070
      %v1072 = vmul.f32 %v1061, 1.442695
      %v1073 = vpow.pop %v1072
      %v1074 = vmul.f32 %v1062, 1.442695
      %v1075 = vpow.pop %v1074
      %v1076 = vmul.f32 %v1063, 1.442695
      %v1077 = vpow.pop %v1076
      %v1078 = vmul.f32 %v1064, 1.442695
      %v1079 = vpow.pop %v1078
      %v1080 = vmul.f32 %v1065, 1.442695
      %v1081 = vpow.pop %v1080
      %v1082 = vadd.f32 %v1067, 1.0
      %v1083 = vadd.f32 %v1069, 1.0
      %v1084 = vadd.f32 %v1071, 1.0
      %v1085 = vadd.f32 %v1073, 1.0
      %v1086 = vadd.f32 %v1075, 1.0
      %v1087 = vadd.f32 %v1077, 1.0
      %v1088 = vadd.f32 %v1079, 1.0
      %v1089 = vadd.f32 %v1081, 1.0
      %v1090 = vrcp.pop %v1082
      %v1091 = vmul.f32 1.0, %v1090
      %v1092 = vrcp.pop %v1083
      %v1093 = vmul.f32 1.0, %v1092
      %v1094 = vrcp.pop %v1084
      %v1095 = vmul.f32 1.0, %v1094
      %v1096 = vrcp.pop %v1085
      %v1097 = vmul.f32 1.0, %v1096
      %v1098 = vrcp.pop %v1086
      %v1099 = vmul.f32 1.0, %v1098
      %v1100 = vrcp.pop %v1087
      %v1101 = vmul.f32 1.0, %v1100
      %v1102 = vrcp.pop %v1088
      %v1103 = vmul.f32 1.0, %v1102
      %v1104 = vrcp.pop %v1089
      %v1105 = vmul.f32 1.0, %v1104
      %v1106 = vmul.f32 %v1050, %v1091
      %v1107 = vmul.f32 %v1051, %v1093
      %v1108 = vmul.f32 %v1052, %v1095
      %v1109 = vmul.f32 %v1053, %v1097
      %v1110 = vmul.f32 %v1054, %v1099
      %v1111 = vmul.f32 %v1055, %v1101
      %v1112 = vmul.f32 %v1056, %v1103
      %v1113 = vmul.f32 %v1057, %v1105
      %v1114 = vmul.f32 %v1106, %v492
      %v1115 = vmul.f32 %v1107, %v492
      %v1116 = vmul.f32 %v1108, %v492
      %v1117 = vmul.f32 %v1109, %v492
      %v1118 = vmul.f32 %v1110, %v492
      %v1119 = vmul.f32 %v1111, %v492
      %v1120 = vmul.f32 %v1112, %v492
      %v1121 = vmul.f32 %v1113, %v492
      %1122 = vrot.lane.b32.xlu0 %v1114, 1
      %v1123 = vpop.permute.xlu0 %1122
      %1124 = vrot.lane.b32.xlu0 %v1115, 1
      %v1125 = vpop.permute.xlu0 %1124
      %1126 = vrot.lane.b32.xlu0 %v1116, 1
      %v1127 = vpop.permute.xlu0 %1126
      %1128 = vrot.lane.b32.xlu0 %v1117, 1
      %v1129 = vpop.permute.xlu0 %1128
      %1130 = vrot.lane.b32.xlu0 %v1118, 1
      %v1131 = vpop.permute.xlu0 %1130
      %1132 = vrot.lane.b32.xlu0 %v1119, 1
      %v1133 = vpop.permute.xlu0 %1132
      %1134 = vrot.lane.b32.xlu0 %v1120, 1
      %v1135 = vpop.permute.xlu0 %1134
      %1136 = vrot.lane.b32.xlu0 %v1121, 1
      %v1137 = vpop.permute.xlu0 %1136
      %1138 = vrot.lane.b32.xlu0 %v1114, 127
      %v1139 = vpop.permute.xlu0 %1138
      %1140 = vrot.lane.b32.xlu0 %v1115, 127
      %v1141 = vpop.permute.xlu0 %1140
      %1142 = vrot.lane.b32.xlu0 %v1116, 127
      %v1143 = vpop.permute.xlu0 %1142
      %1144 = vrot.lane.b32.xlu0 %v1117, 127
      %v1145 = vpop.permute.xlu0 %1144
      %1146 = vrot.lane.b32.xlu0 %v1118, 127
      %v1147 = vpop.permute.xlu0 %1146
      %1148 = vrot.lane.b32.xlu0 %v1119, 127
      %v1149 = vpop.permute.xlu0 %1148
      %1150 = vrot.lane.b32.xlu0 %v1120, 127
      %v1151 = vpop.permute.xlu0 %1150
      %1152 = vrot.lane.b32.xlu0 %v1121, 127
      %v1153 = vpop.permute.xlu0 %1152
      %v1154 = vpack.c.bf16 %v1125, %v1123
      %v1155 = vpack.c.bf16 %v1129, %v1127
      %v1156 = vpack.c.bf16 %v1133, %v1131
      %v1157 = vpack.c.bf16 %v1137, %v1135
      %v1158 = vpack.c.bf16 %v1115, %v1114
      %v1159 = vpack.c.bf16 %v1117, %v1116
      %v1160 = vpack.c.bf16 %v1119, %v1118
      %v1161 = vpack.c.bf16 %v1121, %v1120
      %v1162 = vpack.c.bf16 %v1141, %v1139
      %v1163 = vpack.c.bf16 %v1145, %v1143
      %v1164 = vpack.c.bf16 %v1149, %v1147
      %v1165 = vpack.c.bf16 %v1153, %v1151
      %v1166 = vld [vmem:[%s5] sm:$0xff]
      %v1167 = vld [vmem:[%s5 + $0x8] sm:$0xff]
      %v1168 = vld [vmem:[%s5 + $0x10] sm:$0xff]
      %v1169 = vld [vmem:[%s5 + $0x18] sm:$0xff]
      %v1170 = vld [vmem:[%s5 + $0x20] sm:$0xff]
      %v1171 = vld [vmem:[%s5 + $0x28] sm:$0xff]
      %v1172 = vld [vmem:[%s5 + $0x30] sm:$0xff]
      %v1173 = vld [vmem:[%s5 + $0x38] sm:$0xff]
      %1174 = vset.pattern.permute.xlu0 2
      %1175 = vperm.xlu0 %1174, %v480
      %v1176 = vpop.permute.xlu0 %1175
      %1178 = vset.pattern.permute.xlu0 2
      %1179 = vperm.xlu0 %1178, %v481
      %v1180 = vpop.permute.xlu0 %1179
      %1182 = vset.pattern.permute.xlu0 2
      %1183 = vperm.xlu0 %1182, %v482
      %v1184 = vpop.permute.xlu0 %1183
      %1186 = vset.pattern.permute.xlu0 2
      %1187 = vperm.xlu0 %1186, %v483
      %v1188 = vpop.permute.xlu0 %1187
      %1190 = vset.pattern.permute.xlu0 2
      %1191 = vperm.xlu0 %1190, %v484
      %v1192 = vpop.permute.xlu0 %1191
      %1194 = vset.pattern.permute.xlu0 2
      %1195 = vperm.xlu0 %1194, %v485
      %v1196 = vpop.permute.xlu0 %1195
      %1198 = vset.pattern.permute.xlu0 2
      %1199 = vperm.xlu0 %1198, %v486
      %v1200 = vpop.permute.xlu0 %1199
      %1202 = vset.pattern.permute.xlu0 2
      %1203 = vperm.xlu0 %1202, %v487
      %v1204 = vpop.permute.xlu0 %1203
      %v1214 = vunpack.c.l.b16 %v1166
      %v1215 = vunpack.c.h.b16 %v1166
      %v1216 = vunpack.c.l.b16 %v1167
      %v1217 = vunpack.c.h.b16 %v1167
      %v1218 = vunpack.c.l.b16 %v1168
      %v1219 = vunpack.c.h.b16 %v1168
      %v1220 = vunpack.c.l.b16 %v1169
      %v1221 = vunpack.c.h.b16 %v1169
      %v1222 = vunpack.c.l.b16 %v1170
      %v1223 = vunpack.c.h.b16 %v1170
      %v1224 = vunpack.c.l.b16 %v1171
      %v1225 = vunpack.c.h.b16 %v1171
      %v1226 = vunpack.c.l.b16 %v1172
      %v1227 = vunpack.c.h.b16 %v1172
      %v1228 = vunpack.c.l.b16 %v1173
      %v1229 = vunpack.c.h.b16 %v1173
      %v1230 = vpack.c.b16 %v1216, %v1214
      %v1231 = vpack.c.b16 %v1217, %v1215
      %v1232 = vpack.c.b16 %v1220, %v1218
      %v1233 = vpack.c.b16 %v1221, %v1219
      %v1234 = vpack.c.b16 %v1224, %v1222
      %v1235 = vpack.c.b16 %v1225, %v1223
      %v1236 = vpack.c.b16 %v1228, %v1226
      %v1237 = vpack.c.b16 %v1229, %v1227
      %v1243 = vsel %vm542, %v1231, 0
      %v1246 = vsel %vm542, %v1233, 0
      %v1249 = vsel %vm542, %v1235, 0
      %v1252 = vsel %vm542, %v1237, 0
      %1254 = vmatprep.subr.bf16.mxu0 0
      %1255 = vmatpush1.bf16.msra.mxu0 %v1161
      %1256 = vmatprep.subr.bf16.mxu0 0
      %1257 = vmatpush1.bf16.msra.mxu0 %v1160
      %1258 = vmatprep.subr.bf16.mxu0 0
      %1259 = vmatpush1.bf16.msra.mxu0 %v1159
      %1260 = vmatprep.subr.bf16.mxu0 0
      %1261 = vmatpush1.bf16.msra.mxu0 %v1158
      %1262 = vmatprep.subr.bf16.mxu0 0
      %1263 = vmatpush1.bf16.msra.mxu0 %v1157
      %1264 = vmatprep.subr.bf16.mxu0 0
      %1265 = vmatpush1.bf16.msra.mxu0 %v1156
      %1266 = vmatprep.subr.bf16.mxu0 0
      %1267 = vmatpush1.bf16.msra.mxu0 %v1155
      %1268 = vmatprep.subr.bf16.mxu0 0
      %1269 = vmatpush1.bf16.msra.mxu0 %v1154
      %1270 = vmatprep.subr.bf16.mxu0 0
      %1271 = vmatpush2.bf16.msra.mxu0 0
      %1272 = vmatprep.subr.bf16.mxu0 0
      %1273 = vmatpush2.bf16.msra.mxu0 0
      %1274 = vmatprep.subr.bf16.mxu0 0
      %1275 = vmatpush2.bf16.msra.mxu0 0
      %1276 = vmatprep.subr.bf16.mxu0 0
      %1277 = vmatpush2.bf16.msra.mxu0 0
      %1278 = vmatprep.subr.bf16.mxu0 0
      %1279 = vmatpush2.bf16.msra.mxu0 %v1165
      %1280 = vmatprep.subr.bf16.mxu0 0
      %1281 = vmatpush2.bf16.msra.mxu0 %v1164
      %1282 = vmatprep.subr.bf16.mxu0 0
      %1283 = vmatpush2.bf16.msra.mxu0 %v1163
      %1284 = vmatprep.subr.bf16.mxu0 0
      %1285 = vmatpush2.bf16.msra.mxu0 %v1162
      %1286 = vmatprep.mubr.bf16.mxu0 %v1243
      %1287 = vmatmul.mubr.bf16.gmra.mxu0 %v1230
      %v1288 = vpop.f32.mrf.mxu0
      %v1289 = vadd.f32 %v1176, %v1288
      %v1290 = vpop.f32.mrf.mxu0
      %v1291 = vpop.f32.mrf.mxu0
      %v1292 = vadd.f32 %v1180, %v1291
      %v1293 = vpop.f32.mrf.mxu0
      %1294 = vmatprep.mubr.bf16.mxu0 %v1246
      %1295 = vmatmul.mubr.bf16.gmra.mxu0 %v1232
      %v1296 = vpop.f32.mrf.mxu0
      %v1297 = vadd.f32 %v1184, %v1296
      %v1298 = vpop.f32.mrf.mxu0
      %v1299 = vpop.f32.mrf.mxu0
      %v1300 = vadd.f32 %v1188, %v1299
      %v1301 = vpop.f32.mrf.mxu0
      %1302 = vmatprep.mubr.bf16.mxu0 %v1249
      %1303 = vmatmul.mubr.bf16.gmra.mxu0 %v1234
      %v1304 = vpop.f32.mrf.mxu0
      %v1305 = vadd.f32 %v1192, %v1304
      %v1306 = vpop.f32.mrf.mxu0
      %v1307 = vpop.f32.mrf.mxu0
      %v1308 = vadd.f32 %v1196, %v1307
      %v1309 = vpop.f32.mrf.mxu0
      %1310 = vmatprep.mubr.bf16.mxu0 %v1252
      %1311 = vmatmul.mubr.bf16.gmra.mxu0 %v1236
      %v1312 = vpop.f32.mrf.mxu0
      %v1313 = vadd.f32 %v1200, %v1312
      %v1314 = vpop.f32.mrf.mxu0
      %v1315 = vpop.f32.mrf.mxu0
      %v1316 = vadd.f32 %v1204, %v1315
      %v1317 = vpop.f32.mrf.mxu0
      %1318 = vdwg.mxu0
      %v1319 = vmul.f32 %v1289, %v492
      %v1320 = vmul.f32 %v1292, %v492
      %v1321 = vmul.f32 %v1297, %v492
      %v1322 = vmul.f32 %v1300, %v492
      %v1323 = vmul.f32 %v1305, %v492
      %v1324 = vmul.f32 %v1308, %v492
      %v1325 = vmul.f32 %v1313, %v492
      %v1326 = vmul.f32 %v1316, %v492
      %1327 = vadd.xlane.f32.xlu0 %v1319
      %v1328 = vpop.xlane.xlu0 %1327
      %1329 = vadd.xlane.f32.xlu0 %v1320
      %v1330 = vpop.xlane.xlu0 %1329
      %1331 = vadd.xlane.f32.xlu0 %v1321
      %v1332 = vpop.xlane.xlu0 %1331
      %1333 = vadd.xlane.f32.xlu0 %v1322
      %v1334 = vpop.xlane.xlu0 %1333
      %1335 = vadd.xlane.f32.xlu0 %v1323
      %v1336 = vpop.xlane.xlu0 %1335
      %1337 = vadd.xlane.f32.xlu0 %v1324
      %v1338 = vpop.xlane.xlu0 %1337
      %1339 = vadd.xlane.f32.xlu0 %v1325
      %v1340 = vpop.xlane.xlu0 %1339
      %1341 = vadd.xlane.f32.xlu0 %v1326
      %v1342 = vpop.xlane.xlu0 %1341
      %v1343 = vmul.f32 %v1319, %v1319
      %v1344 = vmul.f32 %v1320, %v1320
      %v1345 = vmul.f32 %v1321, %v1321
      %v1346 = vmul.f32 %v1322, %v1322
      %v1347 = vmul.f32 %v1323, %v1323
      %v1348 = vmul.f32 %v1324, %v1324
      %v1349 = vmul.f32 %v1325, %v1325
      %v1350 = vmul.f32 %v1326, %v1326
      %1351 = vadd.xlane.f32.xlu0 %v1343
      %v1352 = vpop.xlane.xlu0 %1351
      %1353 = vadd.xlane.f32.xlu0 %v1344
      %v1354 = vpop.xlane.xlu0 %1353
      %1355 = vadd.xlane.f32.xlu0 %v1345
      %v1356 = vpop.xlane.xlu0 %1355
      %1357 = vadd.xlane.f32.xlu0 %v1346
      %v1358 = vpop.xlane.xlu0 %1357
      %1359 = vadd.xlane.f32.xlu0 %v1347
      %v1360 = vpop.xlane.xlu0 %1359
      %1361 = vadd.xlane.f32.xlu0 %v1348
      %v1362 = vpop.xlane.xlu0 %1361
      %1363 = vadd.xlane.f32.xlu0 %v1349
      %v1364 = vpop.xlane.xlu0 %1363
      %1365 = vadd.xlane.f32.xlu0 %v1350
      %v1366 = vpop.xlane.xlu0 %1365
      %v1367 = vsel %vm533, %v1328, %v1352
      %v1368 = vsel %vm533, %v1330, %v1354
      %v1369 = vsel %vm533, %v1332, %v1356
      %v1370 = vsel %vm533, %v1334, %v1358
      %v1371 = vsel %vm533, %v1336, %v1360
      %v1372 = vsel %vm533, %v1338, %v1362
      %v1373 = vsel %vm533, %v1340, %v1364
      %v1374 = vsel %vm533, %v1342, %v1366
      %1375 = vmatprep.subr.mxu0 0.0
      %1376 = vmatpush1.msra.mxu0 0.0
      %1377 = vmatprep.subr.mxu0 0.0
      %1378 = vmatpush1.msra.mxu0 0.0
      %1379 = vmatprep.subr.mxu0 0.0
      %1380 = vmatpush1.msra.mxu0 0.0
      %1381 = vmatprep.subr.mxu0 0.0
      %1382 = vmatpush1.msra.mxu0 0.0
      %1383 = vmatprep.subr.mxu0 0.0
      %1384 = vmatpush1.msra.mxu0 0.0
      %1385 = vmatprep.subr.mxu0 0.0
      %1386 = vmatpush1.msra.mxu0 0.0
      %1387 = vmatprep.subr.mxu0 0.0
      %1388 = vmatpush1.msra.mxu0 0.0
      %1389 = vmatprep.subr.mxu0 0.0
      %1390 = vmatpush1.msra.mxu0 0.0
      %1391 = vmatprep.subr.mxu0 0.0
      %1392 = vmatpush1.msra.mxu0 %v1374
      %1393 = vmatprep.subr.mxu0 0.0
      %1394 = vmatpush1.msra.mxu0 %v1373
      %1395 = vmatprep.subr.mxu0 0.0
      %1396 = vmatpush1.msra.mxu0 %v1372
      %1397 = vmatprep.subr.mxu0 0.0
      %1398 = vmatpush1.msra.mxu0 %v1371
      %1399 = vmatprep.subr.mxu0 0.0
      %1400 = vmatpush1.msra.mxu0 %v1370
      %1401 = vmatprep.subr.mxu0 0.0
      %1402 = vmatpush1.msra.mxu0 %v1369
      %1403 = vmatprep.subr.mxu0 0.0
      %1404 = vmatpush1.msra.mxu0 %v1368
      %1405 = vmatprep.subr.mxu0 0.0
      %1406 = vmatpush1.msra.mxu0 %v1367
      %1407 = vmatprep.subr.mxu0 0.0
      %1408 = vmatpush2.msra.mxu0 0.0
      %1409 = vmatprep.subr.mxu0 0.0
      %1410 = vmatpush2.msra.mxu0 0.0
      %1411 = vmatprep.subr.mxu0 0.0
      %1412 = vmatpush2.msra.mxu0 0.0
      %1413 = vmatprep.subr.mxu0 0.0
      %1414 = vmatpush2.msra.mxu0 0.0
      %1415 = vmatprep.subr.mxu0 0.0
      %1416 = vmatpush2.msra.mxu0 0.0
      %1417 = vmatprep.subr.mxu0 0.0
      %1418 = vmatpush2.msra.mxu0 0.0
      %1419 = vmatprep.subr.mxu0 0.0
      %1420 = vmatpush2.msra.mxu0 0.0
      %1421 = vmatprep.subr.mxu0 0.0
      %1422 = vmatpush2.msra.mxu0 0.0
      %1423 = vmatprep.subr.mxu0 0.0
      %1424 = vmatpush2.msra.mxu0 0.0
      %1425 = vmatprep.subr.mxu0 0.0
      %1426 = vmatpush2.msra.mxu0 0.0
      %1427 = vmatprep.subr.mxu0 0.0
      %1428 = vmatpush2.msra.mxu0 0.0
      %1429 = vmatprep.subr.mxu0 0.0
      %1430 = vmatpush2.msra.mxu0 0.0
      %1431 = vmatprep.subr.mxu0 0.0
      %1432 = vmatpush2.msra.mxu0 0.0
      %1433 = vmatprep.subr.mxu0 0.0
      %1434 = vmatpush2.msra.mxu0 0.0
      %1435 = vmatprep.subr.mxu0 0.0
      %1436 = vmatpush2.msra.mxu0 0.0
      %1437 = vmatprep.subr.mxu0 0.0
      %1438 = vmatpush2.msra.mxu0 0.0
      %1439 = vmatprep.mubr.f32.mxu0 0.0
      %1440 = vmatmul.mubr.f32.gmra.mxu0 %v544
      %v1441 = vpop.f32.mrf.mxu0
      %v1442 = vadd.f32 0.0, %v1441
      %v1443 = vpop.f32.mrf.mxu0
      %1444 = vmatprep.mubr.f32.mxu0 0.0
      %1445 = vmatmul.mubr.f32.gmra.mxu0 %v547
      %v1446 = vpop.f32.mrf.mxu0
      %v1447 = vadd.f32 0.0, %v1446
      %v1448 = vpop.f32.mrf.mxu0
      %1449 = vmatprep.mubr.f32.mxu0 0.0
      %1450 = vmatmul.mubr.f32.gmra.mxu0 %v550
      %v1451 = vpop.f32.mrf.mxu0
      %v1452 = vadd.f32 0.0, %v1451
      %v1453 = vpop.f32.mrf.mxu0
      %1454 = vmatprep.mubr.f32.mxu0 0.0
      %1455 = vmatmul.mubr.f32.gmra.mxu0 %v553
      %v1456 = vpop.f32.mrf.mxu0
      %v1457 = vadd.f32 0.0, %v1456
      %v1458 = vpop.f32.mrf.mxu0
      %1459 = vdwg.mxu0
      %1460 = vmatprep.subr.mxu0 0.0
      %1461 = vmatpush1.msra.mxu0 0.0
      %1462 = vmatprep.subr.mxu0 0.0
      %1463 = vmatpush1.msra.mxu0 0.0
      %1464 = vmatprep.subr.mxu0 0.0
      %1465 = vmatpush1.msra.mxu0 0.0
      %1466 = vmatprep.subr.mxu0 0.0
      %1467 = vmatpush1.msra.mxu0 0.0
      %1468 = vmatprep.subr.mxu0 0.0
      %1469 = vmatpush1.msra.mxu0 0.0
      %1470 = vmatprep.subr.mxu0 0.0
      %1471 = vmatpush1.msra.mxu0 0.0
      %1472 = vmatprep.subr.mxu0 0.0
      %1473 = vmatpush1.msra.mxu0 0.0
      %1474 = vmatprep.subr.mxu0 0.0
      %1475 = vmatpush1.msra.mxu0 0.0
      %1476 = vmatprep.subr.mxu0 0.0
      %1477 = vmatpush1.msra.mxu0 0.0
      %1478 = vmatprep.subr.mxu0 0.0
      %1479 = vmatpush1.msra.mxu0 0.0
      %1480 = vmatprep.subr.mxu0 0.0
      %1481 = vmatpush1.msra.mxu0 0.0
      %1482 = vmatprep.subr.mxu0 0.0
      %1483 = vmatpush1.msra.mxu0 0.0
      %1484 = vmatprep.subr.mxu0 0.0
      %1485 = vmatpush1.msra.mxu0 %v1457
      %1486 = vmatprep.subr.mxu0 0.0
      %1487 = vmatpush1.msra.mxu0 %v1452
      %1488 = vmatprep.subr.mxu0 0.0
      %1489 = vmatpush1.msra.mxu0 %v1447
      %1490 = vmatprep.subr.mxu0 0.0
      %1491 = vmatpush1.msra.mxu0 %v1442
      %1492 = vmatprep.subr.mxu0 0.0
      %1493 = vmatpush2.msra.mxu0 0.0
      %1494 = vmatprep.subr.mxu0 0.0
      %1495 = vmatpush2.msra.mxu0 0.0
      %1496 = vmatprep.subr.mxu0 0.0
      %1497 = vmatpush2.msra.mxu0 0.0
      %1498 = vmatprep.subr.mxu0 0.0
      %1499 = vmatpush2.msra.mxu0 0.0
      %1500 = vmatprep.subr.mxu0 0.0
      %1501 = vmatpush2.msra.mxu0 0.0
      %1502 = vmatprep.subr.mxu0 0.0
      %1503 = vmatpush2.msra.mxu0 0.0
      %1504 = vmatprep.subr.mxu0 0.0
      %1505 = vmatpush2.msra.mxu0 0.0
      %1506 = vmatprep.subr.mxu0 0.0
      %1507 = vmatpush2.msra.mxu0 0.0
      %1508 = vmatprep.subr.mxu0 0.0
      %1509 = vmatpush2.msra.mxu0 0.0
      %1510 = vmatprep.subr.mxu0 0.0
      %1511 = vmatpush2.msra.mxu0 0.0
      %1512 = vmatprep.subr.mxu0 0.0
      %1513 = vmatpush2.msra.mxu0 0.0
      %1514 = vmatprep.subr.mxu0 0.0
      %1515 = vmatpush2.msra.mxu0 0.0
      %1516 = vmatprep.subr.mxu0 0.0
      %1517 = vmatpush2.msra.mxu0 0.0
      %1518 = vmatprep.subr.mxu0 0.0
      %1519 = vmatpush2.msra.mxu0 0.0
      %1520 = vmatprep.subr.mxu0 0.0
      %1521 = vmatpush2.msra.mxu0 0.0
      %1522 = vmatprep.subr.mxu0 0.0
      %1523 = vmatpush2.msra.mxu0 0.0
      %1524 = vmatprep.mubr.f32.mxu0 0.0
      %1525 = vmatmul.mubr.f32.gmra.mxu0 %v642
      %v1526 = vpop.f32.mrf.mxu0
      %v1527 = vadd.f32 0.0, %v1526
      %v1528 = vpop.f32.mrf.mxu0
      %1529 = vmatprep.mubr.f32.mxu0 0.0
      %1530 = vmatmul.mubr.f32.gmra.mxu0 %v645
      %v1531 = vpop.f32.mrf.mxu0
      %v1532 = vadd.f32 0.0, %v1531
      %v1533 = vpop.f32.mrf.mxu0
      %1534 = vmatprep.mubr.f32.mxu0 0.0
      %1535 = vmatmul.mubr.f32.gmra.mxu0 %v648
      %v1536 = vpop.f32.mrf.mxu0
      %v1537 = vadd.f32 0.0, %v1536
      %v1538 = vpop.f32.mrf.mxu0
      %1539 = vmatprep.mubr.f32.mxu0 0.0
      %1540 = vmatmul.mubr.f32.gmra.mxu0 %v651
      %v1541 = vpop.f32.mrf.mxu0
      %v1542 = vadd.f32 0.0, %v1541
      %v1543 = vpop.f32.mrf.mxu0
      %1544 = vmatprep.mubr.f32.mxu0 0.0
      %1545 = vmatmul.mubr.f32.gmra.mxu0 %v654
      %v1546 = vpop.f32.mrf.mxu0
      %v1547 = vadd.f32 0.0, %v1546
      %v1548 = vpop.f32.mrf.mxu0
      %1549 = vmatprep.mubr.f32.mxu0 0.0
      %1550 = vmatmul.mubr.f32.gmra.mxu0 %v657
      %v1551 = vpop.f32.mrf.mxu0
      %v1552 = vadd.f32 0.0, %v1551
      %v1553 = vpop.f32.mrf.mxu0
      %1554 = vmatprep.mubr.f32.mxu0 0.0
      %1555 = vmatmul.mubr.f32.gmra.mxu0 %v660
      %v1556 = vpop.f32.mrf.mxu0
      %v1557 = vadd.f32 0.0, %v1556
      %v1558 = vpop.f32.mrf.mxu0
      %1559 = vmatprep.mubr.f32.mxu0 0.0
      %1560 = vmatmul.mubr.f32.gmra.mxu0 %v663
      %v1561 = vpop.f32.mrf.mxu0
      %v1562 = vadd.f32 0.0, %v1561
      %v1563 = vpop.f32.mrf.mxu0
      %1564 = vdwg.mxu0
      %v1565 = vmul.f32 %v1527, 0.03125
      %v1566 = vmul.f32 %v1532, 0.03125
      %v1567 = vmul.f32 %v1537, 0.03125
      %v1568 = vmul.f32 %v1542, 0.03125
      %v1569 = vmul.f32 %v1547, 0.03125
      %v1570 = vmul.f32 %v1552, 0.03125
      %v1571 = vmul.f32 %v1557, 0.03125
      %v1572 = vmul.f32 %v1562, 0.03125
      %v1573 = vmul.f32 %v1565, %v1565
      %v1574 = vmul.f32 %v1566, %v1566
      %v1575 = vmul.f32 %v1567, %v1567
      %v1576 = vmul.f32 %v1568, %v1568
      %v1577 = vmul.f32 %v1569, %v1569
      %v1578 = vmul.f32 %v1570, %v1570
      %v1579 = vmul.f32 %v1571, %v1571
      %v1580 = vmul.f32 %v1572, %v1572
      %1589 = vrot.lane.b32.xlu0 %v1573, 1
      %v1590 = vpop.permute.xlu0 %1589
      %1591 = vrot.lane.b32.xlu0 %v1574, 1
      %v1592 = vpop.permute.xlu0 %1591
      %1593 = vrot.lane.b32.xlu0 %v1575, 1
      %v1594 = vpop.permute.xlu0 %1593
      %1595 = vrot.lane.b32.xlu0 %v1576, 1
      %v1596 = vpop.permute.xlu0 %1595
      %1597 = vrot.lane.b32.xlu0 %v1577, 1
      %v1598 = vpop.permute.xlu0 %1597
      %1599 = vrot.lane.b32.xlu0 %v1578, 1
      %v1600 = vpop.permute.xlu0 %1599
      %1601 = vrot.lane.b32.xlu0 %v1579, 1
      %v1602 = vpop.permute.xlu0 %1601
      %1603 = vrot.lane.b32.xlu0 %v1580, 1
      %v1604 = vpop.permute.xlu0 %1603
      %v1613 = vsub.f32 %v1565, %v1590
      %v1614 = vsub.f32 %v1566, %v1592
      %v1615 = vsub.f32 %v1567, %v1594
      %v1616 = vsub.f32 %v1568, %v1596
      %v1617 = vsub.f32 %v1569, %v1598
      %v1618 = vsub.f32 %v1570, %v1600
      %v1619 = vsub.f32 %v1571, %v1602
      %v1620 = vsub.f32 %v1572, %v1604
      %v1621 = vmax.f32 %v1613, 0.0
      %v1622 = vmax.f32 %v1614, 0.0
      %v1623 = vmax.f32 %v1615, 0.0
      %v1624 = vmax.f32 %v1616, 0.0
      %v1625 = vmax.f32 %v1617, 0.0
      %v1626 = vmax.f32 %v1618, 0.0
      %v1627 = vmax.f32 %v1619, 0.0
      %v1628 = vmax.f32 %v1620, 0.0
      %v1629 = vadd.f32 %v1621, 1e-06
      %v1630 = vadd.f32 %v1622, 1e-06
      %v1631 = vadd.f32 %v1623, 1e-06
      %v1632 = vadd.f32 %v1624, 1e-06
      %v1633 = vadd.f32 %v1625, 1e-06
      %v1634 = vadd.f32 %v1626, 1e-06
      %v1635 = vadd.f32 %v1627, 1e-06
      %v1636 = vadd.f32 %v1628, 1e-06
      %v1637 = vrsqrt.pop %v1629
      %v1638 = vrsqrt.pop %v1630
      %v1639 = vrsqrt.pop %v1631
      %v1640 = vrsqrt.pop %v1632
      %v1641 = vrsqrt.pop %v1633
      %v1642 = vrsqrt.pop %v1634
      %v1643 = vrsqrt.pop %v1635
      %v1644 = vrsqrt.pop %v1636
      %1645 = vrot.lane.b32.xlu0 %v480, 126
      %v1646 = vpop.permute.xlu0 %1645
      %1647 = vrot.lane.b32.xlu0 %v481, 126
      %v1648 = vpop.permute.xlu0 %1647
      %1649 = vrot.lane.b32.xlu0 %v482, 126
      %v1650 = vpop.permute.xlu0 %1649
      %1651 = vrot.lane.b32.xlu0 %v483, 126
      %v1652 = vpop.permute.xlu0 %1651
      %1653 = vrot.lane.b32.xlu0 %v484, 126
      %v1654 = vpop.permute.xlu0 %1653
      %1655 = vrot.lane.b32.xlu0 %v485, 126
      %v1656 = vpop.permute.xlu0 %1655
      %1657 = vrot.lane.b32.xlu0 %v486, 126
      %v1658 = vpop.permute.xlu0 %1657
      %1659 = vrot.lane.b32.xlu0 %v487, 126
      %v1660 = vpop.permute.xlu0 %1659
      %v1669 = vmul.f32 %v1637, %v1646
      %v1670 = vmul.f32 %v1638, %v1648
      %v1671 = vmul.f32 %v1639, %v1650
      %v1672 = vmul.f32 %v1640, %v1652
      %v1673 = vmul.f32 %v1641, %v1654
      %v1674 = vmul.f32 %v1642, %v1656
      %v1675 = vmul.f32 %v1643, %v1658
      %v1676 = vmul.f32 %v1644, %v1660
      %1685 = vrot.lane.b32.xlu0 %v1669, 127
      %v1686 = vpop.permute.xlu0 %1685
      %1687 = vrot.lane.b32.xlu0 %v1670, 127
      %v1688 = vpop.permute.xlu0 %1687
      %1689 = vrot.lane.b32.xlu0 %v1671, 127
      %v1690 = vpop.permute.xlu0 %1689
      %1691 = vrot.lane.b32.xlu0 %v1672, 127
      %v1692 = vpop.permute.xlu0 %1691
      %1693 = vrot.lane.b32.xlu0 %v1673, 127
      %v1694 = vpop.permute.xlu0 %1693
      %1695 = vrot.lane.b32.xlu0 %v1674, 127
      %v1696 = vpop.permute.xlu0 %1695
      %1697 = vrot.lane.b32.xlu0 %v1675, 127
      %v1698 = vpop.permute.xlu0 %1697
      %1699 = vrot.lane.b32.xlu0 %v1676, 127
      %v1700 = vpop.permute.xlu0 %1699
      %v1709 = vmul.f32 %v1565, %v1686
      %v1710 = vmul.f32 %v1566, %v1688
      %v1711 = vmul.f32 %v1567, %v1690
      %v1712 = vmul.f32 %v1568, %v1692
      %v1713 = vmul.f32 %v1569, %v1694
      %v1714 = vmul.f32 %v1570, %v1696
      %v1715 = vmul.f32 %v1571, %v1698
      %v1716 = vmul.f32 %v1572, %v1700
      %1725 = vrot.lane.b32.xlu0 %v1709, 4
      %v1726 = vpop.permute.xlu0 %1725
      %1727 = vrot.lane.b32.xlu0 %v1710, 4
      %v1728 = vpop.permute.xlu0 %1727
      %1729 = vrot.lane.b32.xlu0 %v1711, 4
      %v1730 = vpop.permute.xlu0 %1729
      %1731 = vrot.lane.b32.xlu0 %v1712, 4
      %v1732 = vpop.permute.xlu0 %1731
      %1733 = vrot.lane.b32.xlu0 %v1713, 4
      %v1734 = vpop.permute.xlu0 %1733
      %1735 = vrot.lane.b32.xlu0 %v1714, 4
      %v1736 = vpop.permute.xlu0 %1735
      %1737 = vrot.lane.b32.xlu0 %v1715, 4
      %v1738 = vpop.permute.xlu0 %1737
      %1739 = vrot.lane.b32.xlu0 %v1716, 4
      %v1740 = vpop.permute.xlu0 %1739
      %v1749 = vsub.f32 %v480, %v1726
      %v1750 = vsub.f32 %v481, %v1728
      %v1751 = vsub.f32 %v482, %v1730
      %v1752 = vsub.f32 %v483, %v1732
      %v1753 = vsub.f32 %v484, %v1734
      %v1754 = vsub.f32 %v485, %v1736
      %v1755 = vsub.f32 %v486, %v1738
      %v1756 = vsub.f32 %v487, %v1740
      %1757 = vset.pattern.permute.xlu0 1
      %1758 = vperm.xlu0 %1757, %v1669
      %v1759 = vpop.permute.xlu0 %1758
      %1761 = vset.pattern.permute.xlu0 1
      %1762 = vperm.xlu0 %1761, %v1670
      %v1763 = vpop.permute.xlu0 %1762
      %1765 = vset.pattern.permute.xlu0 1
      %1766 = vperm.xlu0 %1765, %v1671
      %v1767 = vpop.permute.xlu0 %1766
      %1769 = vset.pattern.permute.xlu0 1
      %1770 = vperm.xlu0 %1769, %v1672
      %v1771 = vpop.permute.xlu0 %1770
      %1773 = vset.pattern.permute.xlu0 1
      %1774 = vperm.xlu0 %1773, %v1673
      %v1775 = vpop.permute.xlu0 %1774
      %1777 = vset.pattern.permute.xlu0 1
      %1778 = vperm.xlu0 %1777, %v1674
      %v1779 = vpop.permute.xlu0 %1778
      %1781 = vset.pattern.permute.xlu0 1
      %1782 = vperm.xlu0 %1781, %v1675
      %v1783 = vpop.permute.xlu0 %1782
      %1785 = vset.pattern.permute.xlu0 1
      %1786 = vperm.xlu0 %1785, %v1676
      %v1787 = vpop.permute.xlu0 %1786
      %v1789 = vmul.f32 %v1289, %v1759
      %v1790 = vmul.f32 %v1292, %v1763
      %v1791 = vmul.f32 %v1297, %v1767
      %v1792 = vmul.f32 %v1300, %v1771
      %v1793 = vmul.f32 %v1305, %v1775
      %v1794 = vmul.f32 %v1308, %v1779
      %v1795 = vmul.f32 %v1313, %v1783
      %v1796 = vmul.f32 %v1316, %v1787
      %1798 = vset.pattern.permute.xlu0 4
      %1799 = vperm.xlu0 %1798, %v1749
      %v1800 = vpop.permute.xlu0 %1799
      %1803 = vset.pattern.permute.xlu0 4
      %1804 = vperm.xlu0 %1803, %v1750
      %v1805 = vpop.permute.xlu0 %1804
      %1808 = vset.pattern.permute.xlu0 4
      %1809 = vperm.xlu0 %1808, %v1751
      %v1810 = vpop.permute.xlu0 %1809
      %1813 = vset.pattern.permute.xlu0 4
      %1814 = vperm.xlu0 %1813, %v1752
      %v1815 = vpop.permute.xlu0 %1814
      %1818 = vset.pattern.permute.xlu0 4
      %1819 = vperm.xlu0 %1818, %v1753
      %v1820 = vpop.permute.xlu0 %1819
      %1823 = vset.pattern.permute.xlu0 4
      %1824 = vperm.xlu0 %1823, %v1754
      %v1825 = vpop.permute.xlu0 %1824
      %1828 = vset.pattern.permute.xlu0 4
      %1829 = vperm.xlu0 %1828, %v1755
      %v1830 = vpop.permute.xlu0 %1829
      %1833 = vset.pattern.permute.xlu0 4
      %1834 = vperm.xlu0 %1833, %v1756
      %v1835 = vpop.permute.xlu0 %1834
      %v1837 = vadd.f32 %v1789, %v1800
      %v1838 = vadd.f32 %v1790, %v1805
      %v1839 = vadd.f32 %v1791, %v1810
      %v1840 = vadd.f32 %v1792, %v1815
      %v1841 = vadd.f32 %v1793, %v1820
      %v1842 = vadd.f32 %v1794, %v1825
      %v1843 = vadd.f32 %v1795, %v1830
      %v1844 = vadd.f32 %v1796, %v1835
      %v1845 = vxor.u32 %v1837, 2147483648
      %v1846 = vxor.u32 %v1838, 2147483648
      %v1847 = vxor.u32 %v1839, 2147483648
      %v1848 = vxor.u32 %v1840, 2147483648
      %v1849 = vxor.u32 %v1841, 2147483648
      %v1850 = vxor.u32 %v1842, 2147483648
      %v1851 = vxor.u32 %v1843, 2147483648
      %v1852 = vxor.u32 %v1844, 2147483648
      %v1853 = vmul.f32 %v1845, 1.442695
      %v1854 = vpow.pop %v1853
      %v1855 = vmul.f32 %v1846, 1.442695
      %v1856 = vpow.pop %v1855
      %v1857 = vmul.f32 %v1847, 1.442695
      %v1858 = vpow.pop %v1857
      %v1859 = vmul.f32 %v1848, 1.442695
      %v1860 = vpow.pop %v1859
      %v1861 = vmul.f32 %v1849, 1.442695
      %v1862 = vpow.pop %v1861
      %v1863 = vmul.f32 %v1850, 1.442695
      %v1864 = vpow.pop %v1863
      %v1865 = vmul.f32 %v1851, 1.442695
      %v1866 = vpow.pop %v1865
      %v1867 = vmul.f32 %v1852, 1.442695
      %v1868 = vpow.pop %v1867
      %v1869 = vadd.f32 %v1854, 1.0
      %v1870 = vadd.f32 %v1856, 1.0
      %v1871 = vadd.f32 %v1858, 1.0
      %v1872 = vadd.f32 %v1860, 1.0
      %v1873 = vadd.f32 %v1862, 1.0
      %v1874 = vadd.f32 %v1864, 1.0
      %v1875 = vadd.f32 %v1866, 1.0
      %v1876 = vadd.f32 %v1868, 1.0
      %v1877 = vrcp.pop %v1869
      %v1878 = vmul.f32 1.0, %v1877
      %v1879 = vrcp.pop %v1870
      %v1880 = vmul.f32 1.0, %v1879
      %v1881 = vrcp.pop %v1871
      %v1882 = vmul.f32 1.0, %v1881
      %v1883 = vrcp.pop %v1872
      %v1884 = vmul.f32 1.0, %v1883
      %v1885 = vrcp.pop %v1873
      %v1886 = vmul.f32 1.0, %v1885
      %v1887 = vrcp.pop %v1874
      %v1888 = vmul.f32 1.0, %v1887
      %v1889 = vrcp.pop %v1875
      %v1890 = vmul.f32 1.0, %v1889
      %v1891 = vrcp.pop %v1876
      %v1892 = vmul.f32 1.0, %v1891
      %v1893 = vmul.f32 %v1837, %v1878
      %v1894 = vmul.f32 %v1838, %v1880
      %v1895 = vmul.f32 %v1839, %v1882
      %v1896 = vmul.f32 %v1840, %v1884
      %v1897 = vmul.f32 %v1841, %v1886
      %v1898 = vmul.f32 %v1842, %v1888
      %v1899 = vmul.f32 %v1843, %v1890
      %v1900 = vmul.f32 %v1844, %v1892
      %v1901 = vmul.f32 %v1893, %v492
      %v1902 = vmul.f32 %v1894, %v492
      %v1903 = vmul.f32 %v1895, %v492
      %v1904 = vmul.f32 %v1896, %v492
      %v1905 = vmul.f32 %v1897, %v492
      %v1906 = vmul.f32 %v1898, %v492
      %v1907 = vmul.f32 %v1899, %v492
      %v1908 = vmul.f32 %v1900, %v492
      %1909 = vrot.lane.b32.xlu0 %v1901, 1
      %v1910 = vpop.permute.xlu0 %1909
      %1911 = vrot.lane.b32.xlu0 %v1902, 1
      %v1912 = vpop.permute.xlu0 %1911
      %1913 = vrot.lane.b32.xlu0 %v1903, 1
      %v1914 = vpop.permute.xlu0 %1913
      %1915 = vrot.lane.b32.xlu0 %v1904, 1
      %v1916 = vpop.permute.xlu0 %1915
      %1917 = vrot.lane.b32.xlu0 %v1905, 1
      %v1918 = vpop.permute.xlu0 %1917
      %1919 = vrot.lane.b32.xlu0 %v1906, 1
      %v1920 = vpop.permute.xlu0 %1919
      %1921 = vrot.lane.b32.xlu0 %v1907, 1
      %v1922 = vpop.permute.xlu0 %1921
      %1923 = vrot.lane.b32.xlu0 %v1908, 1
      %v1924 = vpop.permute.xlu0 %1923
      %1925 = vrot.lane.b32.xlu0 %v1901, 127
      %v1926 = vpop.permute.xlu0 %1925
      %1927 = vrot.lane.b32.xlu0 %v1902, 127
      %v1928 = vpop.permute.xlu0 %1927
      %1929 = vrot.lane.b32.xlu0 %v1903, 127
      %v1930 = vpop.permute.xlu0 %1929
      %1931 = vrot.lane.b32.xlu0 %v1904, 127
      %v1932 = vpop.permute.xlu0 %1931
      %1933 = vrot.lane.b32.xlu0 %v1905, 127
      %v1934 = vpop.permute.xlu0 %1933
      %1935 = vrot.lane.b32.xlu0 %v1906, 127
      %v1936 = vpop.permute.xlu0 %1935
      %1937 = vrot.lane.b32.xlu0 %v1907, 127
      %v1938 = vpop.permute.xlu0 %1937
      %1939 = vrot.lane.b32.xlu0 %v1908, 127
      %v1940 = vpop.permute.xlu0 %1939
      %v1941 = vpack.c.bf16 %v1912, %v1910
      %v1942 = vpack.c.bf16 %v1916, %v1914
      %v1943 = vpack.c.bf16 %v1920, %v1918
      %v1944 = vpack.c.bf16 %v1924, %v1922
      %v1945 = vpack.c.bf16 %v1902, %v1901
      %v1946 = vpack.c.bf16 %v1904, %v1903
      %v1947 = vpack.c.bf16 %v1906, %v1905
      %v1948 = vpack.c.bf16 %v1908, %v1907
      %v1949 = vpack.c.bf16 %v1928, %v1926
      %v1950 = vpack.c.bf16 %v1932, %v1930
      %v1951 = vpack.c.bf16 %v1936, %v1934
      %v1952 = vpack.c.bf16 %v1940, %v1938
      %v1953 = vld [vmem:[%s6] sm:$0xff]
      %v1954 = vld [vmem:[%s6 + $0x8] sm:$0xff]
      %v1955 = vld [vmem:[%s6 + $0x10] sm:$0xff]
      %v1956 = vld [vmem:[%s6 + $0x18] sm:$0xff]
      %v1957 = vld [vmem:[%s6 + $0x20] sm:$0xff]
      %v1958 = vld [vmem:[%s6 + $0x28] sm:$0xff]
      %v1959 = vld [vmem:[%s6 + $0x30] sm:$0xff]
      %v1960 = vld [vmem:[%s6 + $0x38] sm:$0xff]
      %1961 = vset.pattern.permute.xlu0 5
      %1962 = vperm.xlu0 %1961, %v480
      %v1963 = vpop.permute.xlu0 %1962
      %1965 = vset.pattern.permute.xlu0 5
      %1966 = vperm.xlu0 %1965, %v481
      %v1967 = vpop.permute.xlu0 %1966
      %1969 = vset.pattern.permute.xlu0 5
      %1970 = vperm.xlu0 %1969, %v482
      %v1971 = vpop.permute.xlu0 %1970
      %1973 = vset.pattern.permute.xlu0 5
      %1974 = vperm.xlu0 %1973, %v483
      %v1975 = vpop.permute.xlu0 %1974
      %1977 = vset.pattern.permute.xlu0 5
      %1978 = vperm.xlu0 %1977, %v484
      %v1979 = vpop.permute.xlu0 %1978
      %1981 = vset.pattern.permute.xlu0 5
      %1982 = vperm.xlu0 %1981, %v485
      %v1983 = vpop.permute.xlu0 %1982
      %1985 = vset.pattern.permute.xlu0 5
      %1986 = vperm.xlu0 %1985, %v486
      %v1987 = vpop.permute.xlu0 %1986
      %1989 = vset.pattern.permute.xlu0 5
      %1990 = vperm.xlu0 %1989, %v487
      %v1991 = vpop.permute.xlu0 %1990
      %v2001 = vunpack.c.l.b16 %v1953
      %v2002 = vunpack.c.h.b16 %v1953
      %v2003 = vunpack.c.l.b16 %v1954
      %v2004 = vunpack.c.h.b16 %v1954
      %v2005 = vunpack.c.l.b16 %v1955
      %v2006 = vunpack.c.h.b16 %v1955
      %v2007 = vunpack.c.l.b16 %v1956
      %v2008 = vunpack.c.h.b16 %v1956
      %v2009 = vunpack.c.l.b16 %v1957
      %v2010 = vunpack.c.h.b16 %v1957
      %v2011 = vunpack.c.l.b16 %v1958
      %v2012 = vunpack.c.h.b16 %v1958
      %v2013 = vunpack.c.l.b16 %v1959
      %v2014 = vunpack.c.h.b16 %v1959
      %v2015 = vunpack.c.l.b16 %v1960
      %v2016 = vunpack.c.h.b16 %v1960
      %v2017 = vpack.c.b16 %v2003, %v2001
      %v2018 = vpack.c.b16 %v2004, %v2002
      %v2019 = vpack.c.b16 %v2007, %v2005
      %v2020 = vpack.c.b16 %v2008, %v2006
      %v2021 = vpack.c.b16 %v2011, %v2009
      %v2022 = vpack.c.b16 %v2012, %v2010
      %v2023 = vpack.c.b16 %v2015, %v2013
      %v2024 = vpack.c.b16 %v2016, %v2014
      %v2030 = vsel %vm542, %v2018, 0
      %v2033 = vsel %vm542, %v2020, 0
      %v2036 = vsel %vm542, %v2022, 0
      %v2039 = vsel %vm542, %v2024, 0
      %2041 = vmatprep.subr.bf16.mxu0 0
      %2042 = vmatpush1.bf16.msra.mxu0 %v1948
      %2043 = vmatprep.subr.bf16.mxu0 0
      %2044 = vmatpush1.bf16.msra.mxu0 %v1947
      %2045 = vmatprep.subr.bf16.mxu0 0
      %2046 = vmatpush1.bf16.msra.mxu0 %v1946
      %2047 = vmatprep.subr.bf16.mxu0 0
      %2048 = vmatpush1.bf16.msra.mxu0 %v1945
      %2049 = vmatprep.subr.bf16.mxu0 0
      %2050 = vmatpush1.bf16.msra.mxu0 %v1944
      %2051 = vmatprep.subr.bf16.mxu0 0
      %2052 = vmatpush1.bf16.msra.mxu0 %v1943
      %2053 = vmatprep.subr.bf16.mxu0 0
      %2054 = vmatpush1.bf16.msra.mxu0 %v1942
      %2055 = vmatprep.subr.bf16.mxu0 0
      %2056 = vmatpush1.bf16.msra.mxu0 %v1941
      %2057 = vmatprep.subr.bf16.mxu0 0
      %2058 = vmatpush2.bf16.msra.mxu0 0
      %2059 = vmatprep.subr.bf16.mxu0 0
      %2060 = vmatpush2.bf16.msra.mxu0 0
      %2061 = vmatprep.subr.bf16.mxu0 0
      %2062 = vmatpush2.bf16.msra.mxu0 0
      %2063 = vmatprep.subr.bf16.mxu0 0
      %2064 = vmatpush2.bf16.msra.mxu0 0
      %2065 = vmatprep.subr.bf16.mxu0 0
      %2066 = vmatpush2.bf16.msra.mxu0 %v1952
      %2067 = vmatprep.subr.bf16.mxu0 0
      %2068 = vmatpush2.bf16.msra.mxu0 %v1951
      %2069 = vmatprep.subr.bf16.mxu0 0
      %2070 = vmatpush2.bf16.msra.mxu0 %v1950
      %2071 = vmatprep.subr.bf16.mxu0 0
      %2072 = vmatpush2.bf16.msra.mxu0 %v1949
      %2073 = vmatprep.mubr.bf16.mxu0 %v2030
      %2074 = vmatmul.mubr.bf16.gmra.mxu0 %v2017
      %v2075 = vpop.f32.mrf.mxu0
      %v2076 = vadd.f32 %v1963, %v2075
      %v2077 = vpop.f32.mrf.mxu0
      %v2078 = vpop.f32.mrf.mxu0
      %v2079 = vadd.f32 %v1967, %v2078
      %v2080 = vpop.f32.mrf.mxu0
      %2081 = vmatprep.mubr.bf16.mxu0 %v2033
      %2082 = vmatmul.mubr.bf16.gmra.mxu0 %v2019
      %v2083 = vpop.f32.mrf.mxu0
      %v2084 = vadd.f32 %v1971, %v2083
      %v2085 = vpop.f32.mrf.mxu0
      %v2086 = vpop.f32.mrf.mxu0
      %v2087 = vadd.f32 %v1975, %v2086
      %v2088 = vpop.f32.mrf.mxu0
      %2089 = vmatprep.mubr.bf16.mxu0 %v2036
      %2090 = vmatmul.mubr.bf16.gmra.mxu0 %v2021
      %v2091 = vpop.f32.mrf.mxu0
      %v2092 = vadd.f32 %v1979, %v2091
      %v2093 = vpop.f32.mrf.mxu0
      %v2094 = vpop.f32.mrf.mxu0
      %v2095 = vadd.f32 %v1983, %v2094
      %v2096 = vpop.f32.mrf.mxu0
      %2097 = vmatprep.mubr.bf16.mxu0 %v2039
      %2098 = vmatmul.mubr.bf16.gmra.mxu0 %v2023
      %v2099 = vpop.f32.mrf.mxu0
      %v2100 = vadd.f32 %v1987, %v2099
      %v2101 = vpop.f32.mrf.mxu0
      %v2102 = vpop.f32.mrf.mxu0
      %v2103 = vadd.f32 %v1991, %v2102
      %v2104 = vpop.f32.mrf.mxu0
      %2105 = vdwg.mxu0
      %v2106 = vadd.f32 %v460, %v2076
      %v2107 = vadd.f32 %v461, %v2079
      %v2108 = vadd.f32 %v462, %v2084
      %v2109 = vadd.f32 %v463, %v2087
      %v2110 = vadd.f32 %v464, %v2092
      %v2111 = vadd.f32 %v465, %v2095
      %v2112 = vadd.f32 %v466, %v2100
      %v2113 = vadd.f32 %v467, %v2103
      %v2114 = vmul.f32 %v2106, %v492
      %v2115 = vmul.f32 %v2107, %v492
      %v2116 = vmul.f32 %v2108, %v492
      %v2117 = vmul.f32 %v2109, %v492
      %v2118 = vmul.f32 %v2110, %v492
      %v2119 = vmul.f32 %v2111, %v492
      %v2120 = vmul.f32 %v2112, %v492
      %v2121 = vmul.f32 %v2113, %v492
      %2122 = vadd.xlane.f32.xlu0 %v2114
      %v2123 = vpop.xlane.xlu0 %2122
      %2124 = vadd.xlane.f32.xlu0 %v2115
      %v2125 = vpop.xlane.xlu0 %2124
      %2126 = vadd.xlane.f32.xlu0 %v2116
      %v2127 = vpop.xlane.xlu0 %2126
      %2128 = vadd.xlane.f32.xlu0 %v2117
      %v2129 = vpop.xlane.xlu0 %2128
      %2130 = vadd.xlane.f32.xlu0 %v2118
      %v2131 = vpop.xlane.xlu0 %2130
      %2132 = vadd.xlane.f32.xlu0 %v2119
      %v2133 = vpop.xlane.xlu0 %2132
      %2134 = vadd.xlane.f32.xlu0 %v2120
      %v2135 = vpop.xlane.xlu0 %2134
      %2136 = vadd.xlane.f32.xlu0 %v2121
      %v2137 = vpop.xlane.xlu0 %2136
      %v2138 = vmul.f32 %v2114, %v2114
      %v2139 = vmul.f32 %v2115, %v2115
      %v2140 = vmul.f32 %v2116, %v2116
      %v2141 = vmul.f32 %v2117, %v2117
      %v2142 = vmul.f32 %v2118, %v2118
      %v2143 = vmul.f32 %v2119, %v2119
      %v2144 = vmul.f32 %v2120, %v2120
      %v2145 = vmul.f32 %v2121, %v2121
      %2146 = vadd.xlane.f32.xlu0 %v2138
      %v2147 = vpop.xlane.xlu0 %2146
      %2148 = vadd.xlane.f32.xlu0 %v2139
      %v2149 = vpop.xlane.xlu0 %2148
      %2150 = vadd.xlane.f32.xlu0 %v2140
      %v2151 = vpop.xlane.xlu0 %2150
      %2152 = vadd.xlane.f32.xlu0 %v2141
      %v2153 = vpop.xlane.xlu0 %2152
      %2154 = vadd.xlane.f32.xlu0 %v2142
      %v2155 = vpop.xlane.xlu0 %2154
      %2156 = vadd.xlane.f32.xlu0 %v2143
      %v2157 = vpop.xlane.xlu0 %2156
      %2158 = vadd.xlane.f32.xlu0 %v2144
      %v2159 = vpop.xlane.xlu0 %2158
      %2160 = vadd.xlane.f32.xlu0 %v2145
      %v2161 = vpop.xlane.xlu0 %2160
      %v2162 = vsel %vm533, %v2123, %v2147
      %v2163 = vsel %vm533, %v2125, %v2149
      %v2164 = vsel %vm533, %v2127, %v2151
      %v2165 = vsel %vm533, %v2129, %v2153
      %v2166 = vsel %vm533, %v2131, %v2155
      %v2167 = vsel %vm533, %v2133, %v2157
      %v2168 = vsel %vm533, %v2135, %v2159
      %v2169 = vsel %vm533, %v2137, %v2161
      %2170 = vmatprep.subr.mxu0 0.0
      %2171 = vmatpush1.msra.mxu0 0.0
      %2172 = vmatprep.subr.mxu0 0.0
      %2173 = vmatpush1.msra.mxu0 0.0
      %2174 = vmatprep.subr.mxu0 0.0
      %2175 = vmatpush1.msra.mxu0 0.0
      %2176 = vmatprep.subr.mxu0 0.0
      %2177 = vmatpush1.msra.mxu0 0.0
      %2178 = vmatprep.subr.mxu0 0.0
      %2179 = vmatpush1.msra.mxu0 0.0
      %2180 = vmatprep.subr.mxu0 0.0
      %2181 = vmatpush1.msra.mxu0 0.0
      %2182 = vmatprep.subr.mxu0 0.0
      %2183 = vmatpush1.msra.mxu0 0.0
      %2184 = vmatprep.subr.mxu0 0.0
      %2185 = vmatpush1.msra.mxu0 0.0
      %2186 = vmatprep.subr.mxu0 0.0
      %2187 = vmatpush1.msra.mxu0 %v2169
      %2188 = vmatprep.subr.mxu0 0.0
      %2189 = vmatpush1.msra.mxu0 %v2168
      %2190 = vmatprep.subr.mxu0 0.0
      %2191 = vmatpush1.msra.mxu0 %v2167
      %2192 = vmatprep.subr.mxu0 0.0
      %2193 = vmatpush1.msra.mxu0 %v2166
      %2194 = vmatprep.subr.mxu0 0.0
      %2195 = vmatpush1.msra.mxu0 %v2165
      %2196 = vmatprep.subr.mxu0 0.0
      %2197 = vmatpush1.msra.mxu0 %v2164
      %2198 = vmatprep.subr.mxu0 0.0
      %2199 = vmatpush1.msra.mxu0 %v2163
      %2200 = vmatprep.subr.mxu0 0.0
      %2201 = vmatpush1.msra.mxu0 %v2162
      %2202 = vmatprep.subr.mxu0 0.0
      %2203 = vmatpush2.msra.mxu0 0.0
      %2204 = vmatprep.subr.mxu0 0.0
      %2205 = vmatpush2.msra.mxu0 0.0
      %2206 = vmatprep.subr.mxu0 0.0
      %2207 = vmatpush2.msra.mxu0 0.0
      %2208 = vmatprep.subr.mxu0 0.0
      %2209 = vmatpush2.msra.mxu0 0.0
      %2210 = vmatprep.subr.mxu0 0.0
      %2211 = vmatpush2.msra.mxu0 0.0
      %2212 = vmatprep.subr.mxu0 0.0
      %2213 = vmatpush2.msra.mxu0 0.0
      %2214 = vmatprep.subr.mxu0 0.0
      %2215 = vmatpush2.msra.mxu0 0.0
      %2216 = vmatprep.subr.mxu0 0.0
      %2217 = vmatpush2.msra.mxu0 0.0
      %2218 = vmatprep.subr.mxu0 0.0
      %2219 = vmatpush2.msra.mxu0 0.0
      %2220 = vmatprep.subr.mxu0 0.0
      %2221 = vmatpush2.msra.mxu0 0.0
      %2222 = vmatprep.subr.mxu0 0.0
      %2223 = vmatpush2.msra.mxu0 0.0
      %2224 = vmatprep.subr.mxu0 0.0
      %2225 = vmatpush2.msra.mxu0 0.0
      %2226 = vmatprep.subr.mxu0 0.0
      %2227 = vmatpush2.msra.mxu0 0.0
      %2228 = vmatprep.subr.mxu0 0.0
      %2229 = vmatpush2.msra.mxu0 0.0
      %2230 = vmatprep.subr.mxu0 0.0
      %2231 = vmatpush2.msra.mxu0 0.0
      %2232 = vmatprep.subr.mxu0 0.0
      %2233 = vmatpush2.msra.mxu0 0.0
      %2234 = vmatprep.mubr.f32.mxu0 0.0
      %2235 = vmatmul.mubr.f32.gmra.mxu0 %v544
      %v2236 = vpop.f32.mrf.mxu0
      %v2237 = vadd.f32 0.0, %v2236
      %v2238 = vpop.f32.mrf.mxu0
      %2239 = vmatprep.mubr.f32.mxu0 0.0
      %2240 = vmatmul.mubr.f32.gmra.mxu0 %v547
      %v2241 = vpop.f32.mrf.mxu0
      %v2242 = vadd.f32 0.0, %v2241
      %v2243 = vpop.f32.mrf.mxu0
      %2244 = vmatprep.mubr.f32.mxu0 0.0
      %2245 = vmatmul.mubr.f32.gmra.mxu0 %v550
      %v2246 = vpop.f32.mrf.mxu0
      %v2247 = vadd.f32 0.0, %v2246
      %v2248 = vpop.f32.mrf.mxu0
      %2249 = vmatprep.mubr.f32.mxu0 0.0
      %2250 = vmatmul.mubr.f32.gmra.mxu0 %v553
      %v2251 = vpop.f32.mrf.mxu0
      %v2252 = vadd.f32 0.0, %v2251
      %v2253 = vpop.f32.mrf.mxu0
      %2254 = vdwg.mxu0
      %2255 = vmatprep.subr.mxu0 0.0
      %2256 = vmatpush1.msra.mxu0 0.0
      %2257 = vmatprep.subr.mxu0 0.0
      %2258 = vmatpush1.msra.mxu0 0.0
      %2259 = vmatprep.subr.mxu0 0.0
      %2260 = vmatpush1.msra.mxu0 0.0
      %2261 = vmatprep.subr.mxu0 0.0
      %2262 = vmatpush1.msra.mxu0 0.0
      %2263 = vmatprep.subr.mxu0 0.0
      %2264 = vmatpush1.msra.mxu0 0.0
      %2265 = vmatprep.subr.mxu0 0.0
      %2266 = vmatpush1.msra.mxu0 0.0
      %2267 = vmatprep.subr.mxu0 0.0
      %2268 = vmatpush1.msra.mxu0 0.0
      %2269 = vmatprep.subr.mxu0 0.0
      %2270 = vmatpush1.msra.mxu0 0.0
      %2271 = vmatprep.subr.mxu0 0.0
      %2272 = vmatpush1.msra.mxu0 0.0
      %2273 = vmatprep.subr.mxu0 0.0
      %2274 = vmatpush1.msra.mxu0 0.0
      %2275 = vmatprep.subr.mxu0 0.0
      %2276 = vmatpush1.msra.mxu0 0.0
      %2277 = vmatprep.subr.mxu0 0.0
      %2278 = vmatpush1.msra.mxu0 0.0
      %2279 = vmatprep.subr.mxu0 0.0
      %2280 = vmatpush1.msra.mxu0 %v2252
      %2281 = vmatprep.subr.mxu0 0.0
      %2282 = vmatpush1.msra.mxu0 %v2247
      %2283 = vmatprep.subr.mxu0 0.0
      %2284 = vmatpush1.msra.mxu0 %v2242
      %2285 = vmatprep.subr.mxu0 0.0
      %2286 = vmatpush1.msra.mxu0 %v2237
      %2287 = vmatprep.subr.mxu0 0.0
      %2288 = vmatpush2.msra.mxu0 0.0
      %2289 = vmatprep.subr.mxu0 0.0
      %2290 = vmatpush2.msra.mxu0 0.0
      %2291 = vmatprep.subr.mxu0 0.0
      %2292 = vmatpush2.msra.mxu0 0.0
      %2293 = vmatprep.subr.mxu0 0.0
      %2294 = vmatpush2.msra.mxu0 0.0
      %2295 = vmatprep.subr.mxu0 0.0
      %2296 = vmatpush2.msra.mxu0 0.0
      %2297 = vmatprep.subr.mxu0 0.0
      %2298 = vmatpush2.msra.mxu0 0.0
      %2299 = vmatprep.subr.mxu0 0.0
      %2300 = vmatpush2.msra.mxu0 0.0
      %2301 = vmatprep.subr.mxu0 0.0
      %2302 = vmatpush2.msra.mxu0 0.0
      %2303 = vmatprep.subr.mxu0 0.0
      %2304 = vmatpush2.msra.mxu0 0.0
      %2305 = vmatprep.subr.mxu0 0.0
      %2306 = vmatpush2.msra.mxu0 0.0
      %2307 = vmatprep.subr.mxu0 0.0
      %2308 = vmatpush2.msra.mxu0 0.0
      %2309 = vmatprep.subr.mxu0 0.0
      %2310 = vmatpush2.msra.mxu0 0.0
      %2311 = vmatprep.subr.mxu0 0.0
      %2312 = vmatpush2.msra.mxu0 0.0
      %2313 = vmatprep.subr.mxu0 0.0
      %2314 = vmatpush2.msra.mxu0 0.0
      %2315 = vmatprep.subr.mxu0 0.0
      %2316 = vmatpush2.msra.mxu0 0.0
      %2317 = vmatprep.subr.mxu0 0.0
      %2318 = vmatpush2.msra.mxu0 0.0
      %2319 = vmatprep.mubr.f32.mxu0 0.0
      %2320 = vmatmul.mubr.f32.gmra.mxu0 %v642
      %v2321 = vpop.f32.mrf.mxu0
      %v2322 = vadd.f32 0.0, %v2321
      %v2323 = vpop.f32.mrf.mxu0
      %2324 = vmatprep.mubr.f32.mxu0 0.0
      %2325 = vmatmul.mubr.f32.gmra.mxu0 %v645
      %v2326 = vpop.f32.mrf.mxu0
      %v2327 = vadd.f32 0.0, %v2326
      %v2328 = vpop.f32.mrf.mxu0
      %2329 = vmatprep.mubr.f32.mxu0 0.0
      %2330 = vmatmul.mubr.f32.gmra.mxu0 %v648
      %v2331 = vpop.f32.mrf.mxu0
      %v2332 = vadd.f32 0.0, %v2331
      %v2333 = vpop.f32.mrf.mxu0
      %2334 = vmatprep.mubr.f32.mxu0 0.0
      %2335 = vmatmul.mubr.f32.gmra.mxu0 %v651
      %v2336 = vpop.f32.mrf.mxu0
      %v2337 = vadd.f32 0.0, %v2336
      %v2338 = vpop.f32.mrf.mxu0
      %2339 = vmatprep.mubr.f32.mxu0 0.0
      %2340 = vmatmul.mubr.f32.gmra.mxu0 %v654
      %v2341 = vpop.f32.mrf.mxu0
      %v2342 = vadd.f32 0.0, %v2341
      %v2343 = vpop.f32.mrf.mxu0
      %2344 = vmatprep.mubr.f32.mxu0 0.0
      %2345 = vmatmul.mubr.f32.gmra.mxu0 %v657
      %v2346 = vpop.f32.mrf.mxu0
      %v2347 = vadd.f32 0.0, %v2346
      %v2348 = vpop.f32.mrf.mxu0
      %2349 = vmatprep.mubr.f32.mxu0 0.0
      %2350 = vmatmul.mubr.f32.gmra.mxu0 %v660
      %v2351 = vpop.f32.mrf.mxu0
      %v2352 = vadd.f32 0.0, %v2351
      %v2353 = vpop.f32.mrf.mxu0
      %2354 = vmatprep.mubr.f32.mxu0 0.0
      %2355 = vmatmul.mubr.f32.gmra.mxu0 %v663
      %v2356 = vpop.f32.mrf.mxu0
      %v2357 = vadd.f32 0.0, %v2356
      %v2358 = vpop.f32.mrf.mxu0
      %2359 = vdwg.mxu0
      %v2360 = vmul.f32 %v2322, 0.03125
      %v2361 = vmul.f32 %v2327, 0.03125
      %v2362 = vmul.f32 %v2332, 0.03125
      %v2363 = vmul.f32 %v2337, 0.03125
      %v2364 = vmul.f32 %v2342, 0.03125
      %v2365 = vmul.f32 %v2347, 0.03125
      %v2366 = vmul.f32 %v2352, 0.03125
      %v2367 = vmul.f32 %v2357, 0.03125
      %v2368 = vmul.f32 %v2360, %v2360
      %v2369 = vmul.f32 %v2361, %v2361
      %v2370 = vmul.f32 %v2362, %v2362
      %v2371 = vmul.f32 %v2363, %v2363
      %v2372 = vmul.f32 %v2364, %v2364
      %v2373 = vmul.f32 %v2365, %v2365
      %v2374 = vmul.f32 %v2366, %v2366
      %v2375 = vmul.f32 %v2367, %v2367
      %2384 = vrot.lane.b32.xlu0 %v2368, 1
      %v2385 = vpop.permute.xlu0 %2384
      %2386 = vrot.lane.b32.xlu0 %v2369, 1
      %v2387 = vpop.permute.xlu0 %2386
      %2388 = vrot.lane.b32.xlu0 %v2370, 1
      %v2389 = vpop.permute.xlu0 %2388
      %2390 = vrot.lane.b32.xlu0 %v2371, 1
      %v2391 = vpop.permute.xlu0 %2390
      %2392 = vrot.lane.b32.xlu0 %v2372, 1
      %v2393 = vpop.permute.xlu0 %2392
      %2394 = vrot.lane.b32.xlu0 %v2373, 1
      %v2395 = vpop.permute.xlu0 %2394
      %2396 = vrot.lane.b32.xlu0 %v2374, 1
      %v2397 = vpop.permute.xlu0 %2396
      %2398 = vrot.lane.b32.xlu0 %v2375, 1
      %v2399 = vpop.permute.xlu0 %2398
      %v2408 = vsub.f32 %v2360, %v2385
      %v2409 = vsub.f32 %v2361, %v2387
      %v2410 = vsub.f32 %v2362, %v2389
      %v2411 = vsub.f32 %v2363, %v2391
      %v2412 = vsub.f32 %v2364, %v2393
      %v2413 = vsub.f32 %v2365, %v2395
      %v2414 = vsub.f32 %v2366, %v2397
      %v2415 = vsub.f32 %v2367, %v2399
      %v2416 = vmax.f32 %v2408, 0.0
      %v2417 = vmax.f32 %v2409, 0.0
      %v2418 = vmax.f32 %v2410, 0.0
      %v2419 = vmax.f32 %v2411, 0.0
      %v2420 = vmax.f32 %v2412, 0.0
      %v2421 = vmax.f32 %v2413, 0.0
      %v2422 = vmax.f32 %v2414, 0.0
      %v2423 = vmax.f32 %v2415, 0.0
      %v2424 = vadd.f32 %v2416, 1e-06
      %v2425 = vadd.f32 %v2417, 1e-06
      %v2426 = vadd.f32 %v2418, 1e-06
      %v2427 = vadd.f32 %v2419, 1e-06
      %v2428 = vadd.f32 %v2420, 1e-06
      %v2429 = vadd.f32 %v2421, 1e-06
      %v2430 = vadd.f32 %v2422, 1e-06
      %v2431 = vadd.f32 %v2423, 1e-06
      %v2432 = vrsqrt.pop %v2424
      %v2433 = vrsqrt.pop %v2425
      %v2434 = vrsqrt.pop %v2426
      %v2435 = vrsqrt.pop %v2427
      %v2436 = vrsqrt.pop %v2428
      %v2437 = vrsqrt.pop %v2429
      %v2438 = vrsqrt.pop %v2430
      %v2439 = vrsqrt.pop %v2431
      %2440 = vrot.lane.b32.xlu0 %v480, 123
      %v2441 = vpop.permute.xlu0 %2440
      %2442 = vrot.lane.b32.xlu0 %v481, 123
      %v2443 = vpop.permute.xlu0 %2442
      %2444 = vrot.lane.b32.xlu0 %v482, 123
      %v2445 = vpop.permute.xlu0 %2444
      %2446 = vrot.lane.b32.xlu0 %v483, 123
      %v2447 = vpop.permute.xlu0 %2446
      %2448 = vrot.lane.b32.xlu0 %v484, 123
      %v2449 = vpop.permute.xlu0 %2448
      %2450 = vrot.lane.b32.xlu0 %v485, 123
      %v2451 = vpop.permute.xlu0 %2450
      %2452 = vrot.lane.b32.xlu0 %v486, 123
      %v2453 = vpop.permute.xlu0 %2452
      %2454 = vrot.lane.b32.xlu0 %v487, 123
      %v2455 = vpop.permute.xlu0 %2454
      %v2464 = vmul.f32 %v2432, %v2441
      %v2465 = vmul.f32 %v2433, %v2443
      %v2466 = vmul.f32 %v2434, %v2445
      %v2467 = vmul.f32 %v2435, %v2447
      %v2468 = vmul.f32 %v2436, %v2449
      %v2469 = vmul.f32 %v2437, %v2451
      %v2470 = vmul.f32 %v2438, %v2453
      %v2471 = vmul.f32 %v2439, %v2455
      %2480 = vrot.lane.b32.xlu0 %v2464, 127
      %v2481 = vpop.permute.xlu0 %2480
      %2482 = vrot.lane.b32.xlu0 %v2465, 127
      %v2483 = vpop.permute.xlu0 %2482
      %2484 = vrot.lane.b32.xlu0 %v2466, 127
      %v2485 = vpop.permute.xlu0 %2484
      %2486 = vrot.lane.b32.xlu0 %v2467, 127
      %v2487 = vpop.permute.xlu0 %2486
      %2488 = vrot.lane.b32.xlu0 %v2468, 127
      %v2489 = vpop.permute.xlu0 %2488
      %2490 = vrot.lane.b32.xlu0 %v2469, 127
      %v2491 = vpop.permute.xlu0 %2490
      %2492 = vrot.lane.b32.xlu0 %v2470, 127
      %v2493 = vpop.permute.xlu0 %2492
      %2494 = vrot.lane.b32.xlu0 %v2471, 127
      %v2495 = vpop.permute.xlu0 %2494
      %v2504 = vmul.f32 %v2360, %v2481
      %v2505 = vmul.f32 %v2361, %v2483
      %v2506 = vmul.f32 %v2362, %v2485
      %v2507 = vmul.f32 %v2363, %v2487
      %v2508 = vmul.f32 %v2364, %v2489
      %v2509 = vmul.f32 %v2365, %v2491
      %v2510 = vmul.f32 %v2366, %v2493
      %v2511 = vmul.f32 %v2367, %v2495
      %2520 = vrot.lane.b32.xlu0 %v2504, 7
      %v2521 = vpop.permute.xlu0 %2520
      %2522 = vrot.lane.b32.xlu0 %v2505, 7
      %v2523 = vpop.permute.xlu0 %2522
      %2524 = vrot.lane.b32.xlu0 %v2506, 7
      %v2525 = vpop.permute.xlu0 %2524
      %2526 = vrot.lane.b32.xlu0 %v2507, 7
      %v2527 = vpop.permute.xlu0 %2526
      %2528 = vrot.lane.b32.xlu0 %v2508, 7
      %v2529 = vpop.permute.xlu0 %2528
      %2530 = vrot.lane.b32.xlu0 %v2509, 7
      %v2531 = vpop.permute.xlu0 %2530
      %2532 = vrot.lane.b32.xlu0 %v2510, 7
      %v2533 = vpop.permute.xlu0 %2532
      %2534 = vrot.lane.b32.xlu0 %v2511, 7
      %v2535 = vpop.permute.xlu0 %2534
      %v2544 = vsub.f32 %v480, %v2521
      %v2545 = vsub.f32 %v481, %v2523
      %v2546 = vsub.f32 %v482, %v2525
      %v2547 = vsub.f32 %v483, %v2527
      %v2548 = vsub.f32 %v484, %v2529
      %v2549 = vsub.f32 %v485, %v2531
      %v2550 = vsub.f32 %v486, %v2533
      %v2551 = vsub.f32 %v487, %v2535
      %2552 = vset.pattern.permute.xlu0 1
      %2553 = vperm.xlu0 %2552, %v2464
      %v2554 = vpop.permute.xlu0 %2553
      %2556 = vset.pattern.permute.xlu0 1
      %2557 = vperm.xlu0 %2556, %v2465
      %v2558 = vpop.permute.xlu0 %2557
      %2560 = vset.pattern.permute.xlu0 1
      %2561 = vperm.xlu0 %2560, %v2466
      %v2562 = vpop.permute.xlu0 %2561
      %2564 = vset.pattern.permute.xlu0 1
      %2565 = vperm.xlu0 %2564, %v2467
      %v2566 = vpop.permute.xlu0 %2565
      %2568 = vset.pattern.permute.xlu0 1
      %2569 = vperm.xlu0 %2568, %v2468
      %v2570 = vpop.permute.xlu0 %2569
      %2572 = vset.pattern.permute.xlu0 1
      %2573 = vperm.xlu0 %2572, %v2469
      %v2574 = vpop.permute.xlu0 %2573
      %2576 = vset.pattern.permute.xlu0 1
      %2577 = vperm.xlu0 %2576, %v2470
      %v2578 = vpop.permute.xlu0 %2577
      %2580 = vset.pattern.permute.xlu0 1
      %2581 = vperm.xlu0 %2580, %v2471
      %v2582 = vpop.permute.xlu0 %2581
      %v2584 = vmul.f32 %v2106, %v2554
      %v2585 = vmul.f32 %v2107, %v2558
      %v2586 = vmul.f32 %v2108, %v2562
      %v2587 = vmul.f32 %v2109, %v2566
      %v2588 = vmul.f32 %v2110, %v2570
      %v2589 = vmul.f32 %v2111, %v2574
      %v2590 = vmul.f32 %v2112, %v2578
      %v2591 = vmul.f32 %v2113, %v2582
      %2593 = vset.pattern.permute.xlu0 7
      %2594 = vperm.xlu0 %2593, %v2544
      %v2595 = vpop.permute.xlu0 %2594
      %2598 = vset.pattern.permute.xlu0 7
      %2599 = vperm.xlu0 %2598, %v2545
      %v2600 = vpop.permute.xlu0 %2599
      %2603 = vset.pattern.permute.xlu0 7
      %2604 = vperm.xlu0 %2603, %v2546
      %v2605 = vpop.permute.xlu0 %2604
      %2608 = vset.pattern.permute.xlu0 7
      %2609 = vperm.xlu0 %2608, %v2547
      %v2610 = vpop.permute.xlu0 %2609
      %2613 = vset.pattern.permute.xlu0 7
      %2614 = vperm.xlu0 %2613, %v2548
      %v2615 = vpop.permute.xlu0 %2614
      %2618 = vset.pattern.permute.xlu0 7
      %2619 = vperm.xlu0 %2618, %v2549
      %v2620 = vpop.permute.xlu0 %2619
      %2623 = vset.pattern.permute.xlu0 7
      %2624 = vperm.xlu0 %2623, %v2550
      %v2625 = vpop.permute.xlu0 %2624
      %2628 = vset.pattern.permute.xlu0 7
      %2629 = vperm.xlu0 %2628, %v2551
      %v2630 = vpop.permute.xlu0 %2629
      %v2632 = vadd.f32 %v2584, %v2595
      %v2633 = vadd.f32 %v2585, %v2600
      %v2634 = vadd.f32 %v2586, %v2605
      %v2635 = vadd.f32 %v2587, %v2610
      %v2636 = vadd.f32 %v2588, %v2615
      %v2637 = vadd.f32 %v2589, %v2620
      %v2638 = vadd.f32 %v2590, %v2625
      %v2639 = vadd.f32 %v2591, %v2630
      %v2640 = vpack.c.bf16 %v2633, %v2632
      %v2641 = vpack.c.bf16 %v2635, %v2634
      %v2642 = vpack.c.bf16 %v2637, %v2636
      %v2643 = vpack.c.bf16 %v2639, %v2638
      %2644 = vxpose.xlu0.c.b16.start [1/8] %v2640, 128
      %2645 = vxpose.xlu0.c.b16.cont [2/8] %v2641, 128
      %2646 = vxpose.xlu0.c.b16.cont [3/8] %v2642, 128
      %2647 = vxpose.xlu0.c.b16.cont [4/8] %v2643, 128
      %2648 = vxpose.xlu0.c.b16.cont [5/8] 0, 128
      %2649 = vxpose.xlu0.c.b16.cont [6/8] 0, 128
      %2650 = vxpose.xlu0.c.b16.cont [7/8] 0, 128
      %2651 = vxpose.xlu0.c.b16.end [8/8] 0, 128
      %v2652 = vpop.trf.xlu0
      %v2653 = vpop.trf.xlu0
      %v2654 = vpop.trf.xlu0
      %v2655 = vpop.trf.xlu0
      %v2656 = vpop.trf.xlu0
      %v2657 = vpop.trf.xlu0
      %v2658 = vpop.trf.xlu0
      %v2659 = vpop.trf.xlu0
      %v2660 = vld [vmem:[%s7] sm:$0xf]
      %v2661 = vld [vmem:[%s7 + $0x4] sm:$0xf]
      %v2662 = vld [vmem:[%s7 + $0x8] sm:$0xf]
      %v2663 = vld [vmem:[%s7 + $0xc] sm:$0xf]
      %v2664 = vld [vmem:[%s7 + $0x10] sm:$0xf]
      %v2665 = vld [vmem:[%s7 + $0x14] sm:$0xf]
      %v2666 = vld [vmem:[%s7 + $0x18] sm:$0xf]
      %v2667 = vld [vmem:[%s7 + $0x1c] sm:$0xf]
      %v2668 = vld [vmem:[%s7 + $0x20] sm:$0xf]
      %v2669 = vld [vmem:[%s7 + $0x24] sm:$0xf]
      %v2670 = vld [vmem:[%s7 + $0x28] sm:$0xf]
      %v2671 = vld [vmem:[%s7 + $0x2c] sm:$0xf]
      %v2672 = vld [vmem:[%s7 + $0x30] sm:$0xf]
      %v2673 = vld [vmem:[%s7 + $0x34] sm:$0xf]
      %v2674 = vld [vmem:[%s7 + $0x38] sm:$0xf]
      %v2675 = vld [vmem:[%s7 + $0x3c] sm:$0xf]
      %v2676 = vld [vmem:[%s8] sm:$0xff]
      %v2677 = vld [vmem:[%s8 + $0x8] sm:$0xff]
      %v2678 = vld [vmem:[%s8 + $0x10] sm:$0xff]
      %v2679 = vld [vmem:[%s8 + $0x18] sm:$0xff]
      %v2680 = vld [vmem:[%s8 + $0x20] sm:$0xff]
      %v2681 = vld [vmem:[%s8 + $0x28] sm:$0xff]
      %v2682 = vld [vmem:[%s8 + $0x30] sm:$0xff]
      %v2683 = vld [vmem:[%s8 + $0x38] sm:$0xff]
      %v2684 = vld [vmem:[%s8 + $0x40] sm:$0xff]
      %v2685 = vld [vmem:[%s8 + $0x48] sm:$0xff]
      %v2686 = vld [vmem:[%s8 + $0x50] sm:$0xff]
      %v2687 = vld [vmem:[%s8 + $0x58] sm:$0xff]
      %v2688 = vld [vmem:[%s8 + $0x60] sm:$0xff]
      %v2689 = vld [vmem:[%s8 + $0x68] sm:$0xff]
      %v2690 = vld [vmem:[%s8 + $0x70] sm:$0xff]
      %v2691 = vld [vmem:[%s8 + $0x78] sm:$0xff]
      %2693 = vset.pattern.permute.xlu0 0
      %2694 = vperm.xlu0 %2693, %v2676
      %v2695 = vpop.permute.xlu0 %2694
      %2698 = vset.pattern.permute.xlu0 0
      %2699 = vperm.xlu0 %2698, %v2677
      %v2700 = vpop.permute.xlu0 %2699
      %2703 = vset.pattern.permute.xlu0 0
      %2704 = vperm.xlu0 %2703, %v2678
      %v2705 = vpop.permute.xlu0 %2704
      %2708 = vset.pattern.permute.xlu0 0
      %2709 = vperm.xlu0 %2708, %v2679
      %v2710 = vpop.permute.xlu0 %2709
      %2713 = vset.pattern.permute.xlu0 0
      %2714 = vperm.xlu0 %2713, %v2680
      %v2715 = vpop.permute.xlu0 %2714
      %2718 = vset.pattern.permute.xlu0 0
      %2719 = vperm.xlu0 %2718, %v2681
      %v2720 = vpop.permute.xlu0 %2719
      %2723 = vset.pattern.permute.xlu0 0
      %2724 = vperm.xlu0 %2723, %v2682
      %v2725 = vpop.permute.xlu0 %2724
      %2728 = vset.pattern.permute.xlu0 0
      %2729 = vperm.xlu0 %2728, %v2683
      %v2730 = vpop.permute.xlu0 %2729
      %2733 = vset.pattern.permute.xlu0 0
      %2734 = vperm.xlu0 %2733, %v2684
      %v2735 = vpop.permute.xlu0 %2734
      %2738 = vset.pattern.permute.xlu0 0
      %2739 = vperm.xlu0 %2738, %v2685
      %v2740 = vpop.permute.xlu0 %2739
      %2743 = vset.pattern.permute.xlu0 0
      %2744 = vperm.xlu0 %2743, %v2686
      %v2745 = vpop.permute.xlu0 %2744
      %2748 = vset.pattern.permute.xlu0 0
      %2749 = vperm.xlu0 %2748, %v2687
      %v2750 = vpop.permute.xlu0 %2749
      %2753 = vset.pattern.permute.xlu0 0
      %2754 = vperm.xlu0 %2753, %v2688
      %v2755 = vpop.permute.xlu0 %2754
      %2758 = vset.pattern.permute.xlu0 0
      %2759 = vperm.xlu0 %2758, %v2689
      %v2760 = vpop.permute.xlu0 %2759
      %2763 = vset.pattern.permute.xlu0 0
      %2764 = vperm.xlu0 %2763, %v2690
      %v2765 = vpop.permute.xlu0 %2764
      %2768 = vset.pattern.permute.xlu0 0
      %2769 = vperm.xlu0 %2768, %v2691
      %v2770 = vpop.permute.xlu0 %2769
      %v2788 = vunpack.c.l.b16 %v2660
      %v2789 = vunpack.c.l.b16 %v2661
      %v2790 = vunpack.c.l.b16 %v2662
      %v2791 = vunpack.c.l.b16 %v2663
      %v2792 = vunpack.c.l.b16 %v2664
      %v2793 = vunpack.c.l.b16 %v2665
      %v2794 = vunpack.c.l.b16 %v2666
      %v2795 = vunpack.c.l.b16 %v2667
      %v2796 = vunpack.c.l.b16 %v2668
      %v2797 = vunpack.c.l.b16 %v2669
      %v2798 = vunpack.c.l.b16 %v2670
      %v2799 = vunpack.c.l.b16 %v2671
      %v2800 = vunpack.c.l.b16 %v2672
      %v2801 = vunpack.c.l.b16 %v2673
      %v2802 = vunpack.c.l.b16 %v2674
      %v2803 = vunpack.c.l.b16 %v2675
      %v2804 = vpack.c.b16 %v2789, %v2788
      %v2805 = vpack.c.b16 %v2791, %v2790
      %v2806 = vpack.c.b16 %v2793, %v2792
      %v2807 = vpack.c.b16 %v2795, %v2794
      %v2808 = vpack.c.b16 %v2797, %v2796
      %v2809 = vpack.c.b16 %v2799, %v2798
      %v2810 = vpack.c.b16 %v2801, %v2800
      %v2811 = vpack.c.b16 %v2803, %v2802
      %v2813 = vsel %vm542, %v2804, 0
      %v2816 = vsel %vm542, %v2805, 0
      %v2819 = vsel %vm542, %v2806, 0
      %v2822 = vsel %vm542, %v2807, 0
      %v2825 = vsel %vm542, %v2808, 0
      %v2828 = vsel %vm542, %v2809, 0
      %v2831 = vsel %vm542, %v2810, 0
      %v2834 = vsel %vm542, %v2811, 0
      %2836 = vmatprep.subr.bf16.mxu0 0
      %2837 = vmatpush1.bf16.msra.mxu0 0
      %2838 = vmatprep.subr.bf16.mxu0 0
      %2839 = vmatpush1.bf16.msra.mxu0 0
      %2840 = vmatprep.subr.bf16.mxu0 0
      %2841 = vmatpush1.bf16.msra.mxu0 0
      %2842 = vmatprep.subr.bf16.mxu0 0
      %2843 = vmatpush1.bf16.msra.mxu0 0
      %2844 = vmatprep.subr.bf16.mxu0 0
      %2845 = vmatpush1.bf16.msra.mxu0 %v2643
      %2846 = vmatprep.subr.bf16.mxu0 0
      %2847 = vmatpush1.bf16.msra.mxu0 %v2642
      %2848 = vmatprep.subr.bf16.mxu0 0
      %2849 = vmatpush1.bf16.msra.mxu0 %v2641
      %2850 = vmatprep.subr.bf16.mxu0 0
      %2851 = vmatpush1.bf16.msra.mxu0 %v2640
      %2852 = vmatprep.subr.bf16.mxu0 0
      %2853 = vmatpush2.bf16.msra.mxu0 0
      %2854 = vmatprep.subr.bf16.mxu0 0
      %2855 = vmatpush2.bf16.msra.mxu0 0
      %2856 = vmatprep.subr.bf16.mxu0 0
      %2857 = vmatpush2.bf16.msra.mxu0 0
      %2858 = vmatprep.subr.bf16.mxu0 0
      %2859 = vmatpush2.bf16.msra.mxu0 0
      %2860 = vmatprep.subr.bf16.mxu0 0
      %2861 = vmatpush2.bf16.msra.mxu0 0
      %2862 = vmatprep.subr.bf16.mxu0 0
      %2863 = vmatpush2.bf16.msra.mxu0 0
      %2864 = vmatprep.subr.bf16.mxu0 0
      %2865 = vmatpush2.bf16.msra.mxu0 0
      %2866 = vmatprep.subr.bf16.mxu0 0
      %2867 = vmatpush2.bf16.msra.mxu0 0
      %2868 = vmatprep.mubr.bf16.mxu0 0
      %2869 = vmatmul.mubr.bf16.gmra.mxu0 %v2813
      %v2870 = vpop.f32.mrf.mxu0
      %v2871 = vadd.f32 %v2695, %v2870
      %v2872 = vpop.f32.mrf.mxu0
      %v2873 = vpop.f32.mrf.mxu0
      %v2874 = vadd.f32 %v2700, %v2873
      %v2875 = vpop.f32.mrf.mxu0
      %2876 = vmatprep.mubr.bf16.mxu0 0
      %2877 = vmatmul.mubr.bf16.gmra.mxu0 %v2816
      %v2878 = vpop.f32.mrf.mxu0
      %v2879 = vadd.f32 %v2705, %v2878
      %v2880 = vpop.f32.mrf.mxu0
      %v2881 = vpop.f32.mrf.mxu0
      %v2882 = vadd.f32 %v2710, %v2881
      %v2883 = vpop.f32.mrf.mxu0
      %2884 = vmatprep.mubr.bf16.mxu0 0
      %2885 = vmatmul.mubr.bf16.gmra.mxu0 %v2819
      %v2886 = vpop.f32.mrf.mxu0
      %v2887 = vadd.f32 %v2715, %v2886
      %v2888 = vpop.f32.mrf.mxu0
      %v2889 = vpop.f32.mrf.mxu0
      %v2890 = vadd.f32 %v2720, %v2889
      %v2891 = vpop.f32.mrf.mxu0
      %2892 = vmatprep.mubr.bf16.mxu0 0
      %2893 = vmatmul.mubr.bf16.gmra.mxu0 %v2822
      %v2894 = vpop.f32.mrf.mxu0
      %v2895 = vadd.f32 %v2725, %v2894
      %v2896 = vpop.f32.mrf.mxu0
      %v2897 = vpop.f32.mrf.mxu0
      %v2898 = vadd.f32 %v2730, %v2897
      %v2899 = vpop.f32.mrf.mxu0
      %2900 = vmatprep.mubr.bf16.mxu0 0
      %2901 = vmatmul.mubr.bf16.gmra.mxu0 %v2825
      %v2902 = vpop.f32.mrf.mxu0
      %v2903 = vadd.f32 %v2735, %v2902
      %v2904 = vpop.f32.mrf.mxu0
      %v2905 = vpop.f32.mrf.mxu0
      %v2906 = vadd.f32 %v2740, %v2905
      %v2907 = vpop.f32.mrf.mxu0
      %2908 = vmatprep.mubr.bf16.mxu0 0
      %2909 = vmatmul.mubr.bf16.gmra.mxu0 %v2828
      %v2910 = vpop.f32.mrf.mxu0
      %v2911 = vadd.f32 %v2745, %v2910
      %v2912 = vpop.f32.mrf.mxu0
      %v2913 = vpop.f32.mrf.mxu0
      %v2914 = vadd.f32 %v2750, %v2913
      %v2915 = vpop.f32.mrf.mxu0
      %2916 = vmatprep.mubr.bf16.mxu0 0
      %2917 = vmatmul.mubr.bf16.gmra.mxu0 %v2831
      %v2918 = vpop.f32.mrf.mxu0
      %v2919 = vadd.f32 %v2755, %v2918
      %v2920 = vpop.f32.mrf.mxu0
      %v2921 = vpop.f32.mrf.mxu0
      %v2922 = vadd.f32 %v2760, %v2921
      %v2923 = vpop.f32.mrf.mxu0
      %2924 = vmatprep.mubr.bf16.mxu0 0
      %2925 = vmatmul.mubr.bf16.gmra.mxu0 %v2834
      %v2926 = vpop.f32.mrf.mxu0
      %v2927 = vadd.f32 %v2765, %v2926
      %v2928 = vpop.f32.mrf.mxu0
      %v2929 = vpop.f32.mrf.mxu0
      %v2930 = vadd.f32 %v2770, %v2929
      %v2931 = vpop.f32.mrf.mxu0
      %2932 = vdwg.mxu0
      %v2933 = vpack.c.bf16 %v2874, %v2871
      %v2934 = vpack.c.bf16 %v2882, %v2879
      %v2935 = vpack.c.bf16 %v2890, %v2887
      %v2936 = vpack.c.bf16 %v2898, %v2895
      %v2937 = vpack.c.bf16 %v2906, %v2903
      %v2938 = vpack.c.bf16 %v2914, %v2911
      %v2939 = vpack.c.bf16 %v2922, %v2919
      %v2940 = vpack.c.bf16 %v2930, %v2927
      %v2941 = vld [vmem:[%s9] sm:$0xf]
      %v2942 = vld [vmem:[%s9 + $0x4] sm:$0xf]
      %v2943 = vld [vmem:[%s9 + $0x8] sm:$0xf]
      %v2944 = vld [vmem:[%s9 + $0xc] sm:$0xf]
      %v2945 = vld [vmem:[%s9 + $0x10] sm:$0xf]
      %v2946 = vld [vmem:[%s9 + $0x14] sm:$0xf]
      %v2947 = vld [vmem:[%s9 + $0x18] sm:$0xf]
      %v2948 = vld [vmem:[%s9 + $0x1c] sm:$0xf]
      %v2949 = vld [vmem:[%s10] sm:$0x1]
      %v2951 = vlaneseq
      %v2952 = vshrl.u32 %v2951, 7
      %v2953 = vsub.s32 0, %v2952
      %v2954 = vrot.slane %v2949, %v2953
      %v2964 = vunpack.c.l.b16 %v2941
      %v2965 = vunpack.c.l.b16 %v2942
      %v2966 = vunpack.c.l.b16 %v2943
      %v2967 = vunpack.c.l.b16 %v2944
      %v2968 = vunpack.c.l.b16 %v2945
      %v2969 = vunpack.c.l.b16 %v2946
      %v2970 = vunpack.c.l.b16 %v2947
      %v2971 = vunpack.c.l.b16 %v2948
      %v2972 = vpack.c.b16 %v2965, %v2964
      %v2973 = vpack.c.b16 %v2967, %v2966
      %v2974 = vpack.c.b16 %v2969, %v2968
      %v2975 = vpack.c.b16 %v2971, %v2970
      %v2981 = vsel %vm542, %v2652, 0
      %v2984 = vsel %vm542, %v2653, 0
      %v2987 = vsel %vm542, %v2654, 0
      %v2990 = vsel %vm542, %v2655, 0
      %v2993 = vsel %vm542, %v2656, 0
      %v2996 = vsel %vm542, %v2657, 0
      %v2999 = vsel %vm542, %v2658, 0
      %v3002 = vsel %vm542, %v2659, 0
      %3004 = vmatprep.subr.bf16.mxu0 0
      %3005 = vmatpush1.bf16.msra.mxu0 0
      %3006 = vmatprep.subr.bf16.mxu0 0
      %3007 = vmatpush1.bf16.msra.mxu0 0
      %3008 = vmatprep.subr.bf16.mxu0 0
      %3009 = vmatpush1.bf16.msra.mxu0 0
      %3010 = vmatprep.subr.bf16.mxu0 0
      %3011 = vmatpush1.bf16.msra.mxu0 0
      %3012 = vmatprep.subr.bf16.mxu0 0
      %3013 = vmatpush1.bf16.msra.mxu0 %v2975
      %3014 = vmatprep.subr.bf16.mxu0 0
      %3015 = vmatpush1.bf16.msra.mxu0 %v2974
      %3016 = vmatprep.subr.bf16.mxu0 0
      %3017 = vmatpush1.bf16.msra.mxu0 %v2973
      %3018 = vmatprep.subr.bf16.mxu0 0
      %3019 = vmatpush1.bf16.msra.mxu0 %v2972
      %3020 = vmatprep.subr.bf16.mxu0 0
      %3021 = vmatpush2.bf16.msra.mxu0 0
      %3022 = vmatprep.subr.bf16.mxu0 0
      %3023 = vmatpush2.bf16.msra.mxu0 0
      %3024 = vmatprep.subr.bf16.mxu0 0
      %3025 = vmatpush2.bf16.msra.mxu0 0
      %3026 = vmatprep.subr.bf16.mxu0 0
      %3027 = vmatpush2.bf16.msra.mxu0 0
      %3028 = vmatprep.subr.bf16.mxu0 0
      %3029 = vmatpush2.bf16.msra.mxu0 0
      %3030 = vmatprep.subr.bf16.mxu0 0
      %3031 = vmatpush2.bf16.msra.mxu0 0
      %3032 = vmatprep.subr.bf16.mxu0 0
      %3033 = vmatpush2.bf16.msra.mxu0 0
      %3034 = vmatprep.subr.bf16.mxu0 0
      %3035 = vmatpush2.bf16.msra.mxu0 0
      %3036 = vmatprep.mubr.bf16.mxu0 0
      %3037 = vmatmul.mubr.bf16.gmra.mxu0 %v2981
      %v3038 = vpop.f32.mrf.mxu0
      %v3039 = vadd.f32 %v2954, %v3038
      %v3040 = vpop.f32.mrf.mxu0
      %v3041 = vpop.f32.mrf.mxu0
      %v3042 = vadd.f32 %v2954, %v3041
      %v3043 = vpop.f32.mrf.mxu0
      %3044 = vmatprep.mubr.bf16.mxu0 0
      %3045 = vmatmul.mubr.bf16.gmra.mxu0 %v2984
      %v3046 = vpop.f32.mrf.mxu0
      %v3047 = vadd.f32 %v2954, %v3046
      %v3048 = vpop.f32.mrf.mxu0
      %v3049 = vpop.f32.mrf.mxu0
      %v3050 = vadd.f32 %v2954, %v3049
      %v3051 = vpop.f32.mrf.mxu0
      %3052 = vmatprep.mubr.bf16.mxu0 0
      %3053 = vmatmul.mubr.bf16.gmra.mxu0 %v2987
      %v3054 = vpop.f32.mrf.mxu0
      %v3055 = vadd.f32 %v2954, %v3054
      %v3056 = vpop.f32.mrf.mxu0
      %v3057 = vpop.f32.mrf.mxu0
      %v3058 = vadd.f32 %v2954, %v3057
      %v3059 = vpop.f32.mrf.mxu0
      %3060 = vmatprep.mubr.bf16.mxu0 0
      %3061 = vmatmul.mubr.bf16.gmra.mxu0 %v2990
      %v3062 = vpop.f32.mrf.mxu0
      %v3063 = vadd.f32 %v2954, %v3062
      %v3064 = vpop.f32.mrf.mxu0
      %v3065 = vpop.f32.mrf.mxu0
      %v3066 = vadd.f32 %v2954, %v3065
      %v3067 = vpop.f32.mrf.mxu0
      %3068 = vmatprep.mubr.bf16.mxu0 0
      %3069 = vmatmul.mubr.bf16.gmra.mxu0 %v2993
      %v3070 = vpop.f32.mrf.mxu0
      %v3071 = vadd.f32 %v2954, %v3070
      %v3072 = vpop.f32.mrf.mxu0
      %v3073 = vpop.f32.mrf.mxu0
      %v3074 = vadd.f32 %v2954, %v3073
      %v3075 = vpop.f32.mrf.mxu0
      %3076 = vmatprep.mubr.bf16.mxu0 0
      %3077 = vmatmul.mubr.bf16.gmra.mxu0 %v2996
      %v3078 = vpop.f32.mrf.mxu0
      %v3079 = vadd.f32 %v2954, %v3078
      %v3080 = vpop.f32.mrf.mxu0
      %v3081 = vpop.f32.mrf.mxu0
      %v3082 = vadd.f32 %v2954, %v3081
      %v3083 = vpop.f32.mrf.mxu0
      %3084 = vmatprep.mubr.bf16.mxu0 0
      %3085 = vmatmul.mubr.bf16.gmra.mxu0 %v2999
      %v3086 = vpop.f32.mrf.mxu0
      %v3087 = vadd.f32 %v2954, %v3086
      %v3088 = vpop.f32.mrf.mxu0
      %v3089 = vpop.f32.mrf.mxu0
      %v3090 = vadd.f32 %v2954, %v3089
      %v3091 = vpop.f32.mrf.mxu0
      %3092 = vmatprep.mubr.bf16.mxu0 0
      %3093 = vmatmul.mubr.bf16.gmra.mxu0 %v3002
      %v3094 = vpop.f32.mrf.mxu0
      %v3095 = vadd.f32 %v2954, %v3094
      %v3096 = vpop.f32.mrf.mxu0
      %v3097 = vpop.f32.mrf.mxu0
      %v3098 = vadd.f32 %v2954, %v3097
      %v3099 = vpop.f32.mrf.mxu0
      %3100 = vdwg.mxu0
      %v3101 = vpack.c.bf16 %v3042, %v3039
      %v3102 = vpack.c.bf16 %v3050, %v3047
      %v3103 = vpack.c.bf16 %v3058, %v3055
      %v3104 = vpack.c.bf16 %v3066, %v3063
      %v3105 = vpack.c.bf16 %v3074, %v3071
      %v3106 = vpack.c.bf16 %v3082, %v3079
      %v3107 = vpack.c.bf16 %v3090, %v3087
      %v3108 = vpack.c.bf16 %v3098, %v3095
      %v3110 = vsel %vm542, %v3101, 0
      %v3113 = vsel %vm542, %v3102, 0
      %v3116 = vsel %vm542, %v3103, 0
      %v3119 = vsel %vm542, %v3104, 0
      %v3122 = vsel %vm542, %v3105, 0
      %v3125 = vsel %vm542, %v3106, 0
      %v3128 = vsel %vm542, %v3107, 0
      %v3131 = vsel %vm542, %v3108, 0
      %3133 = vmatprep.subr.bf16.mxu0 0
      %3134 = vmatpush1.bf16.msra.mxu0 0
      %3135 = vmatprep.subr.bf16.mxu0 0
      %3136 = vmatpush1.bf16.msra.mxu0 0
      %3137 = vmatprep.subr.bf16.mxu0 0
      %3138 = vmatpush1.bf16.msra.mxu0 0
      %3139 = vmatprep.subr.bf16.mxu0 0
      %3140 = vmatpush1.bf16.msra.mxu0 0
      %3141 = vmatprep.subr.bf16.mxu0 0
      %3142 = vmatpush1.bf16.msra.mxu0 %v2936
      %3143 = vmatprep.subr.bf16.mxu0 0
      %3144 = vmatpush1.bf16.msra.mxu0 %v2935
      %3145 = vmatprep.subr.bf16.mxu0 0
      %3146 = vmatpush1.bf16.msra.mxu0 %v2934
      %3147 = vmatprep.subr.bf16.mxu0 0
      %3148 = vmatpush1.bf16.msra.mxu0 %v2933
      %3149 = vmatprep.subr.bf16.mxu0 0
      %3150 = vmatpush2.bf16.msra.mxu0 0
      %3151 = vmatprep.subr.bf16.mxu0 0
      %3152 = vmatpush2.bf16.msra.mxu0 0
      %3153 = vmatprep.subr.bf16.mxu0 0
      %3154 = vmatpush2.bf16.msra.mxu0 0
      %3155 = vmatprep.subr.bf16.mxu0 0
      %3156 = vmatpush2.bf16.msra.mxu0 0
      %3157 = vmatprep.subr.bf16.mxu0 0
      %3158 = vmatpush2.bf16.msra.mxu0 0
      %3159 = vmatprep.subr.bf16.mxu0 0
      %3160 = vmatpush2.bf16.msra.mxu0 0
      %3161 = vmatprep.subr.bf16.mxu0 0
      %3162 = vmatpush2.bf16.msra.mxu0 0
      %3163 = vmatprep.subr.bf16.mxu0 0
      %3164 = vmatpush2.bf16.msra.mxu0 0
      %3165 = vmatprep.mubr.bf16.mxu0 0
      %3166 = vmatmul.mubr.bf16.gmra.mxu0 %v3110
      %v3167 = vpop.f32.mrf.mxu0
      %v3168 = vadd.f32 0.0, %v3167
      %v3169 = vpop.f32.mrf.mxu0
      %v3170 = vpop.f32.mrf.mxu0
      %v3171 = vadd.f32 0.0, %v3170
      %v3172 = vpop.f32.mrf.mxu0
      %3173 = vmatprep.mubr.bf16.mxu0 0
      %3174 = vmatmul.mubr.bf16.gmra.mxu0 %v3113
      %v3175 = vpop.f32.mrf.mxu0
      %v3176 = vadd.f32 0.0, %v3175
      %v3177 = vpop.f32.mrf.mxu0
      %v3178 = vpop.f32.mrf.mxu0
      %v3179 = vadd.f32 0.0, %v3178
      %v3180 = vpop.f32.mrf.mxu0
      %3181 = vmatprep.mubr.bf16.mxu0 0
      %3182 = vmatmul.mubr.bf16.gmra.mxu0 %v3116
      %v3183 = vpop.f32.mrf.mxu0
      %v3184 = vadd.f32 0.0, %v3183
      %v3185 = vpop.f32.mrf.mxu0
      %v3186 = vpop.f32.mrf.mxu0
      %v3187 = vadd.f32 0.0, %v3186
      %v3188 = vpop.f32.mrf.mxu0
      %3189 = vmatprep.mubr.bf16.mxu0 0
      %3190 = vmatmul.mubr.bf16.gmra.mxu0 %v3119
      %v3191 = vpop.f32.mrf.mxu0
      %v3192 = vadd.f32 0.0, %v3191
      %v3193 = vpop.f32.mrf.mxu0
      %v3194 = vpop.f32.mrf.mxu0
      %v3195 = vadd.f32 0.0, %v3194
      %v3196 = vpop.f32.mrf.mxu0
      %3197 = vmatprep.mubr.bf16.mxu0 0
      %3198 = vmatmul.mubr.bf16.gmra.mxu0 %v3122
      %v3199 = vpop.f32.mrf.mxu0
      %v3200 = vadd.f32 0.0, %v3199
      %v3201 = vpop.f32.mrf.mxu0
      %v3202 = vpop.f32.mrf.mxu0
      %v3203 = vadd.f32 0.0, %v3202
      %v3204 = vpop.f32.mrf.mxu0
      %3205 = vmatprep.mubr.bf16.mxu0 0
      %3206 = vmatmul.mubr.bf16.gmra.mxu0 %v3125
      %v3207 = vpop.f32.mrf.mxu0
      %v3208 = vadd.f32 0.0, %v3207
      %v3209 = vpop.f32.mrf.mxu0
      %v3210 = vpop.f32.mrf.mxu0
      %v3211 = vadd.f32 0.0, %v3210
      %v3212 = vpop.f32.mrf.mxu0
      %3213 = vmatprep.mubr.bf16.mxu0 0
      %3214 = vmatmul.mubr.bf16.gmra.mxu0 %v3128
      %v3215 = vpop.f32.mrf.mxu0
      %v3216 = vadd.f32 0.0, %v3215
      %v3217 = vpop.f32.mrf.mxu0
      %v3218 = vpop.f32.mrf.mxu0
      %v3219 = vadd.f32 0.0, %v3218
      %v3220 = vpop.f32.mrf.mxu0
      %3221 = vmatprep.mubr.bf16.mxu0 0
      %3222 = vmatmul.mubr.bf16.gmra.mxu0 %v3131
      %v3223 = vpop.f32.mrf.mxu0
      %v3224 = vadd.f32 0.0, %v3223
      %v3225 = vpop.f32.mrf.mxu0
      %v3226 = vpop.f32.mrf.mxu0
      %v3227 = vadd.f32 0.0, %v3226
      %v3228 = vpop.f32.mrf.mxu0
      %3229 = vdwg.mxu0
      %v3230 = vmul.f32 %v3168, 0.125
      %v3231 = vmul.f32 %v3171, 0.125
      %v3232 = vmul.f32 %v3176, 0.125
      %v3233 = vmul.f32 %v3179, 0.125
      %v3234 = vmul.f32 %v3184, 0.125
      %v3235 = vmul.f32 %v3187, 0.125
      %v3236 = vmul.f32 %v3192, 0.125
      %v3237 = vmul.f32 %v3195, 0.125
      %v3238 = vmul.f32 %v3200, 0.125
      %v3239 = vmul.f32 %v3203, 0.125
      %v3240 = vmul.f32 %v3208, 0.125
      %v3241 = vmul.f32 %v3211, 0.125
      %v3242 = vmul.f32 %v3216, 0.125
      %v3243 = vmul.f32 %v3219, 0.125
      %v3244 = vmul.f32 %v3224, 0.125
      %v3245 = vmul.f32 %v3227, 0.125
      %v3246 = vlaneseq
      %v3247 = vshrl.u32 %v3246, 7
      %v3248 = vadd.s32 %v3247, 8
      %v3249 = vadd.s32 %v3247, 16
      %v3250 = vadd.s32 %v3247, 24
      %v3251 = vadd.s32 %v3247, 32
      %v3252 = vadd.s32 %v3247, 40
      %v3253 = vadd.s32 %v3247, 48
      %v3254 = vadd.s32 %v3247, 56
      %v3255 = vadd.s32 %v3247, 64
      %v3256 = vadd.s32 %v3247, 72
      %v3257 = vadd.s32 %v3247, 80
      %v3258 = vadd.s32 %v3247, 88
      %v3259 = vadd.s32 %v3247, 96
      %v3260 = vadd.s32 %v3247, 104
      %v3261 = vadd.s32 %v3247, 112
      %v3262 = vadd.s32 %v3247, 120
      %vm3263 = vcmp.lt.s32.totalorder %v3247, 16
      %vm3264 = vcmp.lt.s32.totalorder %v3248, 16
      %vm3265 = vcmp.lt.s32.totalorder %v3249, 16
      %vm3266 = vcmp.lt.s32.totalorder %v3250, 16
      %vm3267 = vcmp.lt.s32.totalorder %v3251, 16
      %vm3268 = vcmp.lt.s32.totalorder %v3252, 16
      %vm3269 = vcmp.lt.s32.totalorder %v3253, 16
      %vm3270 = vcmp.lt.s32.totalorder %v3254, 16
      %vm3271 = vcmp.lt.s32.totalorder %v3255, 16
      %vm3272 = vcmp.lt.s32.totalorder %v3256, 16
      %vm3273 = vcmp.lt.s32.totalorder %v3257, 16
      %vm3274 = vcmp.lt.s32.totalorder %v3258, 16
      %vm3275 = vcmp.lt.s32.totalorder %v3259, 16
      %vm3276 = vcmp.lt.s32.totalorder %v3260, 16
      %vm3277 = vcmp.lt.s32.totalorder %v3261, 16
      %vm3278 = vcmp.lt.s32.totalorder %v3262, 16
      %v3279 = vsel %vm3263, 1, 0
      %v3280 = vsel %vm3264, 1, 0
      %v3281 = vsel %vm3265, 1, 0
      %v3282 = vsel %vm3266, 1, 0
      %v3283 = vsel %vm3267, 1, 0
      %v3284 = vsel %vm3268, 1, 0
      %v3285 = vsel %vm3269, 1, 0
      %v3286 = vsel %vm3270, 1, 0
      %v3287 = vsel %vm3271, 1, 0
      %v3288 = vsel %vm3272, 1, 0
      %v3289 = vsel %vm3273, 1, 0
      %v3290 = vsel %vm3274, 1, 0
      %v3291 = vsel %vm3275, 1, 0
      %v3292 = vsel %vm3276, 1, 0
      %v3293 = vsel %vm3277, 1, 0
      %v3294 = vsel %vm3278, 1, 0
      %vm3295 = vcmp.eq.s32.totalorder %v3279, 1
      %vm3296 = vcmp.eq.s32.totalorder %v3280, 1
      %vm3297 = vcmp.eq.s32.totalorder %v3281, 1
      %vm3298 = vcmp.eq.s32.totalorder %v3282, 1
      %vm3299 = vcmp.eq.s32.totalorder %v3283, 1
      %vm3300 = vcmp.eq.s32.totalorder %v3284, 1
      %vm3301 = vcmp.eq.s32.totalorder %v3285, 1
      %vm3302 = vcmp.eq.s32.totalorder %v3286, 1
      %vm3303 = vcmp.eq.s32.totalorder %v3287, 1
      %vm3304 = vcmp.eq.s32.totalorder %v3288, 1
      %vm3305 = vcmp.eq.s32.totalorder %v3289, 1
      %vm3306 = vcmp.eq.s32.totalorder %v3290, 1
      %vm3307 = vcmp.eq.s32.totalorder %v3291, 1
      %vm3308 = vcmp.eq.s32.totalorder %v3292, 1
      %vm3309 = vcmp.eq.s32.totalorder %v3293, 1
      %vm3310 = vcmp.eq.s32.totalorder %v3294, 1
      %v3311 = vsel %vm3295, %v3230, -1e+30
      %v3312 = vsel %vm3296, %v3231, -1e+30
      %v3313 = vsel %vm3297, %v3232, -1e+30
      %v3314 = vsel %vm3298, %v3233, -1e+30
      %v3315 = vsel %vm3299, %v3234, -1e+30
      %v3316 = vsel %vm3300, %v3235, -1e+30
      %v3317 = vsel %vm3301, %v3236, -1e+30
      %v3318 = vsel %vm3302, %v3237, -1e+30
      %v3319 = vsel %vm3303, %v3238, -1e+30
      %v3320 = vsel %vm3304, %v3239, -1e+30
      %v3321 = vsel %vm3305, %v3240, -1e+30
      %v3322 = vsel %vm3306, %v3241, -1e+30
      %v3323 = vsel %vm3307, %v3242, -1e+30
      %v3324 = vsel %vm3308, %v3243, -1e+30
      %v3325 = vsel %vm3309, %v3244, -1e+30
      %v3326 = vsel %vm3310, %v3245, -1e+30
      %v3327 = vmax.f32 %v3311, %v3315
      %v3328 = vmax.f32 %v3312, %v3316
      %v3329 = vmax.f32 %v3313, %v3317
      %v3330 = vmax.f32 %v3314, %v3318
      %v3331 = vmax.f32 %v3327, %v3319
      %v3332 = vmax.f32 %v3328, %v3320
      %v3333 = vmax.f32 %v3329, %v3321
      %v3334 = vmax.f32 %v3330, %v3322
      %v3335 = vmax.f32 %v3331, %v3323
      %v3336 = vmax.f32 %v3332, %v3324
      %v3337 = vmax.f32 %v3333, %v3325
      %v3338 = vmax.f32 %v3334, %v3326
      %v3339 = vmax.f32 %v3335, %v3336
      %v3340 = vmax.f32 %v3337, %v3338
      %v3341 = vmax.f32 %v3339, %v3340
      %v3342 = vrot.slane %v3341, 4
      %v3343 = vmax.f32 %v3341, %v3342
      %v3344 = vrot.slane %v3343, 2
      %v3345 = vmax.f32 %v3343, %v3344
      %v3346 = vrot.slane %v3345, 1
      %v3347 = vmax.f32 %v3345, %v3346
      %v3348 = vsub.f32 %v3311, %v3347
      %v3349 = vsub.f32 %v3312, %v3347
      %v3350 = vsub.f32 %v3313, %v3347
      %v3351 = vsub.f32 %v3314, %v3347
      %v3352 = vsub.f32 %v3315, %v3347
      %v3353 = vsub.f32 %v3316, %v3347
      %v3354 = vsub.f32 %v3317, %v3347
      %v3355 = vsub.f32 %v3318, %v3347
      %v3356 = vsub.f32 %v3319, %v3347
      %v3357 = vsub.f32 %v3320, %v3347
      %v3358 = vsub.f32 %v3321, %v3347
      %v3359 = vsub.f32 %v3322, %v3347
      %v3360 = vsub.f32 %v3323, %v3347
      %v3361 = vsub.f32 %v3324, %v3347
      %v3362 = vsub.f32 %v3325, %v3347
      %v3363 = vsub.f32 %v3326, %v3347
      %v3364 = vmul.f32 %v3348, 1.442695
      %v3365 = vpow.pop %v3364
      %v3366 = vmul.f32 %v3349, 1.442695
      %v3367 = vpow.pop %v3366
      %v3368 = vmul.f32 %v3350, 1.442695
      %v3369 = vpow.pop %v3368
      %v3370 = vmul.f32 %v3351, 1.442695
      %v3371 = vpow.pop %v3370
      %v3372 = vmul.f32 %v3352, 1.442695
      %v3373 = vpow.pop %v3372
      %v3374 = vmul.f32 %v3353, 1.442695
      %v3375 = vpow.pop %v3374
      %v3376 = vmul.f32 %v3354, 1.442695
      %v3377 = vpow.pop %v3376
      %v3378 = vmul.f32 %v3355, 1.442695
      %v3379 = vpow.pop %v3378
      %v3380 = vmul.f32 %v3356, 1.442695
      %v3381 = vpow.pop %v3380
      %v3382 = vmul.f32 %v3357, 1.442695
      %v3383 = vpow.pop %v3382
      %v3384 = vmul.f32 %v3358, 1.442695
      %v3385 = vpow.pop %v3384
      %v3386 = vmul.f32 %v3359, 1.442695
      %v3387 = vpow.pop %v3386
      %v3388 = vmul.f32 %v3360, 1.442695
      %v3389 = vpow.pop %v3388
      %v3390 = vmul.f32 %v3361, 1.442695
      %v3391 = vpow.pop %v3390
      %v3392 = vmul.f32 %v3362, 1.442695
      %v3393 = vpow.pop %v3392
      %v3394 = vmul.f32 %v3363, 1.442695
      %v3395 = vpow.pop %v3394
      %v3396 = vadd.f32 %v3365, %v3367
      %v3397 = vadd.f32 %v3396, %v3369
      %v3398 = vadd.f32 %v3397, %v3371
      %v3399 = vadd.f32 %v3398, %v3373
      %v3400 = vadd.f32 %v3399, %v3375
      %v3401 = vadd.f32 %v3400, %v3377
      %v3402 = vadd.f32 %v3401, %v3379
      %v3403 = vadd.f32 %v3402, %v3381
      %v3404 = vadd.f32 %v3403, %v3383
      %v3405 = vadd.f32 %v3404, %v3385
      %v3406 = vadd.f32 %v3405, %v3387
      %v3407 = vadd.f32 %v3406, %v3389
      %v3408 = vadd.f32 %v3407, %v3391
      %v3409 = vadd.f32 %v3408, %v3393
      %v3410 = vadd.f32 %v3409, %v3395
      %v3411 = vrot.slane %v3410, 4
      %v3412 = vadd.f32 %v3410, %v3411
      %v3413 = vrot.slane %v3412, 2
      %v3414 = vadd.f32 %v3412, %v3413
      %v3415 = vrot.slane %v3414, 1
      %v3416 = vadd.f32 %v3414, %v3415
      %v3417 = vrcp.pop %v3416
      %v3418 = vmul.f32 %v3365, %v3417
      %v3419 = vmul.f32 %v3367, %v3417
      %v3420 = vmul.f32 %v3369, %v3417
      %v3421 = vmul.f32 %v3371, %v3417
      %v3422 = vmul.f32 %v3373, %v3417
      %v3423 = vmul.f32 %v3375, %v3417
      %v3424 = vmul.f32 %v3377, %v3417
      %v3425 = vmul.f32 %v3379, %v3417
      %v3426 = vmul.f32 %v3381, %v3417
      %v3427 = vmul.f32 %v3383, %v3417
      %v3428 = vmul.f32 %v3385, %v3417
      %v3429 = vmul.f32 %v3387, %v3417
      %v3430 = vmul.f32 %v3389, %v3417
      %v3431 = vmul.f32 %v3391, %v3417
      %v3432 = vmul.f32 %v3393, %v3417
      %v3433 = vmul.f32 %v3395, %v3417
      %v3434 = vld [vmem:[%s428] sm:$0xff]
      %v3435 = vld [vmem:[%s428 + $0x8] sm:$0xff]
      %3437 = vset.pattern.permute.xlu0 0
      %3438 = vperm.xlu0 %3437, %v3434
      %v3439 = vpop.permute.xlu0 %3438
      %3442 = vset.pattern.permute.xlu0 0
      %3443 = vperm.xlu0 %3442, %v3435
      %v3444 = vpop.permute.xlu0 %3443
      %3447 = vset.pattern.permute.xlu0 0
      %3448 = vperm.xlu0 %3447, 0.0
      %v3449 = vpop.permute.xlu0 %3448
      %v3451 = vmul.f32 %v3418, %v3439
      %v3452 = vmul.f32 %v3419, %v3444
      %v3453 = vmul.f32 %v3420, %v3449
      %v3454 = vmul.f32 %v3421, %v3449
      %v3455 = vmul.f32 %v3422, %v3449
      %v3456 = vmul.f32 %v3423, %v3449
      %v3457 = vmul.f32 %v3424, %v3449
      %v3458 = vmul.f32 %v3425, %v3449
      %v3459 = vmul.f32 %v3426, %v3449
      %v3460 = vmul.f32 %v3427, %v3449
      %v3461 = vmul.f32 %v3428, %v3449
      %v3462 = vmul.f32 %v3429, %v3449
      %v3463 = vmul.f32 %v3430, %v3449
      %v3464 = vmul.f32 %v3431, %v3449
      %v3465 = vmul.f32 %v3432, %v3449
      %v3466 = vmul.f32 %v3433, %v3449
      %v3467 = vpack.c.bf16 %v3452, %v3451
      %v3468 = vpack.c.bf16 %v3454, %v3453
      %v3469 = vpack.c.bf16 %v3456, %v3455
      %v3470 = vpack.c.bf16 %v3458, %v3457
      %v3471 = vpack.c.bf16 %v3460, %v3459
      %v3472 = vpack.c.bf16 %v3462, %v3461
      %v3473 = vpack.c.bf16 %v3464, %v3463
      %v3474 = vpack.c.bf16 %v3466, %v3465
      %3475 = vmatprep.subr.bf16.mxu0 0
      %3476 = vmatpush1.bf16.msra.mxu0 %v3474
      %3477 = vmatprep.subr.bf16.mxu0 0
      %3478 = vmatpush1.bf16.msra.mxu0 %v3473
      %3479 = vmatprep.subr.bf16.mxu0 0
      %3480 = vmatpush1.bf16.msra.mxu0 %v3472
      %3481 = vmatprep.subr.bf16.mxu0 0
      %3482 = vmatpush1.bf16.msra.mxu0 %v3471
      %3483 = vmatprep.subr.bf16.mxu0 0
      %3484 = vmatpush1.bf16.msra.mxu0 %v3470
      %3485 = vmatprep.subr.bf16.mxu0 0
      %3486 = vmatpush1.bf16.msra.mxu0 %v3469
      %3487 = vmatprep.subr.bf16.mxu0 0
      %3488 = vmatpush1.bf16.msra.mxu0 %v3468
      %3489 = vmatprep.subr.bf16.mxu0 0
      %3490 = vmatpush1.bf16.msra.mxu0 %v3467
      %3491 = vmatprep.subr.bf16.mxu0 0
      %3492 = vmatpush2.bf16.msra.mxu0 0
      %3493 = vmatprep.subr.bf16.mxu0 0
      %3494 = vmatpush2.bf16.msra.mxu0 0
      %3495 = vmatprep.subr.bf16.mxu0 0
      %3496 = vmatpush2.bf16.msra.mxu0 0
      %3497 = vmatprep.subr.bf16.mxu0 0
      %3498 = vmatpush2.bf16.msra.mxu0 0
      %3499 = vmatprep.subr.bf16.mxu0 0
      %3500 = vmatpush2.bf16.msra.mxu0 0
      %3501 = vmatprep.subr.bf16.mxu0 0
      %3502 = vmatpush2.bf16.msra.mxu0 0
      %3503 = vmatprep.subr.bf16.mxu0 0
      %3504 = vmatpush2.bf16.msra.mxu0 0
      %3505 = vmatprep.subr.bf16.mxu0 0
      %3506 = vmatpush2.bf16.msra.mxu0 0
      %3507 = vmatprep.mubr.bf16.mxu0 0
      %3508 = vmatmul.mubr.bf16.gmra.mxu0 %v2937
      %v3509 = vpop.f32.mrf.mxu0
      %v3510 = vadd.f32 0.0, %v3509
      %v3511 = vpop.f32.mrf.mxu0
      %v3512 = vpop.f32.mrf.mxu0
      %v3513 = vadd.f32 0.0, %v3512
      %v3514 = vpop.f32.mrf.mxu0
      %3515 = vmatprep.mubr.bf16.mxu0 0
      %3516 = vmatmul.mubr.bf16.gmra.mxu0 %v2938
      %v3517 = vpop.f32.mrf.mxu0
      %v3518 = vadd.f32 0.0, %v3517
      %v3519 = vpop.f32.mrf.mxu0
      %v3520 = vpop.f32.mrf.mxu0
      %v3521 = vadd.f32 0.0, %v3520
      %v3522 = vpop.f32.mrf.mxu0
      %3523 = vmatprep.mubr.bf16.mxu0 0
      %3524 = vmatmul.mubr.bf16.gmra.mxu0 %v2939
      %v3525 = vpop.f32.mrf.mxu0
      %v3526 = vadd.f32 0.0, %v3525
      %v3527 = vpop.f32.mrf.mxu0
      %v3528 = vpop.f32.mrf.mxu0
      %v3529 = vadd.f32 0.0, %v3528
      %v3530 = vpop.f32.mrf.mxu0
      %3531 = vmatprep.mubr.bf16.mxu0 0
      %3532 = vmatmul.mubr.bf16.gmra.mxu0 %v2940
      %v3533 = vpop.f32.mrf.mxu0
      %v3534 = vadd.f32 0.0, %v3533
      %v3535 = vpop.f32.mrf.mxu0
      %v3536 = vpop.f32.mrf.mxu0
      %v3537 = vadd.f32 0.0, %v3536
      %v3538 = vpop.f32.mrf.mxu0
      %3539 = vdwg.mxu0
      %v3540 = vld [vmem:[%s11] sm:$0xf]
      %v3541 = vld [vmem:[%s11 + $0x4] sm:$0xf]
      %v3542 = vld [vmem:[%s11 + $0x8] sm:$0xf]
      %v3543 = vld [vmem:[%s11 + $0xc] sm:$0xf]
      %v3544 = vld [vmem:[%s11 + $0x10] sm:$0xf]
      %v3545 = vld [vmem:[%s11 + $0x14] sm:$0xf]
      %v3546 = vld [vmem:[%s11 + $0x18] sm:$0xf]
      %v3547 = vld [vmem:[%s11 + $0x1c] sm:$0xf]
      %v3548 = vpack.c.bf16 %v3513, %v3510
      %v3549 = vpack.c.bf16 %v3521, %v3518
      %v3550 = vpack.c.bf16 %v3529, %v3526
      %v3551 = vpack.c.bf16 %v3537, %v3534
      %3552 = vset.pattern.permute.xlu0 8
      %3553 = vperm.xlu0 %3552, %v480
      %v3554 = vpop.permute.xlu0 %3553
      %3556 = vset.pattern.permute.xlu0 8
      %3557 = vperm.xlu0 %3556, %v481
      %v3558 = vpop.permute.xlu0 %3557
      %3560 = vset.pattern.permute.xlu0 8
      %3561 = vperm.xlu0 %3560, %v482
      %v3562 = vpop.permute.xlu0 %3561
      %3564 = vset.pattern.permute.xlu0 8
      %3565 = vperm.xlu0 %3564, %v483
      %v3566 = vpop.permute.xlu0 %3565
      %3568 = vset.pattern.permute.xlu0 8
      %3569 = vperm.xlu0 %3568, %v484
      %v3570 = vpop.permute.xlu0 %3569
      %3572 = vset.pattern.permute.xlu0 8
      %3573 = vperm.xlu0 %3572, %v485
      %v3574 = vpop.permute.xlu0 %3573
      %3576 = vset.pattern.permute.xlu0 8
      %3577 = vperm.xlu0 %3576, %v486
      %v3578 = vpop.permute.xlu0 %3577
      %3580 = vset.pattern.permute.xlu0 8
      %3581 = vperm.xlu0 %3580, %v487
      %v3582 = vpop.permute.xlu0 %3581
      %v3592 = vunpack.c.l.b16 %v3540
      %v3593 = vunpack.c.l.b16 %v3541
      %v3594 = vunpack.c.l.b16 %v3542
      %v3595 = vunpack.c.l.b16 %v3543
      %v3596 = vunpack.c.l.b16 %v3544
      %v3597 = vunpack.c.l.b16 %v3545
      %v3598 = vunpack.c.l.b16 %v3546
      %v3599 = vunpack.c.l.b16 %v3547
      %v3600 = vpack.c.b16 %v3593, %v3592
      %v3601 = vpack.c.b16 %v3595, %v3594
      %v3602 = vpack.c.b16 %v3597, %v3596
      %v3603 = vpack.c.b16 %v3599, %v3598
      %v3605 = vsel %vm542, %v3600, 0
      %v3608 = vsel %vm542, %v3601, 0
      %v3611 = vsel %vm542, %v3602, 0
      %v3614 = vsel %vm542, %v3603, 0
      %3616 = vmatprep.subr.bf16.mxu0 0
      %3617 = vmatpush1.bf16.msra.mxu0 0
      %3618 = vmatprep.subr.bf16.mxu0 0
      %3619 = vmatpush1.bf16.msra.mxu0 0
      %3620 = vmatprep.subr.bf16.mxu0 0
      %3621 = vmatpush1.bf16.msra.mxu0 0
      %3622 = vmatprep.subr.bf16.mxu0 0
      %3623 = vmatpush1.bf16.msra.mxu0 0
      %3624 = vmatprep.subr.bf16.mxu0 0
      %3625 = vmatpush1.bf16.msra.mxu0 %v3551
      %3626 = vmatprep.subr.bf16.mxu0 0
      %3627 = vmatpush1.bf16.msra.mxu0 %v3550
      %3628 = vmatprep.subr.bf16.mxu0 0
      %3629 = vmatpush1.bf16.msra.mxu0 %v3549
      %3630 = vmatprep.subr.bf16.mxu0 0
      %3631 = vmatpush1.bf16.msra.mxu0 %v3548
      %3632 = vmatprep.subr.bf16.mxu0 0
      %3633 = vmatpush2.bf16.msra.mxu0 0
      %3634 = vmatprep.subr.bf16.mxu0 0
      %3635 = vmatpush2.bf16.msra.mxu0 0
      %3636 = vmatprep.subr.bf16.mxu0 0
      %3637 = vmatpush2.bf16.msra.mxu0 0
      %3638 = vmatprep.subr.bf16.mxu0 0
      %3639 = vmatpush2.bf16.msra.mxu0 0
      %3640 = vmatprep.subr.bf16.mxu0 0
      %3641 = vmatpush2.bf16.msra.mxu0 0
      %3642 = vmatprep.subr.bf16.mxu0 0
      %3643 = vmatpush2.bf16.msra.mxu0 0
      %3644 = vmatprep.subr.bf16.mxu0 0
      %3645 = vmatpush2.bf16.msra.mxu0 0
      %3646 = vmatprep.subr.bf16.mxu0 0
      %3647 = vmatpush2.bf16.msra.mxu0 0
      %3648 = vmatprep.mubr.bf16.mxu0 0
      %3649 = vmatmul.mubr.bf16.gmra.mxu0 %v3605
      %v3650 = vpop.f32.mrf.mxu0
      %v3651 = vadd.f32 %v3554, %v3650
      %v3652 = vpop.f32.mrf.mxu0
      %v3653 = vpop.f32.mrf.mxu0
      %v3654 = vadd.f32 %v3558, %v3653
      %v3655 = vpop.f32.mrf.mxu0
      %3656 = vmatprep.mubr.bf16.mxu0 0
      %3657 = vmatmul.mubr.bf16.gmra.mxu0 %v3608
      %v3658 = vpop.f32.mrf.mxu0
      %v3659 = vadd.f32 %v3562, %v3658
      %v3660 = vpop.f32.mrf.mxu0
      %v3661 = vpop.f32.mrf.mxu0
      %v3662 = vadd.f32 %v3566, %v3661
      %v3663 = vpop.f32.mrf.mxu0
      %3664 = vmatprep.mubr.bf16.mxu0 0
      %3665 = vmatmul.mubr.bf16.gmra.mxu0 %v3611
      %v3666 = vpop.f32.mrf.mxu0
      %v3667 = vadd.f32 %v3570, %v3666
      %v3668 = vpop.f32.mrf.mxu0
      %v3669 = vpop.f32.mrf.mxu0
      %v3670 = vadd.f32 %v3574, %v3669
      %v3671 = vpop.f32.mrf.mxu0
      %3672 = vmatprep.mubr.bf16.mxu0 0
      %3673 = vmatmul.mubr.bf16.gmra.mxu0 %v3614
      %v3674 = vpop.f32.mrf.mxu0
      %v3675 = vadd.f32 %v3578, %v3674
      %v3676 = vpop.f32.mrf.mxu0
      %v3677 = vpop.f32.mrf.mxu0
      %v3678 = vadd.f32 %v3582, %v3677
      %v3679 = vpop.f32.mrf.mxu0
      %3680 = vdwg.mxu0
      %v3681 = vadd.f32 %v2106, %v3651
      %v3682 = vadd.f32 %v2107, %v3654
      %v3683 = vadd.f32 %v2108, %v3659
      %v3684 = vadd.f32 %v2109, %v3662
      %v3685 = vadd.f32 %v2110, %v3667
      %v3686 = vadd.f32 %v2111, %v3670
      %v3687 = vadd.f32 %v2112, %v3675
      %v3688 = vadd.f32 %v2113, %v3678
      %3689 = vst.msk [vmem:[%s433] sm:$0xff] %vm451, %v3681
      %3690 = vst.msk [vmem:[%s433 + $0x8] sm:$0xff] %vm451, %v3682
      %3691 = vst.msk [vmem:[%s433 + $0x10] sm:$0xff] %vm451, %v3683
      %3692 = vst.msk [vmem:[%s433 + $0x18] sm:$0xff] %vm451, %v3684
      %3693 = vst.msk [vmem:[%s433 + $0x20] sm:$0xff] %vm451, %v3685
      %3694 = vst.msk [vmem:[%s433 + $0x28] sm:$0xff] %vm451, %v3686
      %3695 = vst.msk [vmem:[%s433 + $0x30] sm:$0xff] %vm451, %v3687
      %3696 = vst.msk [vmem:[%s433 + $0x38] sm:$0xff] %vm451, %v3688
      %p3697 = scmp.lt.s32.totalorder %s23, 1
      %s3698 = scalar_select %p3697, %s23, 1
      %s3699 = smul.addr %s3698, 8
      %s3700 = smul.addr %s3699, 8
      %s3701 = scalar_lea.vmem %s12, %s3700
      // Predicated region
      $region69: #{tpu_custom_call.1} parent=67 // pred_check
        %p3702 = pneg %p303
      $region70: #{tpu_custom_call.1} parent=67 // pred_check_branch
        %3704 = sbr.rel (%p3702) target = $region72
      $region71: #{tpu_custom_call.1} parent=67 // pred_region
        _
      $region72: #{tpu_custom_call.1} parent=67 // pred_fallthru
        _
    $region68: #{tpu_custom_call.1} parent=5 // pred_fallthru
      _
    %p3705 = scmp.le.s32.totalorder 2, %s18
    // Predicated region
    $region73: #{tpu_custom_call.1} parent=5 // pred_check
      %p3706 = pneg %p3705
    $region74: #{tpu_custom_call.1} parent=5 // pred_check_branch
      %3708 = sbr.rel (%p3706) target = $region76
    $region75: #{tpu_custom_call.1} parent=5 // pred_region
      %s3709 = ssub.s32 %s18, 2
      // Predicated region
      $region77: #{tpu_custom_call.1} parent=75 // pred_check
        %p3710 = pneg %p309
      $region78: #{tpu_custom_call.1} parent=75 // pred_check_branch
        %3712 = sbr.rel (%p3710) target = $region80
      $region79: #{tpu_custom_call.1} parent=75 // pred_region
        %p3713 = scmp.lt.s32.totalorder %s24, 1
        %s3714 = scalar_select %p3713, %s24, 1
        %s3715 = smul.addr %s3714, 8
        %s3716 = smul.addr %s3715, 8
        %s3717 = scalar_lea.vmem %s12, %s3716
      $region80: #{tpu_custom_call.1} parent=75 // pred_fallthru
        _
    $region76: #{tpu_custom_call.1} parent=5 // pred_fallthru
      _
  $region6: #{tpu_custom_call.1} parent=0 // loop_footer
    %s22 = sadd.s32 1, %s18
  $region7: #{tpu_custom_call.1} parent=0 // loop_footer_branch
    %17 = sbr.rel target = $region3
  $region8: #{tpu_custom_call.1} parent=0 // loop_exit
    _

</llo_original>
